<compile_context>
chip_gen: v5e
topology: v5e:2x2
jax: 0.10.0
libtpu: 0.0.40
codegen_flags: <defaults>
</compile_context>

<pallas_src>
import functools

import jax
import jax.numpy as jnp
from jax.experimental import pallas as pl
from jax.experimental.pallas import tpu as pltpu


# ----------------------------------------------------------------------------
# in-kernel helpers
# ----------------------------------------------------------------------------
def _erf_f32(v):
    # Abramowitz & Stegun 7.1.26 rational approximation, |err| < 1.5e-7
    # (float32-exact).  Uses only exp / mul / add / abs / where.
    a1, a2, a3 = 0.254829592, -0.284496736, 1.421413741
    a4, a5, p = -1.453152027, 1.061405429, 0.3275911
    av = jnp.abs(v)
    t = 1.0 / (1.0 + p * av)
    poly = ((((a5 * t + a4) * t + a3) * t + a2) * t + a1) * t
    y = 1.0 - poly * jnp.exp(-av * av)
    return jnp.where(v >= 0.0, y, -y)


def _gelu_exact(v):
    # matches torch.nn.GELU() default (exact / erf based)
    return 0.5 * v * (1.0 + _erf_f32(v * 0.7071067811865476))


def _layernorm(v, g, b, eps=1e-5):
    mu = jnp.mean(v, axis=-1, keepdims=True)
    var = jnp.mean((v - mu) * (v - mu), axis=-1, keepdims=True)
    return (v - mu) * jax.lax.rsqrt(var + eps) * g + b


# ----------------------------------------------------------------------------
# one AttentionBlock forward (single batch element, all float32)
# ----------------------------------------------------------------------------
def _attention_block(x_in, z_in, wq, wkv, wo, wf, vec, hb, heads):
    """AttentionBlock.forward(x_in, z_in) for one batch element.

    x_in : (Lx, E)  key/value source        z_in : (Lz, E) query source
    wq   : (H, E, dh)     per-head Q weight (pre-transposed, pre-split)
    wkv  : (2H, E, dh)    per-head K weights then V weights
    wo   : (H, dh, E)     per-head out-projection weight
    wf   : (3, E, E)      w1^T, w2^T, w3^T  (in, out layout)
    vec  : (16, E) rows = [lnx_g, lnx_b, ln1_g, ln1_b, lnatt_g, lnatt_b,
                           ln2_g, ln2_b, bo, b1, b2, b3, pad, pad, pad, pad]
    hb   : (5H, 1, dh) rows = [bq | bk | bv | bias_k | bias_v] (head-split)
    """
    Lz, E = z_in.shape
    Lx = x_in.shape[0]
    H = heads
    dh = E // H
    scale = 1.0 / float(dh) ** 0.5

    lnx_g, lnx_b = vec[0:1], vec[1:2]
    ln1_g, ln1_b = vec[2:3], vec[3:4]
    lnatt_g, lnatt_b = vec[4:5], vec[5:6]
    ln2_g, ln2_b = vec[6:7], vec[7:8]
    bo, b1, b2, b3 = vec[8:9], vec[9:10], vec[10:11], vec[11:12]
    bq, bk, bv = hb[0:H], hb[H:2 * H], hb[2 * H:3 * H]          # (H, 1, dh)
    bias_k, bias_v = hb[3 * H:4 * H], hb[4 * H:5 * H]           # (H, 1, dh)

    xn = _layernorm(x_in, lnx_g, lnx_b)        # layer_norm_x
    zn = _layernorm(z_in, ln1_g, ln1_b)        # layer_norm_1

    # ---- MultiheadAttention(zn, xn, xn), bias=True, add_bias_kv=True ----
    zn_b = jnp.broadcast_to(zn[None], (H, Lz, E))
    xn_b = jnp.broadcast_to(xn[None], (2 * H, Lx, E))
    qh = jnp.einsum('hle,hed->hld', zn_b, wq,
                    preferred_element_type=jnp.float32) + bq     # (H, Lz, dh)
    qh = qh * scale
    kvh = jnp.einsum('hle,hed->hld', xn_b, wkv,
                     preferred_element_type=jnp.float32)         # (2H, Lx, dh)
    kh = kvh[:H] + bk                                            # (H, Lx, dh)
    vh = kvh[H:] + bv                                            # (H, Lx, dh)

    # scores over Lx real keys + 1 analytic bias_kv key (no concatenation)
    s = jnp.einsum('hqd,hkd->hqk', qh, kh,
                   preferred_element_type=jnp.float32)           # (H, Lz, Lx)
    sb = jnp.sum(qh * bias_k, axis=-1, keepdims=True)            # (H, Lz, 1)
    m = jnp.maximum(jnp.max(s, axis=-1, keepdims=True), sb)
    p = jnp.exp(s - m)
    pb = jnp.exp(sb - m)
    inv_denom = pl.reciprocal(jnp.sum(p, axis=-1, keepdims=True) + pb,
                              approx=True)
    ctx = jnp.einsum('hqk,hkd->hqd', p, vh,
                     preferred_element_type=jnp.float32)         # (H, Lz, dh)
    ctx = (ctx + pb * bias_v) * inv_denom
    attn = jnp.einsum('hqd,hde->hqe', ctx, wo,
                      preferred_element_type=jnp.float32)        # (H, Lz, E)
    attn = jnp.sum(attn, axis=0) + bo                            # out_proj

    z_att = attn + z_in                                          # residual 1

    # ---- feed-forward branch (dropout = identity in eval mode) ----
    h = _layernorm(z_att, lnatt_g, lnatt_b)
    h = _gelu_exact(jnp.dot(h, wf[0], preferred_element_type=jnp.float32) + b1)
    h = _layernorm(h, ln2_g, ln2_b)
    h = _gelu_exact(jnp.dot(h, wf[1], preferred_element_type=jnp.float32) + b2)
    h = jnp.dot(h, wf[2], preferred_element_type=jnp.float32) + b3
    return h + z_att                                             # residual 2


# ----------------------------------------------------------------------------
# fused TransformerBlock kernel (one batch element per grid step)
# ----------------------------------------------------------------------------
def _transformer_block_kernel(
    x_ref, z_ref,
    c_wq, c_wkv, c_wo, c_wf, c_vec, c_hb,
    l_wq, l_wkv, l_wo, l_wf, l_vec, l_hb,
    out_ref,
    *, cross_heads, heads, latent_blocks,
):
    x = x_ref[0].astype(jnp.float32)     # (Lx, E)
    z = z_ref[0].astype(jnp.float32)     # (Lz, E)

    # cross-attention block: queries = z, keys/values = x_input
    z = _attention_block(x, z, c_wq[0], c_wkv[0], c_wo[0], c_wf[0],
                         c_vec[0], c_hb[0], cross_heads)
    # latent self-attention blocks: queries = keys = values = z
    for b in range(latent_blocks):
        z = _attention_block(z, z, l_wq[b], l_wkv[b], l_wo[b], l_wf[b],
                             l_vec[b], l_hb[b], heads)

    out_ref[0] = z.astype(out_ref.dtype)


# ----------------------------------------------------------------------------
# host-side parameter packing (free: transposes / head-splits done once here)
# ----------------------------------------------------------------------------
_VEC_ROWS = 16   # 12 used rows + 4 zero-pad rows (sublane multiple of 8)


def _pack_block(p, heads, E):
    dh = E // heads

    def split_qkv(w):   # PyTorch (out, in) -> (H, in, dh)
        return jnp.transpose(jnp.reshape(jnp.transpose(w), (E, heads, dh)),
                             (1, 0, 2))

    def split_bias(b):  # (E,) -> (H, 1, dh)
        return jnp.reshape(b, (heads, 1, dh))

    wq = split_qkv(p["wq"])
    wkv = jnp.concatenate([split_qkv(p["wk"]), split_qkv(p["wv"])], axis=0)
    wo = jnp.reshape(jnp.transpose(p["wo"]), (heads, dh, E))
    wf = jnp.stack([jnp.transpose(p["w1"]), jnp.transpose(p["w2"]),
                    jnp.transpose(p["w3"])], axis=0)
    vec = jnp.stack(
        [p["lnx_g"], p["lnx_b"], p["ln1_g"], p["ln1_b"],
         p["lnatt_g"], p["lnatt_b"], p["ln2_g"], p["ln2_b"],
         p["bo"], p["b1"], p["b2"], p["b3"]]
        + [jnp.zeros((E,), jnp.float32)] * (_VEC_ROWS - 12), axis=0)
    hb = jnp.concatenate([split_bias(p["bq"]), split_bias(p["bk"]),
                          split_bias(p["bv"]), split_bias(p["bias_k"]),
                          split_bias(p["bias_v"])], axis=0)      # (5H, 1, dh)
    return wq, wkv, wo, wf, vec, hb


def _pack_group(param_dicts, heads, E):
    packed = [_pack_block(p, heads, E) for p in param_dicts]
    return [jnp.stack(arrs, axis=0) for arrs in zip(*packed)]


# ----------------------------------------------------------------------------
# wrapper
# ----------------------------------------------------------------------------
def transformer_block(x_input, z, cross_params, latent_params_list,
                      heads, cross_heads):
    """x_input: (N, Lx, E) keys/values source; z: (N, Lz, E) queries."""
    N, Lx, E = x_input.shape
    _, Lz, _ = z.shape
    latent_blocks = len(latent_params_list)

    cross = _pack_group([cross_params], cross_heads, E)
    latent = _pack_group(latent_params_list, heads, E)
    params = cross + latent          # 12 packed parameter arrays

    def _const_spec(p):
        nd = p.ndim
        return pl.BlockSpec(p.shape, lambda i, _nd=nd: (0,) * _nd)

    in_specs = ([pl.BlockSpec((1, Lx, E), lambda i: (i, 0, 0)),
                 pl.BlockSpec((1, Lz, E), lambda i: (i, 0, 0))]
                + [_const_spec(p) for p in params])

    kernel = functools.partial(
        _transformer_block_kernel, cross_heads=cross_heads, heads=heads,
        latent_blocks=latent_blocks)

    return pl.pallas_call(
        kernel,
        out_shape=jax.ShapeDtypeStruct((N, Lz, E), x_input.dtype),
        grid=(N,),
        in_specs=in_specs,
        out_specs=pl.BlockSpec((1, Lz, E), lambda i: (i, 0, 0)),
        compiler_params=pltpu.CompilerParams(
            dimension_semantics=("parallel",)),
    )(x_input, z, *params)


def init_attention_params(key, E):
    keys = jax.random.split(key, 16)

    def w(k):
        return jax.random.normal(k, (E, E), jnp.float32) * 0.05

    def b(k):
        return jax.random.normal(k, (E,), jnp.float32) * 0.05

    ones = jnp.ones((E,), jnp.float32)
    zeros = jnp.zeros((E,), jnp.float32)
    return {
        "lnx_g": ones, "lnx_b": zeros,
        "ln1_g": ones, "ln1_b": zeros,
        "lnatt_g": ones, "lnatt_b": zeros,
        "ln2_g": ones, "ln2_b": zeros,
        "wq": w(keys[0]), "bq": b(keys[1]),
        "wk": w(keys[2]), "bk": b(keys[3]),
        "wv": w(keys[4]), "bv": b(keys[5]),
        "bias_k": b(keys[6]), "bias_v": b(keys[7]),   # add_bias_kv params
        "wo": w(keys[8]), "bo": b(keys[9]),
        "w1": w(keys[10]), "b1": b(keys[11]),
        "w2": w(keys[12]), "b2": b(keys[13]),
        "w3": w(keys[14]), "b3": b(keys[15]),
    }


if __name__ == "__main__":
    # Small config consistent with the module:
    # opt_dim=32, latent_blocks=2, heads=4, cross_heads=2 (dropout eval=identity)
    E = 32
    heads = 4
    cross_heads = 2
    latent_blocks = 2
    N, Lx, Lz = 2, 16, 8

    key = jax.random.PRNGKey(0)
    kx, kz, kc, k_l0, k_l1 = jax.random.split(key, 5)
    x_input = jax.random.normal(kx, (N, Lx, E), jnp.float32)
    z0 = jax.random.normal(kz, (N, Lz, E), jnp.float32)

    cross_params = init_attention_params(kc, E)
    latent_params = [init_attention_params(k, E) for k in (k_l0, k_l1)]

    out = transformer_block(x_input, z0, cross_params, latent_params,
                            heads=heads, cross_heads=cross_heads)
    jax.block_until_ready(out)
    assert out.shape == (N, Lz, E)
    assert bool(jnp.all(jnp.isfinite(out)))
    print("KERNEL_OK")
</pallas_src>

<mosaic_0001>
module attributes {stable_mosaic.version = 11 : i64} {
  func.func @_transformer_block_kernel(%arg0: i32, %arg1: memref<1x16x32xf32, #tpu.memory_space<vmem>>, %arg2: memref<1x8x32xf32, #tpu.memory_space<vmem>>, %arg3: memref<1x2x32x16xf32, #tpu.memory_space<vmem>>, %arg4: memref<1x4x32x16xf32, #tpu.memory_space<vmem>>, %arg5: memref<1x2x16x32xf32, #tpu.memory_space<vmem>>, %arg6: memref<1x3x32x32xf32, #tpu.memory_space<vmem>>, %arg7: memref<1x16x32xf32, #tpu.memory_space<vmem>>, %arg8: memref<1x10x1x16xf32, #tpu.memory_space<vmem>>, %arg9: memref<2x4x32x8xf32, #tpu.memory_space<vmem>>, %arg10: memref<2x8x32x8xf32, #tpu.memory_space<vmem>>, %arg11: memref<2x4x8x32xf32, #tpu.memory_space<vmem>>, %arg12: memref<2x3x32x32xf32, #tpu.memory_space<vmem>>, %arg13: memref<2x16x32xf32, #tpu.memory_space<vmem>>, %arg14: memref<2x20x1x8xf32, #tpu.memory_space<vmem>>, %arg15: memref<1x8x32xf32, #tpu.memory_space<vmem>>) attributes {dimension_semantics = [#tpu.dimension_semantics<parallel>], iteration_bounds = array<i64: 2>, scalar_prefetch = 0 : i64, scratch_operands = 0 : i64, tpu.core_type = #tpu.core_type<tc>, window_params = [{transform_indices = @transform_0, window_bounds = array<i64: 1, 16, 32>}, {transform_indices = @transform_1, window_bounds = array<i64: 1, 8, 32>}, {pipeline_mode = #tpu.pipeline_mode<synchronous>, transform_indices = @transform_2, window_bounds = array<i64: 1, 2, 32, 16>}, {pipeline_mode = #tpu.pipeline_mode<synchronous>, transform_indices = @transform_3, window_bounds = array<i64: 1, 4, 32, 16>}, {pipeline_mode = #tpu.pipeline_mode<synchronous>, transform_indices = @transform_4, window_bounds = array<i64: 1, 2, 16, 32>}, {pipeline_mode = #tpu.pipeline_mode<synchronous>, transform_indices = @transform_5, window_bounds = array<i64: 1, 3, 32, 32>}, {pipeline_mode = #tpu.pipeline_mode<synchronous>, transform_indices = @transform_6, window_bounds = array<i64: 1, 16, 32>}, {pipeline_mode = #tpu.pipeline_mode<synchronous>, transform_indices = @transform_7, window_bounds = array<i64: 1, 10, 1, 16>}, {pipeline_mode = #tpu.pipeline_mode<synchronous>, transform_indices = @transform_8, window_bounds = array<i64: 2, 4, 32, 8>}, {pipeline_mode = #tpu.pipeline_mode<synchronous>, transform_indices = @transform_9, window_bounds = array<i64: 2, 8, 32, 8>}, {pipeline_mode = #tpu.pipeline_mode<synchronous>, transform_indices = @transform_10, window_bounds = array<i64: 2, 4, 8, 32>}, {pipeline_mode = #tpu.pipeline_mode<synchronous>, transform_indices = @transform_11, window_bounds = array<i64: 2, 3, 32, 32>}, {pipeline_mode = #tpu.pipeline_mode<synchronous>, transform_indices = @transform_12, window_bounds = array<i64: 2, 16, 32>}, {pipeline_mode = #tpu.pipeline_mode<synchronous>, transform_indices = @transform_13, window_bounds = array<i64: 2, 20, 1, 8>}, {transform_indices = @transform_14, window_bounds = array<i64: 1, 8, 32>}]} {
    %c0 = arith.constant 0 : index
    %c0_0 = arith.constant 0 : index
    %c0_1 = arith.constant 0 : index
    %0 = vector.load %arg1[%c0, %c0_0, %c0_1] : memref<1x16x32xf32, #tpu.memory_space<vmem>>, vector<1x16x32xf32>
    %1 = vector.shape_cast %0 : vector<1x16x32xf32> to vector<16x32xf32>
    %c0_2 = arith.constant 0 : index
    %c0_3 = arith.constant 0 : index
    %c0_4 = arith.constant 0 : index
    %2 = vector.load %arg2[%c0_2, %c0_3, %c0_4] : memref<1x8x32xf32, #tpu.memory_space<vmem>>, vector<1x8x32xf32>
    %3 = vector.shape_cast %2 : vector<1x8x32xf32> to vector<8x32xf32>
    %c0_5 = arith.constant 0 : index
    %c0_6 = arith.constant 0 : index
    %c0_7 = arith.constant 0 : index
    %c0_8 = arith.constant 0 : index
    %4 = vector.load %arg3[%c0_5, %c0_6, %c0_7, %c0_8] : memref<1x2x32x16xf32, #tpu.memory_space<vmem>>, vector<1x2x32x16xf32>
    %5 = vector.shape_cast %4 : vector<1x2x32x16xf32> to vector<2x32x16xf32>
    %c0_9 = arith.constant 0 : index
    %c0_10 = arith.constant 0 : index
    %c0_11 = arith.constant 0 : index
    %c0_12 = arith.constant 0 : index
    %6 = vector.load %arg4[%c0_9, %c0_10, %c0_11, %c0_12] : memref<1x4x32x16xf32, #tpu.memory_space<vmem>>, vector<1x4x32x16xf32>
    %7 = vector.shape_cast %6 : vector<1x4x32x16xf32> to vector<4x32x16xf32>
    %c0_13 = arith.constant 0 : index
    %c0_14 = arith.constant 0 : index
    %c0_15 = arith.constant 0 : index
    %c0_16 = arith.constant 0 : index
    %8 = vector.load %arg5[%c0_13, %c0_14, %c0_15, %c0_16] : memref<1x2x16x32xf32, #tpu.memory_space<vmem>>, vector<1x2x16x32xf32>
    %9 = vector.shape_cast %8 : vector<1x2x16x32xf32> to vector<2x16x32xf32>
    %c0_17 = arith.constant 0 : index
    %c0_18 = arith.constant 0 : index
    %c0_19 = arith.constant 0 : index
    %c0_20 = arith.constant 0 : index
    %10 = vector.load %arg6[%c0_17, %c0_18, %c0_19, %c0_20] : memref<1x3x32x32xf32, #tpu.memory_space<vmem>>, vector<1x3x32x32xf32>
    %11 = vector.shape_cast %10 : vector<1x3x32x32xf32> to vector<3x32x32xf32>
    %c0_21 = arith.constant 0 : index
    %c0_22 = arith.constant 0 : index
    %c0_23 = arith.constant 0 : index
    %12 = vector.load %arg7[%c0_21, %c0_22, %c0_23] : memref<1x16x32xf32, #tpu.memory_space<vmem>>, vector<1x16x32xf32>
    %13 = vector.shape_cast %12 : vector<1x16x32xf32> to vector<16x32xf32>
    %c0_24 = arith.constant 0 : index
    %c0_25 = arith.constant 0 : index
    %c0_26 = arith.constant 0 : index
    %c0_27 = arith.constant 0 : index
    %14 = vector.load %arg8[%c0_24, %c0_25, %c0_26, %c0_27] : memref<1x10x1x16xf32, #tpu.memory_space<vmem>>, vector<1x10x1x16xf32>
    %15 = vector.shape_cast %14 : vector<1x10x1x16xf32> to vector<10x1x16xf32>
    %16 = vector.extract_strided_slice %13 {offsets = [0, 0], sizes = [1, 32], strides = [1, 1]} : vector<16x32xf32> to vector<1x32xf32>
    %17 = vector.extract_strided_slice %13 {offsets = [1, 0], sizes = [1, 32], strides = [1, 1]} : vector<16x32xf32> to vector<1x32xf32>
    %18 = vector.extract_strided_slice %13 {offsets = [2, 0], sizes = [1, 32], strides = [1, 1]} : vector<16x32xf32> to vector<1x32xf32>
    %19 = vector.extract_strided_slice %13 {offsets = [3, 0], sizes = [1, 32], strides = [1, 1]} : vector<16x32xf32> to vector<1x32xf32>
    %20 = vector.extract_strided_slice %13 {offsets = [4, 0], sizes = [1, 32], strides = [1, 1]} : vector<16x32xf32> to vector<1x32xf32>
    %21 = vector.extract_strided_slice %13 {offsets = [5, 0], sizes = [1, 32], strides = [1, 1]} : vector<16x32xf32> to vector<1x32xf32>
    %22 = vector.extract_strided_slice %13 {offsets = [6, 0], sizes = [1, 32], strides = [1, 1]} : vector<16x32xf32> to vector<1x32xf32>
    %23 = vector.extract_strided_slice %13 {offsets = [7, 0], sizes = [1, 32], strides = [1, 1]} : vector<16x32xf32> to vector<1x32xf32>
    %24 = vector.extract_strided_slice %13 {offsets = [8, 0], sizes = [1, 32], strides = [1, 1]} : vector<16x32xf32> to vector<1x32xf32>
    %25 = vector.extract_strided_slice %13 {offsets = [9, 0], sizes = [1, 32], strides = [1, 1]} : vector<16x32xf32> to vector<1x32xf32>
    %26 = vector.extract_strided_slice %13 {offsets = [10, 0], sizes = [1, 32], strides = [1, 1]} : vector<16x32xf32> to vector<1x32xf32>
    %27 = vector.extract_strided_slice %13 {offsets = [11, 0], sizes = [1, 32], strides = [1, 1]} : vector<16x32xf32> to vector<1x32xf32>
    %28 = vector.extract_strided_slice %15 {offsets = [0, 0, 0], sizes = [2, 1, 16], strides = [1, 1, 1]} : vector<10x1x16xf32> to vector<2x1x16xf32>
    %29 = vector.extract_strided_slice %15 {offsets = [2, 0, 0], sizes = [2, 1, 16], strides = [1, 1, 1]} : vector<10x1x16xf32> to vector<2x1x16xf32>
    %30 = vector.extract_strided_slice %15 {offsets = [4, 0, 0], sizes = [2, 1, 16], strides = [1, 1, 1]} : vector<10x1x16xf32> to vector<2x1x16xf32>
    %31 = vector.extract_strided_slice %15 {offsets = [6, 0, 0], sizes = [2, 1, 16], strides = [1, 1, 1]} : vector<10x1x16xf32> to vector<2x1x16xf32>
    %32 = vector.extract_strided_slice %15 {offsets = [8, 0, 0], sizes = [2, 1, 16], strides = [1, 1, 1]} : vector<10x1x16xf32> to vector<2x1x16xf32>
    %cst = arith.constant dense<0.000000e+00> : vector<16xf32>
    %33 = vector.multi_reduction <add>, %1, %cst [1] : vector<16x32xf32> to vector<16xf32>
    %34 = vector.shape_cast %33 : vector<16xf32> to vector<16x1xf32>
    %cst_28 = arith.constant 3.200000e+01 : f32
    %35 = vector.broadcast %cst_28 : f32 to vector<16x1xf32>
    %36 = arith.divf %34, %35 : vector<16x1xf32>
    %37 = vector.broadcast %36 : vector<16x1xf32> to vector<16x32xf32>
    %38 = arith.subf %1, %37 : vector<16x32xf32>
    %39 = vector.broadcast %36 : vector<16x1xf32> to vector<16x32xf32>
    %40 = arith.subf %1, %39 : vector<16x32xf32>
    %41 = arith.mulf %38, %40 : vector<16x32xf32>
    %cst_29 = arith.constant dense<0.000000e+00> : vector<16xf32>
    %42 = vector.multi_reduction <add>, %41, %cst_29 [1] : vector<16x32xf32> to vector<16xf32>
    %43 = vector.shape_cast %42 : vector<16xf32> to vector<16x1xf32>
    %cst_30 = arith.constant 3.200000e+01 : f32
    %44 = vector.broadcast %cst_30 : f32 to vector<16x1xf32>
    %45 = arith.divf %43, %44 : vector<16x1xf32>
    %46 = vector.broadcast %36 : vector<16x1xf32> to vector<16x32xf32>
    %47 = arith.subf %1, %46 : vector<16x32xf32>
    %cst_31 = arith.constant 9.99999974E-6 : f32
    %48 = vector.broadcast %cst_31 : f32 to vector<16x1xf32>
    %49 = arith.addf %45, %48 : vector<16x1xf32>
    %50 = math.rsqrt %49 : vector<16x1xf32>
    %51 = vector.broadcast %50 : vector<16x1xf32> to vector<16x32xf32>
    %52 = arith.mulf %47, %51 : vector<16x32xf32>
    %53 = vector.broadcast %16 : vector<1x32xf32> to vector<16x32xf32>
    %54 = arith.mulf %52, %53 : vector<16x32xf32>
    %55 = vector.broadcast %17 : vector<1x32xf32> to vector<16x32xf32>
    %56 = arith.addf %54, %55 : vector<16x32xf32>
    %cst_32 = arith.constant dense<0.000000e+00> : vector<8xf32>
    %57 = vector.multi_reduction <add>, %3, %cst_32 [1] : vector<8x32xf32> to vector<8xf32>
    %58 = vector.shape_cast %57 : vector<8xf32> to vector<8x1xf32>
    %cst_33 = arith.constant 3.200000e+01 : f32
    %59 = vector.broadcast %cst_33 : f32 to vector<8x1xf32>
    %60 = arith.divf %58, %59 : vector<8x1xf32>
    %61 = vector.broadcast %60 : vector<8x1xf32> to vector<8x32xf32>
    %62 = arith.subf %3, %61 : vector<8x32xf32>
    %63 = vector.broadcast %60 : vector<8x1xf32> to vector<8x32xf32>
    %64 = arith.subf %3, %63 : vector<8x32xf32>
    %65 = arith.mulf %62, %64 : vector<8x32xf32>
    %cst_34 = arith.constant dense<0.000000e+00> : vector<8xf32>
    %66 = vector.multi_reduction <add>, %65, %cst_34 [1] : vector<8x32xf32> to vector<8xf32>
    %67 = vector.shape_cast %66 : vector<8xf32> to vector<8x1xf32>
    %cst_35 = arith.constant 3.200000e+01 : f32
    %68 = vector.broadcast %cst_35 : f32 to vector<8x1xf32>
    %69 = arith.divf %67, %68 : vector<8x1xf32>
    %70 = vector.broadcast %60 : vector<8x1xf32> to vector<8x32xf32>
    %71 = arith.subf %3, %70 : vector<8x32xf32>
    %cst_36 = arith.constant 9.99999974E-6 : f32
    %72 = vector.broadcast %cst_36 : f32 to vector<8x1xf32>
    %73 = arith.addf %69, %72 : vector<8x1xf32>
    %74 = math.rsqrt %73 : vector<8x1xf32>
    %75 = vector.broadcast %74 : vector<8x1xf32> to vector<8x32xf32>
    %76 = arith.mulf %71, %75 : vector<8x32xf32>
    %77 = vector.broadcast %18 : vector<1x32xf32> to vector<8x32xf32>
    %78 = arith.mulf %76, %77 : vector<8x32xf32>
    %79 = vector.broadcast %19 : vector<1x32xf32> to vector<8x32xf32>
    %80 = arith.addf %78, %79 : vector<8x32xf32>
    %81 = vector.shape_cast %80 : vector<8x32xf32> to vector<1x8x32xf32>
    %82 = vector.shape_cast %81 : vector<1x8x32xf32> to vector<1x8x32xf32>
    %83 = vector.broadcast %82 : vector<1x8x32xf32> to vector<2x8x32xf32>
    %84 = vector.shape_cast %56 : vector<16x32xf32> to vector<1x16x32xf32>
    %85 = vector.shape_cast %84 : vector<1x16x32xf32> to vector<1x16x32xf32>
    %86 = vector.broadcast %85 : vector<1x16x32xf32> to vector<4x16x32xf32>
    "tpu.trace_start"() <{level = 10 : i32, message = "hle,hed->hld"}> : () -> ()
    %cst_37 = arith.constant dense<0.000000e+00> : vector<2x8x16xf32>
    %87 = tpu.matmul %83, %5, %cst_37 {dimension_numbers = #tpu.dot_dimension_numbers<[2], [1], [1], [2], [0, 0, 0, 1, 1, 2], [0], [0]>} : vector<2x8x32xf32>, vector<2x32x16xf32>, vector<2x8x16xf32> -> vector<2x8x16xf32>
    "tpu.trace_stop"() : () -> ()
    %88 = vector.broadcast %28 : vector<2x1x16xf32> to vector<2x8x16xf32>
    %89 = arith.addf %87, %88 : vector<2x8x16xf32>
    %cst_38 = arith.constant 2.500000e-01 : f32
    %90 = vector.broadcast %cst_38 : f32 to vector<2x8x16xf32>
    %91 = arith.mulf %89, %90 : vector<2x8x16xf32>
    "tpu.trace_start"() <{level = 10 : i32, message = "hle,hed->hld"}> : () -> ()
    %cst_39 = arith.constant dense<0.000000e+00> : vector<4x16x16xf32>
    %92 = tpu.matmul %86, %7, %cst_39 {dimension_numbers = #tpu.dot_dimension_numbers<[2], [1], [1], [2], [0, 0, 0, 1, 1, 2], [0], [0]>} : vector<4x16x32xf32>, vector<4x32x16xf32>, vector<4x16x16xf32> -> vector<4x16x16xf32>
    "tpu.trace_stop"() : () -> ()
    %93 = vector.extract_strided_slice %92 {offsets = [0, 0, 0], sizes = [2, 16, 16], strides = [1, 1, 1]} : vector<4x16x16xf32> to vector<2x16x16xf32>
    %94 = vector.broadcast %29 : vector<2x1x16xf32> to vector<2x16x16xf32>
    %95 = arith.addf %93, %94 : vector<2x16x16xf32>
    %96 = vector.extract_strided_slice %92 {offsets = [2, 0, 0], sizes = [2, 16, 16], strides = [1, 1, 1]} : vector<4x16x16xf32> to vector<2x16x16xf32>
    %97 = vector.broadcast %30 : vector<2x1x16xf32> to vector<2x16x16xf32>
    %98 = arith.addf %96, %97 : vector<2x16x16xf32>
    "tpu.trace_start"() <{level = 10 : i32, message = "hqd,hkd->hqk"}> : () -> ()
    %cst_40 = arith.constant dense<0.000000e+00> : vector<2x8x16xf32>
    %99 = tpu.matmul %91, %95, %cst_40 {dimension_numbers = #tpu.dot_dimension_numbers<[2], [2], [1], [1], [0, 0, 0, 1, 1, 1], [0], [0]>} : vector<2x8x16xf32>, vector<2x16x16xf32>, vector<2x8x16xf32> -> vector<2x8x16xf32>
    "tpu.trace_stop"() : () -> ()
    %100 = vector.broadcast %31 : vector<2x1x16xf32> to vector<2x8x16xf32>
    %101 = arith.mulf %91, %100 : vector<2x8x16xf32>
    %cst_41 = arith.constant dense<0.000000e+00> : vector<2x8xf32>
    %102 = vector.multi_reduction <add>, %101, %cst_41 [2] : vector<2x8x16xf32> to vector<2x8xf32>
    %103 = vector.shape_cast %102 : vector<2x8xf32> to vector<2x8x1xf32>
    %cst_42 = arith.constant dense<0xFF800000> : vector<2x8xf32>
    %104 = vector.multi_reduction <maximumf>, %99, %cst_42 [2] : vector<2x8x16xf32> to vector<2x8xf32>
    %105 = vector.shape_cast %104 : vector<2x8xf32> to vector<2x8x1xf32>
    %106 = arith.maximumf %105, %103 : vector<2x8x1xf32>
    %107 = vector.broadcast %106 : vector<2x8x1xf32> to vector<2x8x16xf32>
    %108 = arith.subf %99, %107 : vector<2x8x16xf32>
    %109 = math.exp %108 : vector<2x8x16xf32>
    %110 = arith.subf %103, %106 : vector<2x8x1xf32>
    %111 = math.exp %110 : vector<2x8x1xf32>
    %cst_43 = arith.constant dense<0.000000e+00> : vector<2x8xf32>
    %112 = vector.multi_reduction <add>, %109, %cst_43 [2] : vector<2x8x16xf32> to vector<2x8xf32>
    %113 = vector.shape_cast %112 : vector<2x8xf32> to vector<2x8x1xf32>
    %114 = arith.addf %113, %111 : vector<2x8x1xf32>
    %115 = tpu.reciprocal %114 {approx = true} : vector<2x8x1xf32> -> vector<2x8x1xf32>
    "tpu.trace_start"() <{level = 10 : i32, message = "hqk,hkd->hqd"}> : () -> ()
    %cst_44 = arith.constant dense<0.000000e+00> : vector<2x8x16xf32>
    %116 = tpu.matmul %109, %98, %cst_44 {dimension_numbers = #tpu.dot_dimension_numbers<[2], [1], [1], [2], [0, 0, 0, 1, 1, 2], [0], [0]>} : vector<2x8x16xf32>, vector<2x16x16xf32>, vector<2x8x16xf32> -> vector<2x8x16xf32>
    "tpu.trace_stop"() : () -> ()
    %117 = vector.broadcast %111 : vector<2x8x1xf32> to vector<2x8x16xf32>
    %118 = vector.broadcast %32 : vector<2x1x16xf32> to vector<2x8x16xf32>
    %119 = arith.mulf %117, %118 : vector<2x8x16xf32>
    %120 = arith.addf %116, %119 : vector<2x8x16xf32>
    %121 = vector.broadcast %115 : vector<2x8x1xf32> to vector<2x8x16xf32>
    %122 = arith.mulf %120, %121 : vector<2x8x16xf32>
    "tpu.trace_start"() <{level = 10 : i32, message = "hqd,hde->hqe"}> : () -> ()
    %cst_45 = arith.constant dense<0.000000e+00> : vector<2x8x32xf32>
    %123 = tpu.matmul %122, %9, %cst_45 {dimension_numbers = #tpu.dot_dimension_numbers<[2], [1], [1], [2], [0, 0, 0, 1, 1, 2], [0], [0]>} : vector<2x8x16xf32>, vector<2x16x32xf32>, vector<2x8x32xf32> -> vector<2x8x32xf32>
    "tpu.trace_stop"() : () -> ()
    %cst_46 = arith.constant dense<0.000000e+00> : vector<8x32xf32>
    %124 = vector.multi_reduction <add>, %123, %cst_46 [0] : vector<2x8x32xf32> to vector<8x32xf32>
    %125 = vector.broadcast %24 : vector<1x32xf32> to vector<8x32xf32>
    %126 = arith.addf %124, %125 : vector<8x32xf32>
    %127 = arith.addf %126, %3 : vector<8x32xf32>
    %cst_47 = arith.constant dense<0.000000e+00> : vector<8xf32>
    %128 = vector.multi_reduction <add>, %127, %cst_47 [1] : vector<8x32xf32> to vector<8xf32>
    %129 = vector.shape_cast %128 : vector<8xf32> to vector<8x1xf32>
    %cst_48 = arith.constant 3.200000e+01 : f32
    %130 = vector.broadcast %cst_48 : f32 to vector<8x1xf32>
    %131 = arith.divf %129, %130 : vector<8x1xf32>
    %132 = vector.broadcast %131 : vector<8x1xf32> to vector<8x32xf32>
    %133 = arith.subf %127, %132 : vector<8x32xf32>
    %134 = vector.broadcast %131 : vector<8x1xf32> to vector<8x32xf32>
    %135 = arith.subf %127, %134 : vector<8x32xf32>
    %136 = arith.mulf %133, %135 : vector<8x32xf32>
    %cst_49 = arith.constant dense<0.000000e+00> : vector<8xf32>
    %137 = vector.multi_reduction <add>, %136, %cst_49 [1] : vector<8x32xf32> to vector<8xf32>
    %138 = vector.shape_cast %137 : vector<8xf32> to vector<8x1xf32>
    %cst_50 = arith.constant 3.200000e+01 : f32
    %139 = vector.broadcast %cst_50 : f32 to vector<8x1xf32>
    %140 = arith.divf %138, %139 : vector<8x1xf32>
    %141 = vector.broadcast %131 : vector<8x1xf32> to vector<8x32xf32>
    %142 = arith.subf %127, %141 : vector<8x32xf32>
    %cst_51 = arith.constant 9.99999974E-6 : f32
    %143 = vector.broadcast %cst_51 : f32 to vector<8x1xf32>
    %144 = arith.addf %140, %143 : vector<8x1xf32>
    %145 = math.rsqrt %144 : vector<8x1xf32>
    %146 = vector.broadcast %145 : vector<8x1xf32> to vector<8x32xf32>
    %147 = arith.mulf %142, %146 : vector<8x32xf32>
    %148 = vector.broadcast %20 : vector<1x32xf32> to vector<8x32xf32>
    %149 = arith.mulf %147, %148 : vector<8x32xf32>
    %150 = vector.broadcast %21 : vector<1x32xf32> to vector<8x32xf32>
    %151 = arith.addf %149, %150 : vector<8x32xf32>
    %152 = vector.extract_strided_slice %11 {offsets = [0, 0, 0], sizes = [1, 32, 32], strides = [1, 1, 1]} : vector<3x32x32xf32> to vector<1x32x32xf32>
    %153 = vector.shape_cast %152 : vector<1x32x32xf32> to vector<32x32xf32>
    %cst_52 = arith.constant dense<0.000000e+00> : vector<8x32xf32>
    %154 = tpu.matmul %151, %153, %cst_52 {dimension_numbers = #tpu.dot_dimension_numbers<[1], [0], [0], [1], [0, 0, 1, 1], [], []>} : vector<8x32xf32>, vector<32x32xf32>, vector<8x32xf32> -> vector<8x32xf32>
    %155 = vector.broadcast %25 : vector<1x32xf32> to vector<8x32xf32>
    %156 = arith.addf %154, %155 : vector<8x32xf32>
    %cst_53 = arith.constant 5.000000e-01 : f32
    %157 = vector.broadcast %cst_53 : f32 to vector<8x32xf32>
    %158 = arith.mulf %157, %156 : vector<8x32xf32>
    %cst_54 = arith.constant 0.707106769 : f32
    %159 = vector.broadcast %cst_54 : f32 to vector<8x32xf32>
    %160 = arith.mulf %156, %159 : vector<8x32xf32>
    %161 = math.absf %160 : vector<8x32xf32>
    %cst_55 = arith.constant 0.327591091 : f32
    %162 = vector.broadcast %cst_55 : f32 to vector<8x32xf32>
    %163 = arith.mulf %162, %161 : vector<8x32xf32>
    %cst_56 = arith.constant 1.000000e+00 : f32
    %164 = vector.broadcast %cst_56 : f32 to vector<8x32xf32>
    %165 = arith.addf %164, %163 : vector<8x32xf32>
    %cst_57 = arith.constant 1.000000e+00 : f32
    %166 = vector.broadcast %cst_57 : f32 to vector<8x32xf32>
    %167 = arith.divf %166, %165 : vector<8x32xf32>
    %cst_58 = arith.constant 1.06140542 : f32
    %168 = vector.broadcast %cst_58 : f32 to vector<8x32xf32>
    %169 = arith.mulf %168, %167 : vector<8x32xf32>
    %cst_59 = arith.constant -1.45315206 : f32
    %170 = vector.broadcast %cst_59 : f32 to vector<8x32xf32>
    %171 = arith.addf %169, %170 : vector<8x32xf32>
    %172 = arith.mulf %171, %167 : vector<8x32xf32>
    %cst_60 = arith.constant 1.42141378 : f32
    %173 = vector.broadcast %cst_60 : f32 to vector<8x32xf32>
    %174 = arith.addf %172, %173 : vector<8x32xf32>
    %175 = arith.mulf %174, %167 : vector<8x32xf32>
    %cst_61 = arith.constant -0.284496725 : f32
    %176 = vector.broadcast %cst_61 : f32 to vector<8x32xf32>
    %177 = arith.addf %175, %176 : vector<8x32xf32>
    %178 = arith.mulf %177, %167 : vector<8x32xf32>
    %cst_62 = arith.constant 0.254829586 : f32
    %179 = vector.broadcast %cst_62 : f32 to vector<8x32xf32>
    %180 = arith.addf %178, %179 : vector<8x32xf32>
    %181 = arith.mulf %180, %167 : vector<8x32xf32>
    %cst_63 = arith.constant 0.000000e+00 : f32
    %182 = vector.broadcast %cst_63 : f32 to vector<8x32xf32>
    %183 = arith.subf %182, %161 : vector<8x32xf32>
    %184 = arith.mulf %183, %161 : vector<8x32xf32>
    %185 = math.exp %184 : vector<8x32xf32>
    %186 = arith.mulf %181, %185 : vector<8x32xf32>
    %cst_64 = arith.constant 1.000000e+00 : f32
    %187 = vector.broadcast %cst_64 : f32 to vector<8x32xf32>
    %188 = arith.subf %187, %186 : vector<8x32xf32>
    %cst_65 = arith.constant 0.000000e+00 : f32
    %189 = vector.broadcast %cst_65 : f32 to vector<8x32xf32>
    %190 = arith.cmpf oge, %160, %189 : vector<8x32xf32>
    %cst_66 = arith.constant 0.000000e+00 : f32
    %191 = vector.broadcast %cst_66 : f32 to vector<8x32xf32>
    %192 = arith.subf %191, %188 : vector<8x32xf32>
    %193 = arith.select %190, %188, %192 : vector<8x32xi1>, vector<8x32xf32>
    %cst_67 = arith.constant 1.000000e+00 : f32
    %194 = vector.broadcast %cst_67 : f32 to vector<8x32xf32>
    %195 = arith.addf %194, %193 : vector<8x32xf32>
    %196 = arith.mulf %158, %195 : vector<8x32xf32>
    %cst_68 = arith.constant dense<0.000000e+00> : vector<8xf32>
    %197 = vector.multi_reduction <add>, %196, %cst_68 [1] : vector<8x32xf32> to vector<8xf32>
    %198 = vector.shape_cast %197 : vector<8xf32> to vector<8x1xf32>
    %cst_69 = arith.constant 3.200000e+01 : f32
    %199 = vector.broadcast %cst_69 : f32 to vector<8x1xf32>
    %200 = arith.divf %198, %199 : vector<8x1xf32>
    %201 = vector.broadcast %200 : vector<8x1xf32> to vector<8x32xf32>
    %202 = arith.subf %196, %201 : vector<8x32xf32>
    %203 = vector.broadcast %200 : vector<8x1xf32> to vector<8x32xf32>
    %204 = arith.subf %196, %203 : vector<8x32xf32>
    %205 = arith.mulf %202, %204 : vector<8x32xf32>
    %cst_70 = arith.constant dense<0.000000e+00> : vector<8xf32>
    %206 = vector.multi_reduction <add>, %205, %cst_70 [1] : vector<8x32xf32> to vector<8xf32>
    %207 = vector.shape_cast %206 : vector<8xf32> to vector<8x1xf32>
    %cst_71 = arith.constant 3.200000e+01 : f32
    %208 = vector.broadcast %cst_71 : f32 to vector<8x1xf32>
    %209 = arith.divf %207, %208 : vector<8x1xf32>
    %210 = vector.broadcast %200 : vector<8x1xf32> to vector<8x32xf32>
    %211 = arith.subf %196, %210 : vector<8x32xf32>
    %cst_72 = arith.constant 9.99999974E-6 : f32
    %212 = vector.broadcast %cst_72 : f32 to vector<8x1xf32>
    %213 = arith.addf %209, %212 : vector<8x1xf32>
    %214 = math.rsqrt %213 : vector<8x1xf32>
    %215 = vector.broadcast %214 : vector<8x1xf32> to vector<8x32xf32>
    %216 = arith.mulf %211, %215 : vector<8x32xf32>
    %217 = vector.broadcast %22 : vector<1x32xf32> to vector<8x32xf32>
    %218 = arith.mulf %216, %217 : vector<8x32xf32>
    %219 = vector.broadcast %23 : vector<1x32xf32> to vector<8x32xf32>
    %220 = arith.addf %218, %219 : vector<8x32xf32>
    %221 = vector.extract_strided_slice %11 {offsets = [1, 0, 0], sizes = [1, 32, 32], strides = [1, 1, 1]} : vector<3x32x32xf32> to vector<1x32x32xf32>
    %222 = vector.shape_cast %221 : vector<1x32x32xf32> to vector<32x32xf32>
    %cst_73 = arith.constant dense<0.000000e+00> : vector<8x32xf32>
    %223 = tpu.matmul %220, %222, %cst_73 {dimension_numbers = #tpu.dot_dimension_numbers<[1], [0], [0], [1], [0, 0, 1, 1], [], []>} : vector<8x32xf32>, vector<32x32xf32>, vector<8x32xf32> -> vector<8x32xf32>
    %224 = vector.broadcast %26 : vector<1x32xf32> to vector<8x32xf32>
    %225 = arith.addf %223, %224 : vector<8x32xf32>
    %cst_74 = arith.constant 5.000000e-01 : f32
    %226 = vector.broadcast %cst_74 : f32 to vector<8x32xf32>
    %227 = arith.mulf %226, %225 : vector<8x32xf32>
    %cst_75 = arith.constant 0.707106769 : f32
    %228 = vector.broadcast %cst_75 : f32 to vector<8x32xf32>
    %229 = arith.mulf %225, %228 : vector<8x32xf32>
    %230 = math.absf %229 : vector<8x32xf32>
    %cst_76 = arith.constant 0.327591091 : f32
    %231 = vector.broadcast %cst_76 : f32 to vector<8x32xf32>
    %232 = arith.mulf %231, %230 : vector<8x32xf32>
    %cst_77 = arith.constant 1.000000e+00 : f32
    %233 = vector.broadcast %cst_77 : f32 to vector<8x32xf32>
    %234 = arith.addf %233, %232 : vector<8x32xf32>
    %cst_78 = arith.constant 1.000000e+00 : f32
    %235 = vector.broadcast %cst_78 : f32 to vector<8x32xf32>
    %236 = arith.divf %235, %234 : vector<8x32xf32>
    %cst_79 = arith.constant 1.06140542 : f32
    %237 = vector.broadcast %cst_79 : f32 to vector<8x32xf32>
    %238 = arith.mulf %237, %236 : vector<8x32xf32>
    %cst_80 = arith.constant -1.45315206 : f32
    %239 = vector.broadcast %cst_80 : f32 to vector<8x32xf32>
    %240 = arith.addf %238, %239 : vector<8x32xf32>
    %241 = arith.mulf %240, %236 : vector<8x32xf32>
    %cst_81 = arith.constant 1.42141378 : f32
    %242 = vector.broadcast %cst_81 : f32 to vector<8x32xf32>
    %243 = arith.addf %241, %242 : vector<8x32xf32>
    %244 = arith.mulf %243, %236 : vector<8x32xf32>
    %cst_82 = arith.constant -0.284496725 : f32
    %245 = vector.broadcast %cst_82 : f32 to vector<8x32xf32>
    %246 = arith.addf %244, %245 : vector<8x32xf32>
    %247 = arith.mulf %246, %236 : vector<8x32xf32>
    %cst_83 = arith.constant 0.254829586 : f32
    %248 = vector.broadcast %cst_83 : f32 to vector<8x32xf32>
    %249 = arith.addf %247, %248 : vector<8x32xf32>
    %250 = arith.mulf %249, %236 : vector<8x32xf32>
    %cst_84 = arith.constant 0.000000e+00 : f32
    %251 = vector.broadcast %cst_84 : f32 to vector<8x32xf32>
    %252 = arith.subf %251, %230 : vector<8x32xf32>
    %253 = arith.mulf %252, %230 : vector<8x32xf32>
    %254 = math.exp %253 : vector<8x32xf32>
    %255 = arith.mulf %250, %254 : vector<8x32xf32>
    %cst_85 = arith.constant 1.000000e+00 : f32
    %256 = vector.broadcast %cst_85 : f32 to vector<8x32xf32>
    %257 = arith.subf %256, %255 : vector<8x32xf32>
    %cst_86 = arith.constant 0.000000e+00 : f32
    %258 = vector.broadcast %cst_86 : f32 to vector<8x32xf32>
    %259 = arith.cmpf oge, %229, %258 : vector<8x32xf32>
    %cst_87 = arith.constant 0.000000e+00 : f32
    %260 = vector.broadcast %cst_87 : f32 to vector<8x32xf32>
    %261 = arith.subf %260, %257 : vector<8x32xf32>
    %262 = arith.select %259, %257, %261 : vector<8x32xi1>, vector<8x32xf32>
    %cst_88 = arith.constant 1.000000e+00 : f32
    %263 = vector.broadcast %cst_88 : f32 to vector<8x32xf32>
    %264 = arith.addf %263, %262 : vector<8x32xf32>
    %265 = arith.mulf %227, %264 : vector<8x32xf32>
    %266 = vector.extract_strided_slice %11 {offsets = [2, 0, 0], sizes = [1, 32, 32], strides = [1, 1, 1]} : vector<3x32x32xf32> to vector<1x32x32xf32>
    %267 = vector.shape_cast %266 : vector<1x32x32xf32> to vector<32x32xf32>
    %cst_89 = arith.constant dense<0.000000e+00> : vector<8x32xf32>
    %268 = tpu.matmul %265, %267, %cst_89 {dimension_numbers = #tpu.dot_dimension_numbers<[1], [0], [0], [1], [0, 0, 1, 1], [], []>} : vector<8x32xf32>, vector<32x32xf32>, vector<8x32xf32> -> vector<8x32xf32>
    %269 = vector.broadcast %27 : vector<1x32xf32> to vector<8x32xf32>
    %270 = arith.addf %268, %269 : vector<8x32xf32>
    %271 = arith.addf %270, %127 : vector<8x32xf32>
    %c0_90 = arith.constant 0 : index
    %c0_91 = arith.constant 0 : index
    %c0_92 = arith.constant 0 : index
    %c0_93 = arith.constant 0 : index
    %272 = vector.load %arg9[%c0_90, %c0_91, %c0_92, %c0_93] : memref<2x4x32x8xf32, #tpu.memory_space<vmem>>, vector<1x4x32x8xf32>
    %273 = vector.shape_cast %272 : vector<1x4x32x8xf32> to vector<4x32x8xf32>
    %c0_94 = arith.constant 0 : index
    %c0_95 = arith.constant 0 : index
    %c0_96 = arith.constant 0 : index
    %c0_97 = arith.constant 0 : index
    %274 = vector.load %arg10[%c0_94, %c0_95, %c0_96, %c0_97] : memref<2x8x32x8xf32, #tpu.memory_space<vmem>>, vector<1x8x32x8xf32>
    %275 = vector.shape_cast %274 : vector<1x8x32x8xf32> to vector<8x32x8xf32>
    %c0_98 = arith.constant 0 : index
    %c0_99 = arith.constant 0 : index
    %c0_100 = arith.constant 0 : index
    %c0_101 = arith.constant 0 : index
    %276 = vector.load %arg11[%c0_98, %c0_99, %c0_100, %c0_101] : memref<2x4x8x32xf32, #tpu.memory_space<vmem>>, vector<1x4x8x32xf32>
    %277 = vector.shape_cast %276 : vector<1x4x8x32xf32> to vector<4x8x32xf32>
    %c0_102 = arith.constant 0 : index
    %c0_103 = arith.constant 0 : index
    %c0_104 = arith.constant 0 : index
    %c0_105 = arith.constant 0 : index
    %278 = vector.load %arg12[%c0_102, %c0_103, %c0_104, %c0_105] : memref<2x3x32x32xf32, #tpu.memory_space<vmem>>, vector<1x3x32x32xf32>
    %279 = vector.shape_cast %278 : vector<1x3x32x32xf32> to vector<3x32x32xf32>
    %c0_106 = arith.constant 0 : index
    %c0_107 = arith.constant 0 : index
    %c0_108 = arith.constant 0 : index
    %280 = vector.load %arg13[%c0_106, %c0_107, %c0_108] : memref<2x16x32xf32, #tpu.memory_space<vmem>>, vector<1x16x32xf32>
    %281 = vector.shape_cast %280 : vector<1x16x32xf32> to vector<16x32xf32>
    %c0_109 = arith.constant 0 : index
    %c0_110 = arith.constant 0 : index
    %c0_111 = arith.constant 0 : index
    %c0_112 = arith.constant 0 : index
    %282 = vector.load %arg14[%c0_109, %c0_110, %c0_111, %c0_112] : memref<2x20x1x8xf32, #tpu.memory_space<vmem>>, vector<1x20x1x8xf32>
    %283 = vector.shape_cast %282 : vector<1x20x1x8xf32> to vector<20x1x8xf32>
    %284 = vector.extract_strided_slice %281 {offsets = [0, 0], sizes = [1, 32], strides = [1, 1]} : vector<16x32xf32> to vector<1x32xf32>
    %285 = vector.extract_strided_slice %281 {offsets = [1, 0], sizes = [1, 32], strides = [1, 1]} : vector<16x32xf32> to vector<1x32xf32>
    %286 = vector.extract_strided_slice %281 {offsets = [2, 0], sizes = [1, 32], strides = [1, 1]} : vector<16x32xf32> to vector<1x32xf32>
    %287 = vector.extract_strided_slice %281 {offsets = [3, 0], sizes = [1, 32], strides = [1, 1]} : vector<16x32xf32> to vector<1x32xf32>
    %288 = vector.extract_strided_slice %281 {offsets = [4, 0], sizes = [1, 32], strides = [1, 1]} : vector<16x32xf32> to vector<1x32xf32>
    %289 = vector.extract_strided_slice %281 {offsets = [5, 0], sizes = [1, 32], strides = [1, 1]} : vector<16x32xf32> to vector<1x32xf32>
    %290 = vector.extract_strided_slice %281 {offsets = [6, 0], sizes = [1, 32], strides = [1, 1]} : vector<16x32xf32> to vector<1x32xf32>
    %291 = vector.extract_strided_slice %281 {offsets = [7, 0], sizes = [1, 32], strides = [1, 1]} : vector<16x32xf32> to vector<1x32xf32>
    %292 = vector.extract_strided_slice %281 {offsets = [8, 0], sizes = [1, 32], strides = [1, 1]} : vector<16x32xf32> to vector<1x32xf32>
    %293 = vector.extract_strided_slice %281 {offsets = [9, 0], sizes = [1, 32], strides = [1, 1]} : vector<16x32xf32> to vector<1x32xf32>
    %294 = vector.extract_strided_slice %281 {offsets = [10, 0], sizes = [1, 32], strides = [1, 1]} : vector<16x32xf32> to vector<1x32xf32>
    %295 = vector.extract_strided_slice %281 {offsets = [11, 0], sizes = [1, 32], strides = [1, 1]} : vector<16x32xf32> to vector<1x32xf32>
    %296 = vector.extract_strided_slice %283 {offsets = [0, 0, 0], sizes = [4, 1, 8], strides = [1, 1, 1]} : vector<20x1x8xf32> to vector<4x1x8xf32>
    %297 = vector.extract_strided_slice %283 {offsets = [4, 0, 0], sizes = [4, 1, 8], strides = [1, 1, 1]} : vector<20x1x8xf32> to vector<4x1x8xf32>
    %298 = vector.extract_strided_slice %283 {offsets = [8, 0, 0], sizes = [4, 1, 8], strides = [1, 1, 1]} : vector<20x1x8xf32> to vector<4x1x8xf32>
    %299 = vector.extract_strided_slice %283 {offsets = [12, 0, 0], sizes = [4, 1, 8], strides = [1, 1, 1]} : vector<20x1x8xf32> to vector<4x1x8xf32>
    %300 = vector.extract_strided_slice %283 {offsets = [16, 0, 0], sizes = [4, 1, 8], strides = [1, 1, 1]} : vector<20x1x8xf32> to vector<4x1x8xf32>
    %cst_113 = arith.constant dense<0.000000e+00> : vector<8xf32>
    %301 = vector.multi_reduction <add>, %271, %cst_113 [1] : vector<8x32xf32> to vector<8xf32>
    %302 = vector.shape_cast %301 : vector<8xf32> to vector<8x1xf32>
    %cst_114 = arith.constant 3.200000e+01 : f32
    %303 = vector.broadcast %cst_114 : f32 to vector<8x1xf32>
    %304 = arith.divf %302, %303 : vector<8x1xf32>
    %305 = vector.broadcast %304 : vector<8x1xf32> to vector<8x32xf32>
    %306 = arith.subf %271, %305 : vector<8x32xf32>
    %307 = vector.broadcast %304 : vector<8x1xf32> to vector<8x32xf32>
    %308 = arith.subf %271, %307 : vector<8x32xf32>
    %309 = arith.mulf %306, %308 : vector<8x32xf32>
    %cst_115 = arith.constant dense<0.000000e+00> : vector<8xf32>
    %310 = vector.multi_reduction <add>, %309, %cst_115 [1] : vector<8x32xf32> to vector<8xf32>
    %311 = vector.shape_cast %310 : vector<8xf32> to vector<8x1xf32>
    %cst_116 = arith.constant 3.200000e+01 : f32
    %312 = vector.broadcast %cst_116 : f32 to vector<8x1xf32>
    %313 = arith.divf %311, %312 : vector<8x1xf32>
    %314 = vector.broadcast %304 : vector<8x1xf32> to vector<8x32xf32>
    %315 = arith.subf %271, %314 : vector<8x32xf32>
    %cst_117 = arith.constant 9.99999974E-6 : f32
    %316 = vector.broadcast %cst_117 : f32 to vector<8x1xf32>
    %317 = arith.addf %313, %316 : vector<8x1xf32>
    %318 = math.rsqrt %317 : vector<8x1xf32>
    %319 = vector.broadcast %318 : vector<8x1xf32> to vector<8x32xf32>
    %320 = arith.mulf %315, %319 : vector<8x32xf32>
    %321 = vector.broadcast %284 : vector<1x32xf32> to vector<8x32xf32>
    %322 = arith.mulf %320, %321 : vector<8x32xf32>
    %323 = vector.broadcast %285 : vector<1x32xf32> to vector<8x32xf32>
    %324 = arith.addf %322, %323 : vector<8x32xf32>
    %cst_118 = arith.constant dense<0.000000e+00> : vector<8xf32>
    %325 = vector.multi_reduction <add>, %271, %cst_118 [1] : vector<8x32xf32> to vector<8xf32>
    %326 = vector.shape_cast %325 : vector<8xf32> to vector<8x1xf32>
    %cst_119 = arith.constant 3.200000e+01 : f32
    %327 = vector.broadcast %cst_119 : f32 to vector<8x1xf32>
    %328 = arith.divf %326, %327 : vector<8x1xf32>
    %329 = vector.broadcast %328 : vector<8x1xf32> to vector<8x32xf32>
    %330 = arith.subf %271, %329 : vector<8x32xf32>
    %331 = vector.broadcast %328 : vector<8x1xf32> to vector<8x32xf32>
    %332 = arith.subf %271, %331 : vector<8x32xf32>
    %333 = arith.mulf %330, %332 : vector<8x32xf32>
    %cst_120 = arith.constant dense<0.000000e+00> : vector<8xf32>
    %334 = vector.multi_reduction <add>, %333, %cst_120 [1] : vector<8x32xf32> to vector<8xf32>
    %335 = vector.shape_cast %334 : vector<8xf32> to vector<8x1xf32>
    %cst_121 = arith.constant 3.200000e+01 : f32
    %336 = vector.broadcast %cst_121 : f32 to vector<8x1xf32>
    %337 = arith.divf %335, %336 : vector<8x1xf32>
    %338 = vector.broadcast %328 : vector<8x1xf32> to vector<8x32xf32>
    %339 = arith.subf %271, %338 : vector<8x32xf32>
    %cst_122 = arith.constant 9.99999974E-6 : f32
    %340 = vector.broadcast %cst_122 : f32 to vector<8x1xf32>
    %341 = arith.addf %337, %340 : vector<8x1xf32>
    %342 = math.rsqrt %341 : vector<8x1xf32>
    %343 = vector.broadcast %342 : vector<8x1xf32> to vector<8x32xf32>
    %344 = arith.mulf %339, %343 : vector<8x32xf32>
    %345 = vector.broadcast %286 : vector<1x32xf32> to vector<8x32xf32>
    %346 = arith.mulf %344, %345 : vector<8x32xf32>
    %347 = vector.broadcast %287 : vector<1x32xf32> to vector<8x32xf32>
    %348 = arith.addf %346, %347 : vector<8x32xf32>
    %349 = vector.shape_cast %348 : vector<8x32xf32> to vector<1x8x32xf32>
    %350 = vector.shape_cast %349 : vector<1x8x32xf32> to vector<1x8x32xf32>
    %351 = vector.broadcast %350 : vector<1x8x32xf32> to vector<4x8x32xf32>
    %352 = vector.shape_cast %324 : vector<8x32xf32> to vector<1x8x32xf32>
    %353 = vector.shape_cast %352 : vector<1x8x32xf32> to vector<1x8x32xf32>
    %354 = vector.broadcast %353 : vector<1x8x32xf32> to vector<8x8x32xf32>
    "tpu.trace_start"() <{level = 10 : i32, message = "hle,hed->hld"}> : () -> ()
    %cst_123 = arith.constant dense<0.000000e+00> : vector<4x8x8xf32>
    %355 = tpu.matmul %351, %273, %cst_123 {dimension_numbers = #tpu.dot_dimension_numbers<[2], [1], [1], [2], [0, 0, 0, 1, 1, 2], [0], [0]>} : vector<4x8x32xf32>, vector<4x32x8xf32>, vector<4x8x8xf32> -> vector<4x8x8xf32>
    "tpu.trace_stop"() : () -> ()
    %356 = vector.broadcast %296 : vector<4x1x8xf32> to vector<4x8x8xf32>
    %357 = arith.addf %355, %356 : vector<4x8x8xf32>
    %cst_124 = arith.constant 0.353553385 : f32
    %358 = vector.broadcast %cst_124 : f32 to vector<4x8x8xf32>
    %359 = arith.mulf %357, %358 : vector<4x8x8xf32>
    "tpu.trace_start"() <{level = 10 : i32, message = "hle,hed->hld"}> : () -> ()
    %cst_125 = arith.constant dense<0.000000e+00> : vector<8x8x8xf32>
    %360 = tpu.matmul %354, %275, %cst_125 {dimension_numbers = #tpu.dot_dimension_numbers<[2], [1], [1], [2], [0, 0, 0, 1, 1, 2], [0], [0]>} : vector<8x8x32xf32>, vector<8x32x8xf32>, vector<8x8x8xf32> -> vector<8x8x8xf32>
    "tpu.trace_stop"() : () -> ()
    %361 = vector.extract_strided_slice %360 {offsets = [0, 0, 0], sizes = [4, 8, 8], strides = [1, 1, 1]} : vector<8x8x8xf32> to vector<4x8x8xf32>
    %362 = vector.broadcast %297 : vector<4x1x8xf32> to vector<4x8x8xf32>
    %363 = arith.addf %361, %362 : vector<4x8x8xf32>
    %364 = vector.extract_strided_slice %360 {offsets = [4, 0, 0], sizes = [4, 8, 8], strides = [1, 1, 1]} : vector<8x8x8xf32> to vector<4x8x8xf32>
    %365 = vector.broadcast %298 : vector<4x1x8xf32> to vector<4x8x8xf32>
    %366 = arith.addf %364, %365 : vector<4x8x8xf32>
    "tpu.trace_start"() <{level = 10 : i32, message = "hqd,hkd->hqk"}> : () -> ()
    %cst_126 = arith.constant dense<0.000000e+00> : vector<4x8x8xf32>
    %367 = tpu.matmul %359, %363, %cst_126 {dimension_numbers = #tpu.dot_dimension_numbers<[2], [2], [1], [1], [0, 0, 0, 1, 1, 1], [0], [0]>} : vector<4x8x8xf32>, vector<4x8x8xf32>, vector<4x8x8xf32> -> vector<4x8x8xf32>
    "tpu.trace_stop"() : () -> ()
    %368 = vector.broadcast %299 : vector<4x1x8xf32> to vector<4x8x8xf32>
    %369 = arith.mulf %359, %368 : vector<4x8x8xf32>
    %cst_127 = arith.constant dense<0.000000e+00> : vector<4x8xf32>
    %370 = vector.multi_reduction <add>, %369, %cst_127 [2] : vector<4x8x8xf32> to vector<4x8xf32>
    %371 = vector.shape_cast %370 : vector<4x8xf32> to vector<4x8x1xf32>
    %cst_128 = arith.constant dense<0xFF800000> : vector<4x8xf32>
    %372 = vector.multi_reduction <maximumf>, %367, %cst_128 [2] : vector<4x8x8xf32> to vector<4x8xf32>
    %373 = vector.shape_cast %372 : vector<4x8xf32> to vector<4x8x1xf32>
    %374 = arith.maximumf %373, %371 : vector<4x8x1xf32>
    %375 = vector.broadcast %374 : vector<4x8x1xf32> to vector<4x8x8xf32>
    %376 = arith.subf %367, %375 : vector<4x8x8xf32>
    %377 = math.exp %376 : vector<4x8x8xf32>
    %378 = arith.subf %371, %374 : vector<4x8x1xf32>
    %379 = math.exp %378 : vector<4x8x1xf32>
    %cst_129 = arith.constant dense<0.000000e+00> : vector<4x8xf32>
    %380 = vector.multi_reduction <add>, %377, %cst_129 [2] : vector<4x8x8xf32> to vector<4x8xf32>
    %381 = vector.shape_cast %380 : vector<4x8xf32> to vector<4x8x1xf32>
    %382 = arith.addf %381, %379 : vector<4x8x1xf32>
    %383 = tpu.reciprocal %382 {approx = true} : vector<4x8x1xf32> -> vector<4x8x1xf32>
    "tpu.trace_start"() <{level = 10 : i32, message = "hqk,hkd->hqd"}> : () -> ()
    %cst_130 = arith.constant dense<0.000000e+00> : vector<4x8x8xf32>
    %384 = tpu.matmul %377, %366, %cst_130 {dimension_numbers = #tpu.dot_dimension_numbers<[2], [1], [1], [2], [0, 0, 0, 1, 1, 2], [0], [0]>} : vector<4x8x8xf32>, vector<4x8x8xf32>, vector<4x8x8xf32> -> vector<4x8x8xf32>
    "tpu.trace_stop"() : () -> ()
    %385 = vector.broadcast %379 : vector<4x8x1xf32> to vector<4x8x8xf32>
    %386 = vector.broadcast %300 : vector<4x1x8xf32> to vector<4x8x8xf32>
    %387 = arith.mulf %385, %386 : vector<4x8x8xf32>
    %388 = arith.addf %384, %387 : vector<4x8x8xf32>
    %389 = vector.broadcast %383 : vector<4x8x1xf32> to vector<4x8x8xf32>
    %390 = arith.mulf %388, %389 : vector<4x8x8xf32>
    "tpu.trace_start"() <{level = 10 : i32, message = "hqd,hde->hqe"}> : () -> ()
    %cst_131 = arith.constant dense<0.000000e+00> : vector<4x8x32xf32>
    %391 = tpu.matmul %390, %277, %cst_131 {dimension_numbers = #tpu.dot_dimension_numbers<[2], [1], [1], [2], [0, 0, 0, 1, 1, 2], [0], [0]>} : vector<4x8x8xf32>, vector<4x8x32xf32>, vector<4x8x32xf32> -> vector<4x8x32xf32>
    "tpu.trace_stop"() : () -> ()
    %cst_132 = arith.constant dense<0.000000e+00> : vector<8x32xf32>
    %392 = vector.multi_reduction <add>, %391, %cst_132 [0] : vector<4x8x32xf32> to vector<8x32xf32>
    %393 = vector.broadcast %292 : vector<1x32xf32> to vector<8x32xf32>
    %394 = arith.addf %392, %393 : vector<8x32xf32>
    %395 = arith.addf %394, %271 : vector<8x32xf32>
    %cst_133 = arith.constant dense<0.000000e+00> : vector<8xf32>
    %396 = vector.multi_reduction <add>, %395, %cst_133 [1] : vector<8x32xf32> to vector<8xf32>
    %397 = vector.shape_cast %396 : vector<8xf32> to vector<8x1xf32>
    %cst_134 = arith.constant 3.200000e+01 : f32
    %398 = vector.broadcast %cst_134 : f32 to vector<8x1xf32>
    %399 = arith.divf %397, %398 : vector<8x1xf32>
    %400 = vector.broadcast %399 : vector<8x1xf32> to vector<8x32xf32>
    %401 = arith.subf %395, %400 : vector<8x32xf32>
    %402 = vector.broadcast %399 : vector<8x1xf32> to vector<8x32xf32>
    %403 = arith.subf %395, %402 : vector<8x32xf32>
    %404 = arith.mulf %401, %403 : vector<8x32xf32>
    %cst_135 = arith.constant dense<0.000000e+00> : vector<8xf32>
    %405 = vector.multi_reduction <add>, %404, %cst_135 [1] : vector<8x32xf32> to vector<8xf32>
    %406 = vector.shape_cast %405 : vector<8xf32> to vector<8x1xf32>
    %cst_136 = arith.constant 3.200000e+01 : f32
    %407 = vector.broadcast %cst_136 : f32 to vector<8x1xf32>
    %408 = arith.divf %406, %407 : vector<8x1xf32>
    %409 = vector.broadcast %399 : vector<8x1xf32> to vector<8x32xf32>
    %410 = arith.subf %395, %409 : vector<8x32xf32>
    %cst_137 = arith.constant 9.99999974E-6 : f32
    %411 = vector.broadcast %cst_137 : f32 to vector<8x1xf32>
    %412 = arith.addf %408, %411 : vector<8x1xf32>
    %413 = math.rsqrt %412 : vector<8x1xf32>
    %414 = vector.broadcast %413 : vector<8x1xf32> to vector<8x32xf32>
    %415 = arith.mulf %410, %414 : vector<8x32xf32>
    %416 = vector.broadcast %288 : vector<1x32xf32> to vector<8x32xf32>
    %417 = arith.mulf %415, %416 : vector<8x32xf32>
    %418 = vector.broadcast %289 : vector<1x32xf32> to vector<8x32xf32>
    %419 = arith.addf %417, %418 : vector<8x32xf32>
    %420 = vector.extract_strided_slice %279 {offsets = [0, 0, 0], sizes = [1, 32, 32], strides = [1, 1, 1]} : vector<3x32x32xf32> to vector<1x32x32xf32>
    %421 = vector.shape_cast %420 : vector<1x32x32xf32> to vector<32x32xf32>
    %cst_138 = arith.constant dense<0.000000e+00> : vector<8x32xf32>
    %422 = tpu.matmul %419, %421, %cst_138 {dimension_numbers = #tpu.dot_dimension_numbers<[1], [0], [0], [1], [0, 0, 1, 1], [], []>} : vector<8x32xf32>, vector<32x32xf32>, vector<8x32xf32> -> vector<8x32xf32>
    %423 = vector.broadcast %293 : vector<1x32xf32> to vector<8x32xf32>
    %424 = arith.addf %422, %423 : vector<8x32xf32>
    %cst_139 = arith.constant 5.000000e-01 : f32
    %425 = vector.broadcast %cst_139 : f32 to vector<8x32xf32>
    %426 = arith.mulf %425, %424 : vector<8x32xf32>
    %cst_140 = arith.constant 0.707106769 : f32
    %427 = vector.broadcast %cst_140 : f32 to vector<8x32xf32>
    %428 = arith.mulf %424, %427 : vector<8x32xf32>
    %429 = math.absf %428 : vector<8x32xf32>
    %cst_141 = arith.constant 0.327591091 : f32
    %430 = vector.broadcast %cst_141 : f32 to vector<8x32xf32>
    %431 = arith.mulf %430, %429 : vector<8x32xf32>
    %cst_142 = arith.constant 1.000000e+00 : f32
    %432 = vector.broadcast %cst_142 : f32 to vector<8x32xf32>
    %433 = arith.addf %432, %431 : vector<8x32xf32>
    %cst_143 = arith.constant 1.000000e+00 : f32
    %434 = vector.broadcast %cst_143 : f32 to vector<8x32xf32>
    %435 = arith.divf %434, %433 : vector<8x32xf32>
    %cst_144 = arith.constant 1.06140542 : f32
    %436 = vector.broadcast %cst_144 : f32 to vector<8x32xf32>
    %437 = arith.mulf %436, %435 : vector<8x32xf32>
    %cst_145 = arith.constant -1.45315206 : f32
    %438 = vector.broadcast %cst_145 : f32 to vector<8x32xf32>
    %439 = arith.addf %437, %438 : vector<8x32xf32>
    %440 = arith.mulf %439, %435 : vector<8x32xf32>
    %cst_146 = arith.constant 1.42141378 : f32
    %441 = vector.broadcast %cst_146 : f32 to vector<8x32xf32>
    %442 = arith.addf %440, %441 : vector<8x32xf32>
    %443 = arith.mulf %442, %435 : vector<8x32xf32>
    %cst_147 = arith.constant -0.284496725 : f32
    %444 = vector.broadcast %cst_147 : f32 to vector<8x32xf32>
    %445 = arith.addf %443, %444 : vector<8x32xf32>
    %446 = arith.mulf %445, %435 : vector<8x32xf32>
    %cst_148 = arith.constant 0.254829586 : f32
    %447 = vector.broadcast %cst_148 : f32 to vector<8x32xf32>
    %448 = arith.addf %446, %447 : vector<8x32xf32>
    %449 = arith.mulf %448, %435 : vector<8x32xf32>
    %cst_149 = arith.constant 0.000000e+00 : f32
    %450 = vector.broadcast %cst_149 : f32 to vector<8x32xf32>
    %451 = arith.subf %450, %429 : vector<8x32xf32>
    %452 = arith.mulf %451, %429 : vector<8x32xf32>
    %453 = math.exp %452 : vector<8x32xf32>
    %454 = arith.mulf %449, %453 : vector<8x32xf32>
    %cst_150 = arith.constant 1.000000e+00 : f32
    %455 = vector.broadcast %cst_150 : f32 to vector<8x32xf32>
    %456 = arith.subf %455, %454 : vector<8x32xf32>
    %cst_151 = arith.constant 0.000000e+00 : f32
    %457 = vector.broadcast %cst_151 : f32 to vector<8x32xf32>
    %458 = arith.cmpf oge, %428, %457 : vector<8x32xf32>
    %cst_152 = arith.constant 0.000000e+00 : f32
    %459 = vector.broadcast %cst_152 : f32 to vector<8x32xf32>
    %460 = arith.subf %459, %456 : vector<8x32xf32>
    %461 = arith.select %458, %456, %460 : vector<8x32xi1>, vector<8x32xf32>
    %cst_153 = arith.constant 1.000000e+00 : f32
    %462 = vector.broadcast %cst_153 : f32 to vector<8x32xf32>
    %463 = arith.addf %462, %461 : vector<8x32xf32>
    %464 = arith.mulf %426, %463 : vector<8x32xf32>
    %cst_154 = arith.constant dense<0.000000e+00> : vector<8xf32>
    %465 = vector.multi_reduction <add>, %464, %cst_154 [1] : vector<8x32xf32> to vector<8xf32>
    %466 = vector.shape_cast %465 : vector<8xf32> to vector<8x1xf32>
    %cst_155 = arith.constant 3.200000e+01 : f32
    %467 = vector.broadcast %cst_155 : f32 to vector<8x1xf32>
    %468 = arith.divf %466, %467 : vector<8x1xf32>
    %469 = vector.broadcast %468 : vector<8x1xf32> to vector<8x32xf32>
    %470 = arith.subf %464, %469 : vector<8x32xf32>
    %471 = vector.broadcast %468 : vector<8x1xf32> to vector<8x32xf32>
    %472 = arith.subf %464, %471 : vector<8x32xf32>
    %473 = arith.mulf %470, %472 : vector<8x32xf32>
    %cst_156 = arith.constant dense<0.000000e+00> : vector<8xf32>
    %474 = vector.multi_reduction <add>, %473, %cst_156 [1] : vector<8x32xf32> to vector<8xf32>
    %475 = vector.shape_cast %474 : vector<8xf32> to vector<8x1xf32>
    %cst_157 = arith.constant 3.200000e+01 : f32
    %476 = vector.broadcast %cst_157 : f32 to vector<8x1xf32>
    %477 = arith.divf %475, %476 : vector<8x1xf32>
    %478 = vector.broadcast %468 : vector<8x1xf32> to vector<8x32xf32>
    %479 = arith.subf %464, %478 : vector<8x32xf32>
    %cst_158 = arith.constant 9.99999974E-6 : f32
    %480 = vector.broadcast %cst_158 : f32 to vector<8x1xf32>
    %481 = arith.addf %477, %480 : vector<8x1xf32>
    %482 = math.rsqrt %481 : vector<8x1xf32>
    %483 = vector.broadcast %482 : vector<8x1xf32> to vector<8x32xf32>
    %484 = arith.mulf %479, %483 : vector<8x32xf32>
    %485 = vector.broadcast %290 : vector<1x32xf32> to vector<8x32xf32>
    %486 = arith.mulf %484, %485 : vector<8x32xf32>
    %487 = vector.broadcast %291 : vector<1x32xf32> to vector<8x32xf32>
    %488 = arith.addf %486, %487 : vector<8x32xf32>
    %489 = vector.extract_strided_slice %279 {offsets = [1, 0, 0], sizes = [1, 32, 32], strides = [1, 1, 1]} : vector<3x32x32xf32> to vector<1x32x32xf32>
    %490 = vector.shape_cast %489 : vector<1x32x32xf32> to vector<32x32xf32>
    %cst_159 = arith.constant dense<0.000000e+00> : vector<8x32xf32>
    %491 = tpu.matmul %488, %490, %cst_159 {dimension_numbers = #tpu.dot_dimension_numbers<[1], [0], [0], [1], [0, 0, 1, 1], [], []>} : vector<8x32xf32>, vector<32x32xf32>, vector<8x32xf32> -> vector<8x32xf32>
    %492 = vector.broadcast %294 : vector<1x32xf32> to vector<8x32xf32>
    %493 = arith.addf %491, %492 : vector<8x32xf32>
    %cst_160 = arith.constant 5.000000e-01 : f32
    %494 = vector.broadcast %cst_160 : f32 to vector<8x32xf32>
    %495 = arith.mulf %494, %493 : vector<8x32xf32>
    %cst_161 = arith.constant 0.707106769 : f32
    %496 = vector.broadcast %cst_161 : f32 to vector<8x32xf32>
    %497 = arith.mulf %493, %496 : vector<8x32xf32>
    %498 = math.absf %497 : vector<8x32xf32>
    %cst_162 = arith.constant 0.327591091 : f32
    %499 = vector.broadcast %cst_162 : f32 to vector<8x32xf32>
    %500 = arith.mulf %499, %498 : vector<8x32xf32>
    %cst_163 = arith.constant 1.000000e+00 : f32
    %501 = vector.broadcast %cst_163 : f32 to vector<8x32xf32>
    %502 = arith.addf %501, %500 : vector<8x32xf32>
    %cst_164 = arith.constant 1.000000e+00 : f32
    %503 = vector.broadcast %cst_164 : f32 to vector<8x32xf32>
    %504 = arith.divf %503, %502 : vector<8x32xf32>
    %cst_165 = arith.constant 1.06140542 : f32
    %505 = vector.broadcast %cst_165 : f32 to vector<8x32xf32>
    %506 = arith.mulf %505, %504 : vector<8x32xf32>
    %cst_166 = arith.constant -1.45315206 : f32
    %507 = vector.broadcast %cst_166 : f32 to vector<8x32xf32>
    %508 = arith.addf %506, %507 : vector<8x32xf32>
    %509 = arith.mulf %508, %504 : vector<8x32xf32>
    %cst_167 = arith.constant 1.42141378 : f32
    %510 = vector.broadcast %cst_167 : f32 to vector<8x32xf32>
    %511 = arith.addf %509, %510 : vector<8x32xf32>
    %512 = arith.mulf %511, %504 : vector<8x32xf32>
    %cst_168 = arith.constant -0.284496725 : f32
    %513 = vector.broadcast %cst_168 : f32 to vector<8x32xf32>
    %514 = arith.addf %512, %513 : vector<8x32xf32>
    %515 = arith.mulf %514, %504 : vector<8x32xf32>
    %cst_169 = arith.constant 0.254829586 : f32
    %516 = vector.broadcast %cst_169 : f32 to vector<8x32xf32>
    %517 = arith.addf %515, %516 : vector<8x32xf32>
    %518 = arith.mulf %517, %504 : vector<8x32xf32>
    %cst_170 = arith.constant 0.000000e+00 : f32
    %519 = vector.broadcast %cst_170 : f32 to vector<8x32xf32>
    %520 = arith.subf %519, %498 : vector<8x32xf32>
    %521 = arith.mulf %520, %498 : vector<8x32xf32>
    %522 = math.exp %521 : vector<8x32xf32>
    %523 = arith.mulf %518, %522 : vector<8x32xf32>
    %cst_171 = arith.constant 1.000000e+00 : f32
    %524 = vector.broadcast %cst_171 : f32 to vector<8x32xf32>
    %525 = arith.subf %524, %523 : vector<8x32xf32>
    %cst_172 = arith.constant 0.000000e+00 : f32
    %526 = vector.broadcast %cst_172 : f32 to vector<8x32xf32>
    %527 = arith.cmpf oge, %497, %526 : vector<8x32xf32>
    %cst_173 = arith.constant 0.000000e+00 : f32
    %528 = vector.broadcast %cst_173 : f32 to vector<8x32xf32>
    %529 = arith.subf %528, %525 : vector<8x32xf32>
    %530 = arith.select %527, %525, %529 : vector<8x32xi1>, vector<8x32xf32>
    %cst_174 = arith.constant 1.000000e+00 : f32
    %531 = vector.broadcast %cst_174 : f32 to vector<8x32xf32>
    %532 = arith.addf %531, %530 : vector<8x32xf32>
    %533 = arith.mulf %495, %532 : vector<8x32xf32>
    %534 = vector.extract_strided_slice %279 {offsets = [2, 0, 0], sizes = [1, 32, 32], strides = [1, 1, 1]} : vector<3x32x32xf32> to vector<1x32x32xf32>
    %535 = vector.shape_cast %534 : vector<1x32x32xf32> to vector<32x32xf32>
    %cst_175 = arith.constant dense<0.000000e+00> : vector<8x32xf32>
    %536 = tpu.matmul %533, %535, %cst_175 {dimension_numbers = #tpu.dot_dimension_numbers<[1], [0], [0], [1], [0, 0, 1, 1], [], []>} : vector<8x32xf32>, vector<32x32xf32>, vector<8x32xf32> -> vector<8x32xf32>
    %537 = vector.broadcast %295 : vector<1x32xf32> to vector<8x32xf32>
    %538 = arith.addf %536, %537 : vector<8x32xf32>
    %539 = arith.addf %538, %395 : vector<8x32xf32>
    %c1 = arith.constant 1 : index
    %c0_176 = arith.constant 0 : index
    %c0_177 = arith.constant 0 : index
    %c0_178 = arith.constant 0 : index
    %540 = vector.load %arg9[%c1, %c0_176, %c0_177, %c0_178] : memref<2x4x32x8xf32, #tpu.memory_space<vmem>>, vector<1x4x32x8xf32>
    %541 = vector.shape_cast %540 : vector<1x4x32x8xf32> to vector<4x32x8xf32>
    %c1_179 = arith.constant 1 : index
    %c0_180 = arith.constant 0 : index
    %c0_181 = arith.constant 0 : index
    %c0_182 = arith.constant 0 : index
    %542 = vector.load %arg10[%c1_179, %c0_180, %c0_181, %c0_182] : memref<2x8x32x8xf32, #tpu.memory_space<vmem>>, vector<1x8x32x8xf32>
    %543 = vector.shape_cast %542 : vector<1x8x32x8xf32> to vector<8x32x8xf32>
    %c1_183 = arith.constant 1 : index
    %c0_184 = arith.constant 0 : index
    %c0_185 = arith.constant 0 : index
    %c0_186 = arith.constant 0 : index
    %544 = vector.load %arg11[%c1_183, %c0_184, %c0_185, %c0_186] : memref<2x4x8x32xf32, #tpu.memory_space<vmem>>, vector<1x4x8x32xf32>
    %545 = vector.shape_cast %544 : vector<1x4x8x32xf32> to vector<4x8x32xf32>
    %c1_187 = arith.constant 1 : index
    %c0_188 = arith.constant 0 : index
    %c0_189 = arith.constant 0 : index
    %c0_190 = arith.constant 0 : index
    %546 = vector.load %arg12[%c1_187, %c0_188, %c0_189, %c0_190] : memref<2x3x32x32xf32, #tpu.memory_space<vmem>>, vector<1x3x32x32xf32>
    %547 = vector.shape_cast %546 : vector<1x3x32x32xf32> to vector<3x32x32xf32>
    %c1_191 = arith.constant 1 : index
    %c0_192 = arith.constant 0 : index
    %c0_193 = arith.constant 0 : index
    %548 = vector.load %arg13[%c1_191, %c0_192, %c0_193] : memref<2x16x32xf32, #tpu.memory_space<vmem>>, vector<1x16x32xf32>
    %549 = vector.shape_cast %548 : vector<1x16x32xf32> to vector<16x32xf32>
    %c1_194 = arith.constant 1 : index
    %c0_195 = arith.constant 0 : index
    %c0_196 = arith.constant 0 : index
    %c0_197 = arith.constant 0 : index
    %550 = vector.load %arg14[%c1_194, %c0_195, %c0_196, %c0_197] : memref<2x20x1x8xf32, #tpu.memory_space<vmem>>, vector<1x20x1x8xf32>
    %551 = vector.shape_cast %550 : vector<1x20x1x8xf32> to vector<20x1x8xf32>
    %552 = vector.extract_strided_slice %549 {offsets = [0, 0], sizes = [1, 32], strides = [1, 1]} : vector<16x32xf32> to vector<1x32xf32>
    %553 = vector.extract_strided_slice %549 {offsets = [1, 0], sizes = [1, 32], strides = [1, 1]} : vector<16x32xf32> to vector<1x32xf32>
    %554 = vector.extract_strided_slice %549 {offsets = [2, 0], sizes = [1, 32], strides = [1, 1]} : vector<16x32xf32> to vector<1x32xf32>
    %555 = vector.extract_strided_slice %549 {offsets = [3, 0], sizes = [1, 32], strides = [1, 1]} : vector<16x32xf32> to vector<1x32xf32>
    %556 = vector.extract_strided_slice %549 {offsets = [4, 0], sizes = [1, 32], strides = [1, 1]} : vector<16x32xf32> to vector<1x32xf32>
    %557 = vector.extract_strided_slice %549 {offsets = [5, 0], sizes = [1, 32], strides = [1, 1]} : vector<16x32xf32> to vector<1x32xf32>
    %558 = vector.extract_strided_slice %549 {offsets = [6, 0], sizes = [1, 32], strides = [1, 1]} : vector<16x32xf32> to vector<1x32xf32>
    %559 = vector.extract_strided_slice %549 {offsets = [7, 0], sizes = [1, 32], strides = [1, 1]} : vector<16x32xf32> to vector<1x32xf32>
    %560 = vector.extract_strided_slice %549 {offsets = [8, 0], sizes = [1, 32], strides = [1, 1]} : vector<16x32xf32> to vector<1x32xf32>
    %561 = vector.extract_strided_slice %549 {offsets = [9, 0], sizes = [1, 32], strides = [1, 1]} : vector<16x32xf32> to vector<1x32xf32>
    %562 = vector.extract_strided_slice %549 {offsets = [10, 0], sizes = [1, 32], strides = [1, 1]} : vector<16x32xf32> to vector<1x32xf32>
    %563 = vector.extract_strided_slice %549 {offsets = [11, 0], sizes = [1, 32], strides = [1, 1]} : vector<16x32xf32> to vector<1x32xf32>
    %564 = vector.extract_strided_slice %551 {offsets = [0, 0, 0], sizes = [4, 1, 8], strides = [1, 1, 1]} : vector<20x1x8xf32> to vector<4x1x8xf32>
    %565 = vector.extract_strided_slice %551 {offsets = [4, 0, 0], sizes = [4, 1, 8], strides = [1, 1, 1]} : vector<20x1x8xf32> to vector<4x1x8xf32>
    %566 = vector.extract_strided_slice %551 {offsets = [8, 0, 0], sizes = [4, 1, 8], strides = [1, 1, 1]} : vector<20x1x8xf32> to vector<4x1x8xf32>
    %567 = vector.extract_strided_slice %551 {offsets = [12, 0, 0], sizes = [4, 1, 8], strides = [1, 1, 1]} : vector<20x1x8xf32> to vector<4x1x8xf32>
    %568 = vector.extract_strided_slice %551 {offsets = [16, 0, 0], sizes = [4, 1, 8], strides = [1, 1, 1]} : vector<20x1x8xf32> to vector<4x1x8xf32>
    %cst_198 = arith.constant dense<0.000000e+00> : vector<8xf32>
    %569 = vector.multi_reduction <add>, %539, %cst_198 [1] : vector<8x32xf32> to vector<8xf32>
    %570 = vector.shape_cast %569 : vector<8xf32> to vector<8x1xf32>
    %cst_199 = arith.constant 3.200000e+01 : f32
    %571 = vector.broadcast %cst_199 : f32 to vector<8x1xf32>
    %572 = arith.divf %570, %571 : vector<8x1xf32>
    %573 = vector.broadcast %572 : vector<8x1xf32> to vector<8x32xf32>
    %574 = arith.subf %539, %573 : vector<8x32xf32>
    %575 = vector.broadcast %572 : vector<8x1xf32> to vector<8x32xf32>
    %576 = arith.subf %539, %575 : vector<8x32xf32>
    %577 = arith.mulf %574, %576 : vector<8x32xf32>
    %cst_200 = arith.constant dense<0.000000e+00> : vector<8xf32>
    %578 = vector.multi_reduction <add>, %577, %cst_200 [1] : vector<8x32xf32> to vector<8xf32>
    %579 = vector.shape_cast %578 : vector<8xf32> to vector<8x1xf32>
    %cst_201 = arith.constant 3.200000e+01 : f32
    %580 = vector.broadcast %cst_201 : f32 to vector<8x1xf32>
    %581 = arith.divf %579, %580 : vector<8x1xf32>
    %582 = vector.broadcast %572 : vector<8x1xf32> to vector<8x32xf32>
    %583 = arith.subf %539, %582 : vector<8x32xf32>
    %cst_202 = arith.constant 9.99999974E-6 : f32
    %584 = vector.broadcast %cst_202 : f32 to vector<8x1xf32>
    %585 = arith.addf %581, %584 : vector<8x1xf32>
    %586 = math.rsqrt %585 : vector<8x1xf32>
    %587 = vector.broadcast %586 : vector<8x1xf32> to vector<8x32xf32>
    %588 = arith.mulf %583, %587 : vector<8x32xf32>
    %589 = vector.broadcast %552 : vector<1x32xf32> to vector<8x32xf32>
    %590 = arith.mulf %588, %589 : vector<8x32xf32>
    %591 = vector.broadcast %553 : vector<1x32xf32> to vector<8x32xf32>
    %592 = arith.addf %590, %591 : vector<8x32xf32>
    %cst_203 = arith.constant dense<0.000000e+00> : vector<8xf32>
    %593 = vector.multi_reduction <add>, %539, %cst_203 [1] : vector<8x32xf32> to vector<8xf32>
    %594 = vector.shape_cast %593 : vector<8xf32> to vector<8x1xf32>
    %cst_204 = arith.constant 3.200000e+01 : f32
    %595 = vector.broadcast %cst_204 : f32 to vector<8x1xf32>
    %596 = arith.divf %594, %595 : vector<8x1xf32>
    %597 = vector.broadcast %596 : vector<8x1xf32> to vector<8x32xf32>
    %598 = arith.subf %539, %597 : vector<8x32xf32>
    %599 = vector.broadcast %596 : vector<8x1xf32> to vector<8x32xf32>
    %600 = arith.subf %539, %599 : vector<8x32xf32>
    %601 = arith.mulf %598, %600 : vector<8x32xf32>
    %cst_205 = arith.constant dense<0.000000e+00> : vector<8xf32>
    %602 = vector.multi_reduction <add>, %601, %cst_205 [1] : vector<8x32xf32> to vector<8xf32>
    %603 = vector.shape_cast %602 : vector<8xf32> to vector<8x1xf32>
    %cst_206 = arith.constant 3.200000e+01 : f32
    %604 = vector.broadcast %cst_206 : f32 to vector<8x1xf32>
    %605 = arith.divf %603, %604 : vector<8x1xf32>
    %606 = vector.broadcast %596 : vector<8x1xf32> to vector<8x32xf32>
    %607 = arith.subf %539, %606 : vector<8x32xf32>
    %cst_207 = arith.constant 9.99999974E-6 : f32
    %608 = vector.broadcast %cst_207 : f32 to vector<8x1xf32>
    %609 = arith.addf %605, %608 : vector<8x1xf32>
    %610 = math.rsqrt %609 : vector<8x1xf32>
    %611 = vector.broadcast %610 : vector<8x1xf32> to vector<8x32xf32>
    %612 = arith.mulf %607, %611 : vector<8x32xf32>
    %613 = vector.broadcast %554 : vector<1x32xf32> to vector<8x32xf32>
    %614 = arith.mulf %612, %613 : vector<8x32xf32>
    %615 = vector.broadcast %555 : vector<1x32xf32> to vector<8x32xf32>
    %616 = arith.addf %614, %615 : vector<8x32xf32>
    %617 = vector.shape_cast %616 : vector<8x32xf32> to vector<1x8x32xf32>
    %618 = vector.shape_cast %617 : vector<1x8x32xf32> to vector<1x8x32xf32>
    %619 = vector.broadcast %618 : vector<1x8x32xf32> to vector<4x8x32xf32>
    %620 = vector.shape_cast %592 : vector<8x32xf32> to vector<1x8x32xf32>
    %621 = vector.shape_cast %620 : vector<1x8x32xf32> to vector<1x8x32xf32>
    %622 = vector.broadcast %621 : vector<1x8x32xf32> to vector<8x8x32xf32>
    "tpu.trace_start"() <{level = 10 : i32, message = "hle,hed->hld"}> : () -> ()
    %cst_208 = arith.constant dense<0.000000e+00> : vector<4x8x8xf32>
    %623 = tpu.matmul %619, %541, %cst_208 {dimension_numbers = #tpu.dot_dimension_numbers<[2], [1], [1], [2], [0, 0, 0, 1, 1, 2], [0], [0]>} : vector<4x8x32xf32>, vector<4x32x8xf32>, vector<4x8x8xf32> -> vector<4x8x8xf32>
    "tpu.trace_stop"() : () -> ()
    %624 = vector.broadcast %564 : vector<4x1x8xf32> to vector<4x8x8xf32>
    %625 = arith.addf %623, %624 : vector<4x8x8xf32>
    %cst_209 = arith.constant 0.353553385 : f32
    %626 = vector.broadcast %cst_209 : f32 to vector<4x8x8xf32>
    %627 = arith.mulf %625, %626 : vector<4x8x8xf32>
    "tpu.trace_start"() <{level = 10 : i32, message = "hle,hed->hld"}> : () -> ()
    %cst_210 = arith.constant dense<0.000000e+00> : vector<8x8x8xf32>
    %628 = tpu.matmul %622, %543, %cst_210 {dimension_numbers = #tpu.dot_dimension_numbers<[2], [1], [1], [2], [0, 0, 0, 1, 1, 2], [0], [0]>} : vector<8x8x32xf32>, vector<8x32x8xf32>, vector<8x8x8xf32> -> vector<8x8x8xf32>
    "tpu.trace_stop"() : () -> ()
    %629 = vector.extract_strided_slice %628 {offsets = [0, 0, 0], sizes = [4, 8, 8], strides = [1, 1, 1]} : vector<8x8x8xf32> to vector<4x8x8xf32>
    %630 = vector.broadcast %565 : vector<4x1x8xf32> to vector<4x8x8xf32>
    %631 = arith.addf %629, %630 : vector<4x8x8xf32>
    %632 = vector.extract_strided_slice %628 {offsets = [4, 0, 0], sizes = [4, 8, 8], strides = [1, 1, 1]} : vector<8x8x8xf32> to vector<4x8x8xf32>
    %633 = vector.broadcast %566 : vector<4x1x8xf32> to vector<4x8x8xf32>
    %634 = arith.addf %632, %633 : vector<4x8x8xf32>
    "tpu.trace_start"() <{level = 10 : i32, message = "hqd,hkd->hqk"}> : () -> ()
    %cst_211 = arith.constant dense<0.000000e+00> : vector<4x8x8xf32>
    %635 = tpu.matmul %627, %631, %cst_211 {dimension_numbers = #tpu.dot_dimension_numbers<[2], [2], [1], [1], [0, 0, 0, 1, 1, 1], [0], [0]>} : vector<4x8x8xf32>, vector<4x8x8xf32>, vector<4x8x8xf32> -> vector<4x8x8xf32>
    "tpu.trace_stop"() : () -> ()
    %636 = vector.broadcast %567 : vector<4x1x8xf32> to vector<4x8x8xf32>
    %637 = arith.mulf %627, %636 : vector<4x8x8xf32>
    %cst_212 = arith.constant dense<0.000000e+00> : vector<4x8xf32>
    %638 = vector.multi_reduction <add>, %637, %cst_212 [2] : vector<4x8x8xf32> to vector<4x8xf32>
    %639 = vector.shape_cast %638 : vector<4x8xf32> to vector<4x8x1xf32>
    %cst_213 = arith.constant dense<0xFF800000> : vector<4x8xf32>
    %640 = vector.multi_reduction <maximumf>, %635, %cst_213 [2] : vector<4x8x8xf32> to vector<4x8xf32>
    %641 = vector.shape_cast %640 : vector<4x8xf32> to vector<4x8x1xf32>
    %642 = arith.maximumf %641, %639 : vector<4x8x1xf32>
    %643 = vector.broadcast %642 : vector<4x8x1xf32> to vector<4x8x8xf32>
    %644 = arith.subf %635, %643 : vector<4x8x8xf32>
    %645 = math.exp %644 : vector<4x8x8xf32>
    %646 = arith.subf %639, %642 : vector<4x8x1xf32>
    %647 = math.exp %646 : vector<4x8x1xf32>
    %cst_214 = arith.constant dense<0.000000e+00> : vector<4x8xf32>
    %648 = vector.multi_reduction <add>, %645, %cst_214 [2] : vector<4x8x8xf32> to vector<4x8xf32>
    %649 = vector.shape_cast %648 : vector<4x8xf32> to vector<4x8x1xf32>
    %650 = arith.addf %649, %647 : vector<4x8x1xf32>
    %651 = tpu.reciprocal %650 {approx = true} : vector<4x8x1xf32> -> vector<4x8x1xf32>
    "tpu.trace_start"() <{level = 10 : i32, message = "hqk,hkd->hqd"}> : () -> ()
    %cst_215 = arith.constant dense<0.000000e+00> : vector<4x8x8xf32>
    %652 = tpu.matmul %645, %634, %cst_215 {dimension_numbers = #tpu.dot_dimension_numbers<[2], [1], [1], [2], [0, 0, 0, 1, 1, 2], [0], [0]>} : vector<4x8x8xf32>, vector<4x8x8xf32>, vector<4x8x8xf32> -> vector<4x8x8xf32>
    "tpu.trace_stop"() : () -> ()
    %653 = vector.broadcast %647 : vector<4x8x1xf32> to vector<4x8x8xf32>
    %654 = vector.broadcast %568 : vector<4x1x8xf32> to vector<4x8x8xf32>
    %655 = arith.mulf %653, %654 : vector<4x8x8xf32>
    %656 = arith.addf %652, %655 : vector<4x8x8xf32>
    %657 = vector.broadcast %651 : vector<4x8x1xf32> to vector<4x8x8xf32>
    %658 = arith.mulf %656, %657 : vector<4x8x8xf32>
    "tpu.trace_start"() <{level = 10 : i32, message = "hqd,hde->hqe"}> : () -> ()
    %cst_216 = arith.constant dense<0.000000e+00> : vector<4x8x32xf32>
    %659 = tpu.matmul %658, %545, %cst_216 {dimension_numbers = #tpu.dot_dimension_numbers<[2], [1], [1], [2], [0, 0, 0, 1, 1, 2], [0], [0]>} : vector<4x8x8xf32>, vector<4x8x32xf32>, vector<4x8x32xf32> -> vector<4x8x32xf32>
    "tpu.trace_stop"() : () -> ()
    %cst_217 = arith.constant dense<0.000000e+00> : vector<8x32xf32>
    %660 = vector.multi_reduction <add>, %659, %cst_217 [0] : vector<4x8x32xf32> to vector<8x32xf32>
    %661 = vector.broadcast %560 : vector<1x32xf32> to vector<8x32xf32>
    %662 = arith.addf %660, %661 : vector<8x32xf32>
    %663 = arith.addf %662, %539 : vector<8x32xf32>
    %cst_218 = arith.constant dense<0.000000e+00> : vector<8xf32>
    %664 = vector.multi_reduction <add>, %663, %cst_218 [1] : vector<8x32xf32> to vector<8xf32>
    %665 = vector.shape_cast %664 : vector<8xf32> to vector<8x1xf32>
    %cst_219 = arith.constant 3.200000e+01 : f32
    %666 = vector.broadcast %cst_219 : f32 to vector<8x1xf32>
    %667 = arith.divf %665, %666 : vector<8x1xf32>
    %668 = vector.broadcast %667 : vector<8x1xf32> to vector<8x32xf32>
    %669 = arith.subf %663, %668 : vector<8x32xf32>
    %670 = vector.broadcast %667 : vector<8x1xf32> to vector<8x32xf32>
    %671 = arith.subf %663, %670 : vector<8x32xf32>
    %672 = arith.mulf %669, %671 : vector<8x32xf32>
    %cst_220 = arith.constant dense<0.000000e+00> : vector<8xf32>
    %673 = vector.multi_reduction <add>, %672, %cst_220 [1] : vector<8x32xf32> to vector<8xf32>
    %674 = vector.shape_cast %673 : vector<8xf32> to vector<8x1xf32>
    %cst_221 = arith.constant 3.200000e+01 : f32
    %675 = vector.broadcast %cst_221 : f32 to vector<8x1xf32>
    %676 = arith.divf %674, %675 : vector<8x1xf32>
    %677 = vector.broadcast %667 : vector<8x1xf32> to vector<8x32xf32>
    %678 = arith.subf %663, %677 : vector<8x32xf32>
    %cst_222 = arith.constant 9.99999974E-6 : f32
    %679 = vector.broadcast %cst_222 : f32 to vector<8x1xf32>
    %680 = arith.addf %676, %679 : vector<8x1xf32>
    %681 = math.rsqrt %680 : vector<8x1xf32>
    %682 = vector.broadcast %681 : vector<8x1xf32> to vector<8x32xf32>
    %683 = arith.mulf %678, %682 : vector<8x32xf32>
    %684 = vector.broadcast %556 : vector<1x32xf32> to vector<8x32xf32>
    %685 = arith.mulf %683, %684 : vector<8x32xf32>
    %686 = vector.broadcast %557 : vector<1x32xf32> to vector<8x32xf32>
    %687 = arith.addf %685, %686 : vector<8x32xf32>
    %688 = vector.extract_strided_slice %547 {offsets = [0, 0, 0], sizes = [1, 32, 32], strides = [1, 1, 1]} : vector<3x32x32xf32> to vector<1x32x32xf32>
    %689 = vector.shape_cast %688 : vector<1x32x32xf32> to vector<32x32xf32>
    %cst_223 = arith.constant dense<0.000000e+00> : vector<8x32xf32>
    %690 = tpu.matmul %687, %689, %cst_223 {dimension_numbers = #tpu.dot_dimension_numbers<[1], [0], [0], [1], [0, 0, 1, 1], [], []>} : vector<8x32xf32>, vector<32x32xf32>, vector<8x32xf32> -> vector<8x32xf32>
    %691 = vector.broadcast %561 : vector<1x32xf32> to vector<8x32xf32>
    %692 = arith.addf %690, %691 : vector<8x32xf32>
    %cst_224 = arith.constant 5.000000e-01 : f32
    %693 = vector.broadcast %cst_224 : f32 to vector<8x32xf32>
    %694 = arith.mulf %693, %692 : vector<8x32xf32>
    %cst_225 = arith.constant 0.707106769 : f32
    %695 = vector.broadcast %cst_225 : f32 to vector<8x32xf32>
    %696 = arith.mulf %692, %695 : vector<8x32xf32>
    %697 = math.absf %696 : vector<8x32xf32>
    %cst_226 = arith.constant 0.327591091 : f32
    %698 = vector.broadcast %cst_226 : f32 to vector<8x32xf32>
    %699 = arith.mulf %698, %697 : vector<8x32xf32>
    %cst_227 = arith.constant 1.000000e+00 : f32
    %700 = vector.broadcast %cst_227 : f32 to vector<8x32xf32>
    %701 = arith.addf %700, %699 : vector<8x32xf32>
    %cst_228 = arith.constant 1.000000e+00 : f32
    %702 = vector.broadcast %cst_228 : f32 to vector<8x32xf32>
    %703 = arith.divf %702, %701 : vector<8x32xf32>
    %cst_229 = arith.constant 1.06140542 : f32
    %704 = vector.broadcast %cst_229 : f32 to vector<8x32xf32>
    %705 = arith.mulf %704, %703 : vector<8x32xf32>
    %cst_230 = arith.constant -1.45315206 : f32
    %706 = vector.broadcast %cst_230 : f32 to vector<8x32xf32>
    %707 = arith.addf %705, %706 : vector<8x32xf32>
    %708 = arith.mulf %707, %703 : vector<8x32xf32>
    %cst_231 = arith.constant 1.42141378 : f32
    %709 = vector.broadcast %cst_231 : f32 to vector<8x32xf32>
    %710 = arith.addf %708, %709 : vector<8x32xf32>
    %711 = arith.mulf %710, %703 : vector<8x32xf32>
    %cst_232 = arith.constant -0.284496725 : f32
    %712 = vector.broadcast %cst_232 : f32 to vector<8x32xf32>
    %713 = arith.addf %711, %712 : vector<8x32xf32>
    %714 = arith.mulf %713, %703 : vector<8x32xf32>
    %cst_233 = arith.constant 0.254829586 : f32
    %715 = vector.broadcast %cst_233 : f32 to vector<8x32xf32>
    %716 = arith.addf %714, %715 : vector<8x32xf32>
    %717 = arith.mulf %716, %703 : vector<8x32xf32>
    %cst_234 = arith.constant 0.000000e+00 : f32
    %718 = vector.broadcast %cst_234 : f32 to vector<8x32xf32>
    %719 = arith.subf %718, %697 : vector<8x32xf32>
    %720 = arith.mulf %719, %697 : vector<8x32xf32>
    %721 = math.exp %720 : vector<8x32xf32>
    %722 = arith.mulf %717, %721 : vector<8x32xf32>
    %cst_235 = arith.constant 1.000000e+00 : f32
    %723 = vector.broadcast %cst_235 : f32 to vector<8x32xf32>
    %724 = arith.subf %723, %722 : vector<8x32xf32>
    %cst_236 = arith.constant 0.000000e+00 : f32
    %725 = vector.broadcast %cst_236 : f32 to vector<8x32xf32>
    %726 = arith.cmpf oge, %696, %725 : vector<8x32xf32>
    %cst_237 = arith.constant 0.000000e+00 : f32
    %727 = vector.broadcast %cst_237 : f32 to vector<8x32xf32>
    %728 = arith.subf %727, %724 : vector<8x32xf32>
    %729 = arith.select %726, %724, %728 : vector<8x32xi1>, vector<8x32xf32>
    %cst_238 = arith.constant 1.000000e+00 : f32
    %730 = vector.broadcast %cst_238 : f32 to vector<8x32xf32>
    %731 = arith.addf %730, %729 : vector<8x32xf32>
    %732 = arith.mulf %694, %731 : vector<8x32xf32>
    %cst_239 = arith.constant dense<0.000000e+00> : vector<8xf32>
    %733 = vector.multi_reduction <add>, %732, %cst_239 [1] : vector<8x32xf32> to vector<8xf32>
    %734 = vector.shape_cast %733 : vector<8xf32> to vector<8x1xf32>
    %cst_240 = arith.constant 3.200000e+01 : f32
    %735 = vector.broadcast %cst_240 : f32 to vector<8x1xf32>
    %736 = arith.divf %734, %735 : vector<8x1xf32>
    %737 = vector.broadcast %736 : vector<8x1xf32> to vector<8x32xf32>
    %738 = arith.subf %732, %737 : vector<8x32xf32>
    %739 = vector.broadcast %736 : vector<8x1xf32> to vector<8x32xf32>
    %740 = arith.subf %732, %739 : vector<8x32xf32>
    %741 = arith.mulf %738, %740 : vector<8x32xf32>
    %cst_241 = arith.constant dense<0.000000e+00> : vector<8xf32>
    %742 = vector.multi_reduction <add>, %741, %cst_241 [1] : vector<8x32xf32> to vector<8xf32>
    %743 = vector.shape_cast %742 : vector<8xf32> to vector<8x1xf32>
    %cst_242 = arith.constant 3.200000e+01 : f32
    %744 = vector.broadcast %cst_242 : f32 to vector<8x1xf32>
    %745 = arith.divf %743, %744 : vector<8x1xf32>
    %746 = vector.broadcast %736 : vector<8x1xf32> to vector<8x32xf32>
    %747 = arith.subf %732, %746 : vector<8x32xf32>
    %cst_243 = arith.constant 9.99999974E-6 : f32
    %748 = vector.broadcast %cst_243 : f32 to vector<8x1xf32>
    %749 = arith.addf %745, %748 : vector<8x1xf32>
    %750 = math.rsqrt %749 : vector<8x1xf32>
    %751 = vector.broadcast %750 : vector<8x1xf32> to vector<8x32xf32>
    %752 = arith.mulf %747, %751 : vector<8x32xf32>
    %753 = vector.broadcast %558 : vector<1x32xf32> to vector<8x32xf32>
    %754 = arith.mulf %752, %753 : vector<8x32xf32>
    %755 = vector.broadcast %559 : vector<1x32xf32> to vector<8x32xf32>
    %756 = arith.addf %754, %755 : vector<8x32xf32>
    %757 = vector.extract_strided_slice %547 {offsets = [1, 0, 0], sizes = [1, 32, 32], strides = [1, 1, 1]} : vector<3x32x32xf32> to vector<1x32x32xf32>
    %758 = vector.shape_cast %757 : vector<1x32x32xf32> to vector<32x32xf32>
    %cst_244 = arith.constant dense<0.000000e+00> : vector<8x32xf32>
    %759 = tpu.matmul %756, %758, %cst_244 {dimension_numbers = #tpu.dot_dimension_numbers<[1], [0], [0], [1], [0, 0, 1, 1], [], []>} : vector<8x32xf32>, vector<32x32xf32>, vector<8x32xf32> -> vector<8x32xf32>
    %760 = vector.broadcast %562 : vector<1x32xf32> to vector<8x32xf32>
    %761 = arith.addf %759, %760 : vector<8x32xf32>
    %cst_245 = arith.constant 5.000000e-01 : f32
    %762 = vector.broadcast %cst_245 : f32 to vector<8x32xf32>
    %763 = arith.mulf %762, %761 : vector<8x32xf32>
    %cst_246 = arith.constant 0.707106769 : f32
    %764 = vector.broadcast %cst_246 : f32 to vector<8x32xf32>
    %765 = arith.mulf %761, %764 : vector<8x32xf32>
    %766 = math.absf %765 : vector<8x32xf32>
    %cst_247 = arith.constant 0.327591091 : f32
    %767 = vector.broadcast %cst_247 : f32 to vector<8x32xf32>
    %768 = arith.mulf %767, %766 : vector<8x32xf32>
    %cst_248 = arith.constant 1.000000e+00 : f32
    %769 = vector.broadcast %cst_248 : f32 to vector<8x32xf32>
    %770 = arith.addf %769, %768 : vector<8x32xf32>
    %cst_249 = arith.constant 1.000000e+00 : f32
    %771 = vector.broadcast %cst_249 : f32 to vector<8x32xf32>
    %772 = arith.divf %771, %770 : vector<8x32xf32>
    %cst_250 = arith.constant 1.06140542 : f32
    %773 = vector.broadcast %cst_250 : f32 to vector<8x32xf32>
    %774 = arith.mulf %773, %772 : vector<8x32xf32>
    %cst_251 = arith.constant -1.45315206 : f32
    %775 = vector.broadcast %cst_251 : f32 to vector<8x32xf32>
    %776 = arith.addf %774, %775 : vector<8x32xf32>
    %777 = arith.mulf %776, %772 : vector<8x32xf32>
    %cst_252 = arith.constant 1.42141378 : f32
    %778 = vector.broadcast %cst_252 : f32 to vector<8x32xf32>
    %779 = arith.addf %777, %778 : vector<8x32xf32>
    %780 = arith.mulf %779, %772 : vector<8x32xf32>
    %cst_253 = arith.constant -0.284496725 : f32
    %781 = vector.broadcast %cst_253 : f32 to vector<8x32xf32>
    %782 = arith.addf %780, %781 : vector<8x32xf32>
    %783 = arith.mulf %782, %772 : vector<8x32xf32>
    %cst_254 = arith.constant 0.254829586 : f32
    %784 = vector.broadcast %cst_254 : f32 to vector<8x32xf32>
    %785 = arith.addf %783, %784 : vector<8x32xf32>
    %786 = arith.mulf %785, %772 : vector<8x32xf32>
    %cst_255 = arith.constant 0.000000e+00 : f32
    %787 = vector.broadcast %cst_255 : f32 to vector<8x32xf32>
    %788 = arith.subf %787, %766 : vector<8x32xf32>
    %789 = arith.mulf %788, %766 : vector<8x32xf32>
    %790 = math.exp %789 : vector<8x32xf32>
    %791 = arith.mulf %786, %790 : vector<8x32xf32>
    %cst_256 = arith.constant 1.000000e+00 : f32
    %792 = vector.broadcast %cst_256 : f32 to vector<8x32xf32>
    %793 = arith.subf %792, %791 : vector<8x32xf32>
    %cst_257 = arith.constant 0.000000e+00 : f32
    %794 = vector.broadcast %cst_257 : f32 to vector<8x32xf32>
    %795 = arith.cmpf oge, %765, %794 : vector<8x32xf32>
    %cst_258 = arith.constant 0.000000e+00 : f32
    %796 = vector.broadcast %cst_258 : f32 to vector<8x32xf32>
    %797 = arith.subf %796, %793 : vector<8x32xf32>
    %798 = arith.select %795, %793, %797 : vector<8x32xi1>, vector<8x32xf32>
    %cst_259 = arith.constant 1.000000e+00 : f32
    %799 = vector.broadcast %cst_259 : f32 to vector<8x32xf32>
    %800 = arith.addf %799, %798 : vector<8x32xf32>
    %801 = arith.mulf %763, %800 : vector<8x32xf32>
    %802 = vector.extract_strided_slice %547 {offsets = [2, 0, 0], sizes = [1, 32, 32], strides = [1, 1, 1]} : vector<3x32x32xf32> to vector<1x32x32xf32>
    %803 = vector.shape_cast %802 : vector<1x32x32xf32> to vector<32x32xf32>
    %cst_260 = arith.constant dense<0.000000e+00> : vector<8x32xf32>
    %804 = tpu.matmul %801, %803, %cst_260 {dimension_numbers = #tpu.dot_dimension_numbers<[1], [0], [0], [1], [0, 0, 1, 1], [], []>} : vector<8x32xf32>, vector<32x32xf32>, vector<8x32xf32> -> vector<8x32xf32>
    %805 = vector.broadcast %563 : vector<1x32xf32> to vector<8x32xf32>
    %806 = arith.addf %804, %805 : vector<8x32xf32>
    %807 = arith.addf %806, %663 : vector<8x32xf32>
    %c0_261 = arith.constant 0 : index
    %c0_262 = arith.constant 0 : index
    %c0_263 = arith.constant 0 : index
    %808 = vector.load %arg15[%c0_261, %c0_262, %c0_263] : memref<1x8x32xf32, #tpu.memory_space<vmem>>, vector<1x8x32xf32>
    %809 = vector.shape_cast %808 : vector<1x8x32xf32> to vector<8x32xf32>
    %810 = vector.shape_cast %807 : vector<8x32xf32> to vector<1x8x32xf32>
    tpu.vector_store %arg15[%c0_261, %c0_262, %c0_263], %810 {strides = array<i32>} : memref<1x8x32xf32, #tpu.memory_space<vmem>>, vector<1x8x32xf32>,
    return
  }
  func.func @transform_0(%arg0: i32) -> (i32, i32, i32) {
    %c0_i32 = arith.constant 0 : i32
    %c0_i32_0 = arith.constant 0 : i32
    %c0_i32_1 = arith.constant 0 : i32
    return %arg0, %c0_i32, %c0_i32_0 : i32, i32, i32
  }
  func.func @transform_1(%arg0: i32) -> (i32, i32, i32) {
    %c0_i32 = arith.constant 0 : i32
    %c0_i32_0 = arith.constant 0 : i32
    %c0_i32_1 = arith.constant 0 : i32
    return %arg0, %c0_i32, %c0_i32_0 : i32, i32, i32
  }
  func.func @transform_2(%arg0: i32) -> (i32, i32, i32, i32) {
    %c0_i32 = arith.constant 0 : i32
    %c0_i32_0 = arith.constant 0 : i32
    %c0_i32_1 = arith.constant 0 : i32
    %c0_i32_2 = arith.constant 0 : i32
    %c0_i32_3 = arith.constant 0 : i32
    return %c0_i32, %c0_i32_0, %c0_i32_1, %c0_i32_2 : i32, i32, i32, i32
  }
  func.func @transform_3(%arg0: i32) -> (i32, i32, i32, i32) {
    %c0_i32 = arith.constant 0 : i32
    %c0_i32_0 = arith.constant 0 : i32
    %c0_i32_1 = arith.constant 0 : i32
    %c0_i32_2 = arith.constant 0 : i32
    %c0_i32_3 = arith.constant 0 : i32
    return %c0_i32, %c0_i32_0, %c0_i32_1, %c0_i32_2 : i32, i32, i32, i32
  }
  func.func @transform_4(%arg0: i32) -> (i32, i32, i32, i32) {
    %c0_i32 = arith.constant 0 : i32
    %c0_i32_0 = arith.constant 0 : i32
    %c0_i32_1 = arith.constant 0 : i32
    %c0_i32_2 = arith.constant 0 : i32
    %c0_i32_3 = arith.constant 0 : i32
    return %c0_i32, %c0_i32_0, %c0_i32_1, %c0_i32_2 : i32, i32, i32, i32
  }
  func.func @transform_5(%arg0: i32) -> (i32, i32, i32, i32) {
    %c0_i32 = arith.constant 0 : i32
    %c0_i32_0 = arith.constant 0 : i32
    %c0_i32_1 = arith.constant 0 : i32
    %c0_i32_2 = arith.constant 0 : i32
    %c0_i32_3 = arith.constant 0 : i32
    return %c0_i32, %c0_i32_0, %c0_i32_1, %c0_i32_2 : i32, i32, i32, i32
  }
  func.func @transform_6(%arg0: i32) -> (i32, i32, i32) {
    %c0_i32 = arith.constant 0 : i32
    %c0_i32_0 = arith.constant 0 : i32
    %c0_i32_1 = arith.constant 0 : i32
    %c0_i32_2 = arith.constant 0 : i32
    return %c0_i32, %c0_i32_0, %c0_i32_1 : i32, i32, i32
  }
  func.func @transform_7(%arg0: i32) -> (i32, i32, i32, i32) {
    %c0_i32 = arith.constant 0 : i32
    %c0_i32_0 = arith.constant 0 : i32
    %c0_i32_1 = arith.constant 0 : i32
    %c0_i32_2 = arith.constant 0 : i32
    %c0_i32_3 = arith.constant 0 : i32
    return %c0_i32, %c0_i32_0, %c0_i32_1, %c0_i32_2 : i32, i32, i32, i32
  }
  func.func @transform_8(%arg0: i32) -> (i32, i32, i32, i32) {
    %c0_i32 = arith.constant 0 : i32
    %c0_i32_0 = arith.constant 0 : i32
    %c0_i32_1 = arith.constant 0 : i32
    %c0_i32_2 = arith.constant 0 : i32
    %c0_i32_3 = arith.constant 0 : i32
    return %c0_i32, %c0_i32_0, %c0_i32_1, %c0_i32_2 : i32, i32, i32, i32
  }
  func.func @transform_9(%arg0: i32) -> (i32, i32, i32, i32) {
    %c0_i32 = arith.constant 0 : i32
    %c0_i32_0 = arith.constant 0 : i32
    %c0_i32_1 = arith.constant 0 : i32
    %c0_i32_2 = arith.constant 0 : i32
    %c0_i32_3 = arith.constant 0 : i32
    return %c0_i32, %c0_i32_0, %c0_i32_1, %c0_i32_2 : i32, i32, i32, i32
  }
  func.func @transform_10(%arg0: i32) -> (i32, i32, i32, i32) {
    %c0_i32 = arith.constant 0 : i32
    %c0_i32_0 = arith.constant 0 : i32
    %c0_i32_1 = arith.constant 0 : i32
    %c0_i32_2 = arith.constant 0 : i32
    %c0_i32_3 = arith.constant 0 : i32
    return %c0_i32, %c0_i32_0, %c0_i32_1, %c0_i32_2 : i32, i32, i32, i32
  }
  func.func @transform_11(%arg0: i32) -> (i32, i32, i32, i32) {
    %c0_i32 = arith.constant 0 : i32
    %c0_i32_0 = arith.constant 0 : i32
    %c0_i32_1 = arith.constant 0 : i32
    %c0_i32_2 = arith.constant 0 : i32
    %c0_i32_3 = arith.constant 0 : i32
    return %c0_i32, %c0_i32_0, %c0_i32_1, %c0_i32_2 : i32, i32, i32, i32
  }
  func.func @transform_12(%arg0: i32) -> (i32, i32, i32) {
    %c0_i32 = arith.constant 0 : i32
    %c0_i32_0 = arith.constant 0 : i32
    %c0_i32_1 = arith.constant 0 : i32
    %c0_i32_2 = arith.constant 0 : i32
    return %c0_i32, %c0_i32_0, %c0_i32_1 : i32, i32, i32
  }
  func.func @transform_13(%arg0: i32) -> (i32, i32, i32, i32) {
    %c0_i32 = arith.constant 0 : i32
    %c0_i32_0 = arith.constant 0 : i32
    %c0_i32_1 = arith.constant 0 : i32
    %c0_i32_2 = arith.constant 0 : i32
    %c0_i32_3 = arith.constant 0 : i32
    return %c0_i32, %c0_i32_0, %c0_i32_1, %c0_i32_2 : i32, i32, i32, i32
  }
  func.func @transform_14(%arg0: i32) -> (i32, i32, i32) {
    %c0_i32 = arith.constant 0 : i32
    %c0_i32_0 = arith.constant 0 : i32
    %c0_i32_1 = arith.constant 0 : i32
    return %arg0, %c0_i32, %c0_i32_0 : i32, i32, i32
  }
}

</mosaic_0001>

<llo_original>
// kernel: tpu_custom_call.1
$region0: #{tpu_custom_call.1}
  #allocation0 [shape = 'u32[]', space=smem, size = 0x4, offset = 0x4, fixed_abs, tag = 'smem constant byte address 0x4 - core index']
  #allocation1 [shape = 'u32[72,128]{1,0:T(1,128)}', space=vmem, size = 0x9000, scoped, tag = 'internal scratch']
  %s0 = inlined_call_operand.vmem [shape: f32[2,16,32], index: 0, kind: input, shape index: {}]
  %s1 = inlined_call_operand.vmem [shape: f32[2,8,32], index: 1, kind: input, shape index: {}]
  %s2 = inlined_call_operand.vmem [shape: f32[1,2,32,16], index: 2, kind: input, shape index: {}]
  %s3 = inlined_call_operand.vmem [shape: f32[1,4,32,16], index: 3, kind: input, shape index: {}]
  %s4 = inlined_call_operand.vmem [shape: f32[1,2,16,32], index: 4, kind: input, shape index: {}]
  %s5 = inlined_call_operand.vmem [shape: f32[1,3,32,32], index: 5, kind: input, shape index: {}]
  %s6 = inlined_call_operand.vmem [shape: f32[1,16,32], index: 6, kind: input, shape index: {}]
  %s7 = inlined_call_operand.vmem [shape: f32[1,10,1,16], index: 7, kind: input, shape index: {}]
  %s8 = inlined_call_operand.vmem [shape: f32[2,4,32,8], index: 8, kind: input, shape index: {}]
  %s9 = inlined_call_operand.vmem [shape: f32[2,8,32,8], index: 9, kind: input, shape index: {}]
  %s10 = inlined_call_operand.vmem [shape: f32[2,4,8,32], index: 10, kind: input, shape index: {}]
  %s11 = inlined_call_operand.vmem [shape: f32[2,3,32,32], index: 11, kind: input, shape index: {}]
  %s12 = inlined_call_operand.vmem [shape: f32[2,16,32], index: 12, kind: input, shape index: {}]
  %s13 = inlined_call_operand.vmem [shape: f32[2,20,1,8], index: 13, kind: input, shape index: {}]
  %s14 = inlined_call_operand.hbm [shape: f32[2,8,32], index: 14, kind: output, shape index: {}]
  %s15 = sld [smem:[#allocation0]]
  $region89: #{tpu_custom_call.1} parent=0
    _
  %s17 = ssub.s32 1, %s15
  %s18 = scalar_select 0, %s17, %s15
  $region1: #{tpu_custom_call.1} parent=0
    #allocation2 [shape = 'u8[8192]{0}', space=vmem, size = 0x2000, scoped, tag = 'output window, operand 0']
    #allocation3 [shape = 's32[2]{0}', space=sflag, size = 0x8, scoped, tag = 'scoped memory for tpu_custom_call.1']
    %19 = vsyncpa [#allocation3], 0
    %s20 = scalar_lea.sflag [#allocation3], 1
    %21 = vsyncpa %s20, 0
    loop: start=0, step=1, limit=4
    $region2: #{tpu_custom_call.1} parent=1 // loop_pre_header
      _
    $region3: #{tpu_custom_call.1} parent=1 // loop_header
      %s23 = sphi 0, %s27
      %p24 = scmp.ge.s32.totalorder %s23, 4
      %s33 = sphi 0, %s35
      %s36 = sphi 0, %s33
      %s37 = sphi 0, %s36
      %s53 = sphi 0, %s37
      %s59 = sphi 0, %s61
      %s62 = sphi 0, %s59
      %s63 = sphi 0, %s62
      %s79 = sphi 0, %s63
      %s83 = sphi 0, %s83
      %s85 = sphi 0, %s83
      %s86 = sphi 0, %s85
      %s100 = sphi 0, %s86
      %s104 = sphi 0, %s104
      %s106 = sphi 0, %s104
      %s107 = sphi 0, %s106
      %s121 = sphi 0, %s107
      %s125 = sphi 0, %s125
      %s127 = sphi 0, %s125
      %s128 = sphi 0, %s127
      %s142 = sphi 0, %s128
      %s146 = sphi 0, %s146
      %s148 = sphi 0, %s146
      %s149 = sphi 0, %s148
      %s163 = sphi 0, %s149
      %s167 = sphi 0, %s167
      %s169 = sphi 0, %s167
      %s170 = sphi 0, %s169
      %s184 = sphi 0, %s170
      %s188 = sphi 0, %s188
      %s190 = sphi 0, %s188
      %s191 = sphi 0, %s190
      %s205 = sphi 0, %s191
      %s209 = sphi 0, %s209
      %s211 = sphi 0, %s209
      %s212 = sphi 0, %s211
      %s226 = sphi 0, %s212
      %s230 = sphi 0, %s230
      %s232 = sphi 0, %s230
      %s233 = sphi 0, %s232
      %s247 = sphi 0, %s233
      %s251 = sphi 0, %s251
      %s253 = sphi 0, %s251
      %s254 = sphi 0, %s253
      %s268 = sphi 0, %s254
      %s272 = sphi 0, %s272
      %s274 = sphi 0, %s272
      %s275 = sphi 0, %s274
      %s289 = sphi 0, %s275
      %s293 = sphi 0, %s293
      %s295 = sphi 0, %s293
      %s296 = sphi 0, %s295
      %s310 = sphi 0, %s296
      %s314 = sphi 0, %s314
      %s316 = sphi 0, %s314
      %s317 = sphi 0, %s316
      %s331 = sphi 0, %s317
      %s337 = sphi 0, %s339
      %s340 = sphi 0, %s337
      %s341 = sphi 0, %s340
      %s357 = sphi 0, %s341
    $region4: #{tpu_custom_call.1} parent=1 // loop_header_branch
      %26 = sbr.rel (%p24) target = $region8
    $region5: #{tpu_custom_call.1} parent=1 // loop_body
      %s28 = ssub.s32 %s23, 1
      %s29 = ssub.s32 %s23, 2
      %s30 = sadd.s32 %s23, 1
      %s31 = ssub.s32 %s23, %s30
      %p32 = scmp.eq.s32.totalorder %s31, 0
      %s34 = sadd.s32 %s33, 1
      %s35 = scalar_select %p32, %s33, %s34
      %p38 = pneg %p32
      %p39 = scmp.eq.s32.totalorder %s23, 1
      %p40 = por %p38, %p39
      %p41 = scmp.ne.s32.totalorder %s33, %s36
      %p42 = scmp.eq.s32.totalorder %s23, 0
      %p43 = por %p41, %p42
      %p44 = scmp.ne.s32.totalorder %s33, %s36
      %p45 = scmp.eq.s32.totalorder %s28, 1
      %p46 = por %p44, %p45
      %p47 = scmp.ne.s32.totalorder %s36, %s37
      %p48 = scmp.eq.s32.totalorder %s28, 0
      %p49 = por %p47, %p48
      %p50 = scmp.ne.s32.totalorder %s36, %s37
      %p51 = scmp.eq.s32.totalorder %s29, 1
      %p52 = por %p50, %p51
      %p54 = scmp.ne.s32.totalorder %s37, %s53
      %p55 = scmp.eq.s32.totalorder %s29, 0
      %p56 = por %p54, %p55
      %s57 = ssub.s32 %s23, %s30
      %p58 = scmp.eq.s32.totalorder %s57, 0
      %s60 = sadd.s32 %s59, 1
      %s61 = scalar_select %p58, %s59, %s60
      %p64 = pneg %p58
      %p65 = scmp.eq.s32.totalorder %s23, 1
      %p66 = por %p64, %p65
      %p67 = scmp.ne.s32.totalorder %s59, %s62
      %p68 = scmp.eq.s32.totalorder %s23, 0
      %p69 = por %p67, %p68
      %p70 = scmp.ne.s32.totalorder %s59, %s62
      %p71 = scmp.eq.s32.totalorder %s28, 1
      %p72 = por %p70, %p71
      %p73 = scmp.ne.s32.totalorder %s62, %s63
      %p74 = scmp.eq.s32.totalorder %s28, 0
      %p75 = por %p73, %p74
      %p76 = scmp.ne.s32.totalorder %s62, %s63
      %p77 = scmp.eq.s32.totalorder %s29, 1
      %p78 = por %p76, %p77
      %p80 = scmp.ne.s32.totalorder %s63, %s79
      %p81 = scmp.eq.s32.totalorder %s29, 0
      %p82 = por %p80, %p81
      %s84 = sadd.s32 %s83, 1
      %p87 = scmp.eq.s32.totalorder %s23, 1
      %p88 = scmp.ne.s32.totalorder %s83, %s85
      %p89 = scmp.eq.s32.totalorder %s23, 0
      %p90 = por %p88, %p89
      %p91 = scmp.ne.s32.totalorder %s83, %s85
      %p92 = scmp.eq.s32.totalorder %s28, 1
      %p93 = por %p91, %p92
      %p94 = scmp.ne.s32.totalorder %s85, %s86
      %p95 = scmp.eq.s32.totalorder %s28, 0
      %p96 = por %p94, %p95
      %p97 = scmp.ne.s32.totalorder %s85, %s86
      %p98 = scmp.eq.s32.totalorder %s29, 1
      %p99 = por %p97, %p98
      %p101 = scmp.ne.s32.totalorder %s86, %s100
      %p102 = scmp.eq.s32.totalorder %s29, 0
      %p103 = por %p101, %p102
      %s105 = sadd.s32 %s104, 1
      %p108 = scmp.eq.s32.totalorder %s23, 1
      %p109 = scmp.ne.s32.totalorder %s104, %s106
      %p110 = scmp.eq.s32.totalorder %s23, 0
      %p111 = por %p109, %p110
      %p112 = scmp.ne.s32.totalorder %s104, %s106
      %p113 = scmp.eq.s32.totalorder %s28, 1
      %p114 = por %p112, %p113
      %p115 = scmp.ne.s32.totalorder %s106, %s107
      %p116 = scmp.eq.s32.totalorder %s28, 0
      %p117 = por %p115, %p116
      %p118 = scmp.ne.s32.totalorder %s106, %s107
      %p119 = scmp.eq.s32.totalorder %s29, 1
      %p120 = por %p118, %p119
      %p122 = scmp.ne.s32.totalorder %s107, %s121
      %p123 = scmp.eq.s32.totalorder %s29, 0
      %p124 = por %p122, %p123
      %s126 = sadd.s32 %s125, 1
      %p129 = scmp.eq.s32.totalorder %s23, 1
      %p130 = scmp.ne.s32.totalorder %s125, %s127
      %p131 = scmp.eq.s32.totalorder %s23, 0
      %p132 = por %p130, %p131
      %p133 = scmp.ne.s32.totalorder %s125, %s127
      %p134 = scmp.eq.s32.totalorder %s28, 1
      %p135 = por %p133, %p134
      %p136 = scmp.ne.s32.totalorder %s127, %s128
      %p137 = scmp.eq.s32.totalorder %s28, 0
      %p138 = por %p136, %p137
      %p139 = scmp.ne.s32.totalorder %s127, %s128
      %p140 = scmp.eq.s32.totalorder %s29, 1
      %p141 = por %p139, %p140
      %p143 = scmp.ne.s32.totalorder %s128, %s142
      %p144 = scmp.eq.s32.totalorder %s29, 0
      %p145 = por %p143, %p144
      %s147 = sadd.s32 %s146, 1
      %p150 = scmp.eq.s32.totalorder %s23, 1
      %p151 = scmp.ne.s32.totalorder %s146, %s148
      %p152 = scmp.eq.s32.totalorder %s23, 0
      %p153 = por %p151, %p152
      %p154 = scmp.ne.s32.totalorder %s146, %s148
      %p155 = scmp.eq.s32.totalorder %s28, 1
      %p156 = por %p154, %p155
      %p157 = scmp.ne.s32.totalorder %s148, %s149
      %p158 = scmp.eq.s32.totalorder %s28, 0
      %p159 = por %p157, %p158
      %p160 = scmp.ne.s32.totalorder %s148, %s149
      %p161 = scmp.eq.s32.totalorder %s29, 1
      %p162 = por %p160, %p161
      %p164 = scmp.ne.s32.totalorder %s149, %s163
      %p165 = scmp.eq.s32.totalorder %s29, 0
      %p166 = por %p164, %p165
      %s168 = sadd.s32 %s167, 1
      %p171 = scmp.eq.s32.totalorder %s23, 1
      %p172 = scmp.ne.s32.totalorder %s167, %s169
      %p173 = scmp.eq.s32.totalorder %s23, 0
      %p174 = por %p172, %p173
      %p175 = scmp.ne.s32.totalorder %s167, %s169
      %p176 = scmp.eq.s32.totalorder %s28, 1
      %p177 = por %p175, %p176
      %p178 = scmp.ne.s32.totalorder %s169, %s170
      %p179 = scmp.eq.s32.totalorder %s28, 0
      %p180 = por %p178, %p179
      %p181 = scmp.ne.s32.totalorder %s169, %s170
      %p182 = scmp.eq.s32.totalorder %s29, 1
      %p183 = por %p181, %p182
      %p185 = scmp.ne.s32.totalorder %s170, %s184
      %p186 = scmp.eq.s32.totalorder %s29, 0
      %p187 = por %p185, %p186
      %s189 = sadd.s32 %s188, 1
      %p192 = scmp.eq.s32.totalorder %s23, 1
      %p193 = scmp.ne.s32.totalorder %s188, %s190
      %p194 = scmp.eq.s32.totalorder %s23, 0
      %p195 = por %p193, %p194
      %p196 = scmp.ne.s32.totalorder %s188, %s190
      %p197 = scmp.eq.s32.totalorder %s28, 1
      %p198 = por %p196, %p197
      %p199 = scmp.ne.s32.totalorder %s190, %s191
      %p200 = scmp.eq.s32.totalorder %s28, 0
      %p201 = por %p199, %p200
      %p202 = scmp.ne.s32.totalorder %s190, %s191
      %p203 = scmp.eq.s32.totalorder %s29, 1
      %p204 = por %p202, %p203
      %p206 = scmp.ne.s32.totalorder %s191, %s205
      %p207 = scmp.eq.s32.totalorder %s29, 0
      %p208 = por %p206, %p207
      %s210 = sadd.s32 %s209, 1
      %p213 = scmp.eq.s32.totalorder %s23, 1
      %p214 = scmp.ne.s32.totalorder %s209, %s211
      %p215 = scmp.eq.s32.totalorder %s23, 0
      %p216 = por %p214, %p215
      %p217 = scmp.ne.s32.totalorder %s209, %s211
      %p218 = scmp.eq.s32.totalorder %s28, 1
      %p219 = por %p217, %p218
      %p220 = scmp.ne.s32.totalorder %s211, %s212
      %p221 = scmp.eq.s32.totalorder %s28, 0
      %p222 = por %p220, %p221
      %p223 = scmp.ne.s32.totalorder %s211, %s212
      %p224 = scmp.eq.s32.totalorder %s29, 1
      %p225 = por %p223, %p224
      %p227 = scmp.ne.s32.totalorder %s212, %s226
      %p228 = scmp.eq.s32.totalorder %s29, 0
      %p229 = por %p227, %p228
      %s231 = sadd.s32 %s230, 1
      %p234 = scmp.eq.s32.totalorder %s23, 1
      %p235 = scmp.ne.s32.totalorder %s230, %s232
      %p236 = scmp.eq.s32.totalorder %s23, 0
      %p237 = por %p235, %p236
      %p238 = scmp.ne.s32.totalorder %s230, %s232
      %p239 = scmp.eq.s32.totalorder %s28, 1
      %p240 = por %p238, %p239
      %p241 = scmp.ne.s32.totalorder %s232, %s233
      %p242 = scmp.eq.s32.totalorder %s28, 0
      %p243 = por %p241, %p242
      %p244 = scmp.ne.s32.totalorder %s232, %s233
      %p245 = scmp.eq.s32.totalorder %s29, 1
      %p246 = por %p244, %p245
      %p248 = scmp.ne.s32.totalorder %s233, %s247
      %p249 = scmp.eq.s32.totalorder %s29, 0
      %p250 = por %p248, %p249
      %s252 = sadd.s32 %s251, 1
      %p255 = scmp.eq.s32.totalorder %s23, 1
      %p256 = scmp.ne.s32.totalorder %s251, %s253
      %p257 = scmp.eq.s32.totalorder %s23, 0
      %p258 = por %p256, %p257
      %p259 = scmp.ne.s32.totalorder %s251, %s253
      %p260 = scmp.eq.s32.totalorder %s28, 1
      %p261 = por %p259, %p260
      %p262 = scmp.ne.s32.totalorder %s253, %s254
      %p263 = scmp.eq.s32.totalorder %s28, 0
      %p264 = por %p262, %p263
      %p265 = scmp.ne.s32.totalorder %s253, %s254
      %p266 = scmp.eq.s32.totalorder %s29, 1
      %p267 = por %p265, %p266
      %p269 = scmp.ne.s32.totalorder %s254, %s268
      %p270 = scmp.eq.s32.totalorder %s29, 0
      %p271 = por %p269, %p270
      %s273 = sadd.s32 %s272, 1
      %p276 = scmp.eq.s32.totalorder %s23, 1
      %p277 = scmp.ne.s32.totalorder %s272, %s274
      %p278 = scmp.eq.s32.totalorder %s23, 0
      %p279 = por %p277, %p278
      %p280 = scmp.ne.s32.totalorder %s272, %s274
      %p281 = scmp.eq.s32.totalorder %s28, 1
      %p282 = por %p280, %p281
      %p283 = scmp.ne.s32.totalorder %s274, %s275
      %p284 = scmp.eq.s32.totalorder %s28, 0
      %p285 = por %p283, %p284
      %p286 = scmp.ne.s32.totalorder %s274, %s275
      %p287 = scmp.eq.s32.totalorder %s29, 1
      %p288 = por %p286, %p287
      %p290 = scmp.ne.s32.totalorder %s275, %s289
      %p291 = scmp.eq.s32.totalorder %s29, 0
      %p292 = por %p290, %p291
      %s294 = sadd.s32 %s293, 1
      %p297 = scmp.eq.s32.totalorder %s23, 1
      %p298 = scmp.ne.s32.totalorder %s293, %s295
      %p299 = scmp.eq.s32.totalorder %s23, 0
      %p300 = por %p298, %p299
      %p301 = scmp.ne.s32.totalorder %s293, %s295
      %p302 = scmp.eq.s32.totalorder %s28, 1
      %p303 = por %p301, %p302
      %p304 = scmp.ne.s32.totalorder %s295, %s296
      %p305 = scmp.eq.s32.totalorder %s28, 0
      %p306 = por %p304, %p305
      %p307 = scmp.ne.s32.totalorder %s295, %s296
      %p308 = scmp.eq.s32.totalorder %s29, 1
      %p309 = por %p307, %p308
      %p311 = scmp.ne.s32.totalorder %s296, %s310
      %p312 = scmp.eq.s32.totalorder %s29, 0
      %p313 = por %p311, %p312
      %s315 = sadd.s32 %s314, 1
      %p318 = scmp.eq.s32.totalorder %s23, 1
      %p319 = scmp.ne.s32.totalorder %s314, %s316
      %p320 = scmp.eq.s32.totalorder %s23, 0
      %p321 = por %p319, %p320
      %p322 = scmp.ne.s32.totalorder %s314, %s316
      %p323 = scmp.eq.s32.totalorder %s28, 1
      %p324 = por %p322, %p323
      %p325 = scmp.ne.s32.totalorder %s316, %s317
      %p326 = scmp.eq.s32.totalorder %s28, 0
      %p327 = por %p325, %p326
      %p328 = scmp.ne.s32.totalorder %s316, %s317
      %p329 = scmp.eq.s32.totalorder %s29, 1
      %p330 = por %p328, %p329
      %p332 = scmp.ne.s32.totalorder %s317, %s331
      %p333 = scmp.eq.s32.totalorder %s29, 0
      %p334 = por %p332, %p333
      %s335 = ssub.s32 %s23, %s30
      %p336 = scmp.eq.s32.totalorder %s335, 0
      %s338 = sadd.s32 %s337, 1
      %s339 = scalar_select %p336, %s337, %s338
      %p342 = pneg %p336
      %p343 = scmp.eq.s32.totalorder %s23, 1
      %p344 = por %p342, %p343
      %p345 = scmp.ne.s32.totalorder %s337, %s340
      %p346 = scmp.eq.s32.totalorder %s23, 0
      %p347 = por %p345, %p346
      %p348 = scmp.ne.s32.totalorder %s337, %s340
      %p349 = scmp.eq.s32.totalorder %s28, 1
      %p350 = por %p348, %p349
      %p351 = scmp.ne.s32.totalorder %s340, %s341
      %p352 = scmp.eq.s32.totalorder %s28, 0
      %p353 = por %p351, %p352
      %p354 = scmp.ne.s32.totalorder %s340, %s341
      %p355 = scmp.eq.s32.totalorder %s29, 1
      %p356 = por %p354, %p355
      %p358 = scmp.ne.s32.totalorder %s341, %s357
      %p359 = scmp.eq.s32.totalorder %s29, 0
      %p360 = por %p358, %p359
      %p361 = scmp.le.s32.totalorder 1, %s23
      %p362 = scmp.lt.s32.totalorder %s23, 3
      %p363 = pnand %p361, %p362
      %p364 = pneg %p363
      // Predicated region
      $region9: #{tpu_custom_call.1} parent=5 // pred_check
        _
      $region10: #{tpu_custom_call.1} parent=5 // pred_check_branch
        %366 = sbr.rel (%p363) target = $region12
      $region11: #{tpu_custom_call.1} parent=5 // pred_region
        %s367 = ssub.s32 %s23, 1
        // Predicated region
        $region13: #{tpu_custom_call.1} parent=11 // pred_check
          %p368 = pneg %p96
        $region14: #{tpu_custom_call.1} parent=11 // pred_check_branch
          %370 = sbr.rel (%p368) target = $region16
        $region15: #{tpu_custom_call.1} parent=11 // pred_region
          _
        $region16: #{tpu_custom_call.1} parent=11 // pred_fallthru
          _
        // Predicated region
        $region17: #{tpu_custom_call.1} parent=11 // pred_check
          %p371 = pneg %p117
        $region18: #{tpu_custom_call.1} parent=11 // pred_check_branch
          %373 = sbr.rel (%p371) target = $region20
        $region19: #{tpu_custom_call.1} parent=11 // pred_region
          _
        $region20: #{tpu_custom_call.1} parent=11 // pred_fallthru
          _
        // Predicated region
        $region21: #{tpu_custom_call.1} parent=11 // pred_check
          %p374 = pneg %p138
        $region22: #{tpu_custom_call.1} parent=11 // pred_check_branch
          %376 = sbr.rel (%p374) target = $region24
        $region23: #{tpu_custom_call.1} parent=11 // pred_region
          _
        $region24: #{tpu_custom_call.1} parent=11 // pred_fallthru
          _
        // Predicated region
        $region25: #{tpu_custom_call.1} parent=11 // pred_check
          %p377 = pneg %p159
        $region26: #{tpu_custom_call.1} parent=11 // pred_check_branch
          %379 = sbr.rel (%p377) target = $region28
        $region27: #{tpu_custom_call.1} parent=11 // pred_region
          _
        $region28: #{tpu_custom_call.1} parent=11 // pred_fallthru
          _
        // Predicated region
        $region29: #{tpu_custom_call.1} parent=11 // pred_check
          %p380 = pneg %p180
        $region30: #{tpu_custom_call.1} parent=11 // pred_check_branch
          %382 = sbr.rel (%p380) target = $region32
        $region31: #{tpu_custom_call.1} parent=11 // pred_region
          _
        $region32: #{tpu_custom_call.1} parent=11 // pred_fallthru
          _
        // Predicated region
        $region33: #{tpu_custom_call.1} parent=11 // pred_check
          %p383 = pneg %p201
        $region34: #{tpu_custom_call.1} parent=11 // pred_check_branch
          %385 = sbr.rel (%p383) target = $region36
        $region35: #{tpu_custom_call.1} parent=11 // pred_region
          _
        $region36: #{tpu_custom_call.1} parent=11 // pred_fallthru
          _
        // Predicated region
        $region37: #{tpu_custom_call.1} parent=11 // pred_check
          %p386 = pneg %p222
        $region38: #{tpu_custom_call.1} parent=11 // pred_check_branch
          %388 = sbr.rel (%p386) target = $region40
        $region39: #{tpu_custom_call.1} parent=11 // pred_region
          _
        $region40: #{tpu_custom_call.1} parent=11 // pred_fallthru
          _
        // Predicated region
        $region41: #{tpu_custom_call.1} parent=11 // pred_check
          %p389 = pneg %p243
        $region42: #{tpu_custom_call.1} parent=11 // pred_check_branch
          %391 = sbr.rel (%p389) target = $region44
        $region43: #{tpu_custom_call.1} parent=11 // pred_region
          _
        $region44: #{tpu_custom_call.1} parent=11 // pred_fallthru
          _
        // Predicated region
        $region45: #{tpu_custom_call.1} parent=11 // pred_check
          %p392 = pneg %p264
        $region46: #{tpu_custom_call.1} parent=11 // pred_check_branch
          %394 = sbr.rel (%p392) target = $region48
        $region47: #{tpu_custom_call.1} parent=11 // pred_region
          _
        $region48: #{tpu_custom_call.1} parent=11 // pred_fallthru
          _
        // Predicated region
        $region49: #{tpu_custom_call.1} parent=11 // pred_check
          %p395 = pneg %p285
        $region50: #{tpu_custom_call.1} parent=11 // pred_check_branch
          %397 = sbr.rel (%p395) target = $region52
        $region51: #{tpu_custom_call.1} parent=11 // pred_region
          _
        $region52: #{tpu_custom_call.1} parent=11 // pred_fallthru
          _
        // Predicated region
        $region53: #{tpu_custom_call.1} parent=11 // pred_check
          %p398 = pneg %p306
        $region54: #{tpu_custom_call.1} parent=11 // pred_check_branch
          %400 = sbr.rel (%p398) target = $region56
        $region55: #{tpu_custom_call.1} parent=11 // pred_region
          _
        $region56: #{tpu_custom_call.1} parent=11 // pred_fallthru
          _
        // Predicated region
        $region57: #{tpu_custom_call.1} parent=11 // pred_check
          %p401 = pneg %p327
        $region58: #{tpu_custom_call.1} parent=11 // pred_check_branch
          %403 = sbr.rel (%p401) target = $region60
        $region59: #{tpu_custom_call.1} parent=11 // pred_region
          _
        $region60: #{tpu_custom_call.1} parent=11 // pred_fallthru
          _
      $region12: #{tpu_custom_call.1} parent=5 // pred_fallthru
        _
      %p404 = scmp.lt.s32.totalorder %s23, 2
      // Predicated region
      $region61: #{tpu_custom_call.1} parent=5 // pred_check
        %p405 = pneg %p404
      $region62: #{tpu_custom_call.1} parent=5 // pred_check_branch
        %407 = sbr.rel (%p405) target = $region64
      $region63: #{tpu_custom_call.1} parent=5 // pred_region
        // Predicated region
        $region65: #{tpu_custom_call.1} parent=63 // pred_check
          %p408 = pneg %p43
        $region66: #{tpu_custom_call.1} parent=63 // pred_check_branch
          %410 = sbr.rel (%p408) target = $region68
        $region67: #{tpu_custom_call.1} parent=63 // pred_region
          %p411 = scmp.lt.s32.totalorder %s23, 1
          %s412 = scalar_select %p411, %s23, 1
          %s413 = smul.addr %s412, 2
          %s414 = smul.addr %s413, 8
          %s415 = scalar_lea.vmem %s0, %s414
        $region68: #{tpu_custom_call.1} parent=63 // pred_fallthru
          _
        // Predicated region
        $region69: #{tpu_custom_call.1} parent=63 // pred_check
          %p416 = pneg %p69
        $region70: #{tpu_custom_call.1} parent=63 // pred_check_branch
          %418 = sbr.rel (%p416) target = $region72
        $region71: #{tpu_custom_call.1} parent=63 // pred_region
          %p419 = scmp.lt.s32.totalorder %s23, 1
          %s420 = scalar_select %p419, %s23, 1
          %s421 = smul.addr %s420, 8
          %s422 = scalar_lea.vmem %s1, %s421
        $region72: #{tpu_custom_call.1} parent=63 // pred_fallthru
          _
      $region64: #{tpu_custom_call.1} parent=5 // pred_fallthru
        _
      %p423 = scmp.le.s32.totalorder 1, %s23
      %p424 = scmp.lt.s32.totalorder %s23, 3
      %p425 = pnand %p423, %p424
      %p426 = pneg %p425
      // Predicated region
      $region73: #{tpu_custom_call.1} parent=5 // pred_check
        _
      $region74: #{tpu_custom_call.1} parent=5 // pred_check_branch
        %428 = sbr.rel (%p425) target = $region76
      $region75: #{tpu_custom_call.1} parent=5 // pred_region
        %s429 = ssub.s32 %s23, 1
        %p430 = scmp.lt.s32.totalorder %s28, 1
        %s431 = scalar_select %p430, %s28, 1
        %s432 = smul.addr %s431, 2
        %s433 = smul.addr %s432, 8
        %s434 = scalar_lea.vmem %s0, %s433
        %p435 = pneg %p49
        %p436 = pneg %p46
        %p437 = scmp.lt.s32.totalorder %s28, 1
        %s438 = scalar_select %p437, %s28, 1
        %s439 = smul.addr %s438, 8
        %s440 = scalar_lea.vmem %s1, %s439
        %p441 = pneg %p75
        %p442 = pneg %p72
        %p443 = pneg %p96
        %p444 = pneg %p93
        %p445 = pneg %p117
        %p446 = pneg %p114
        %p447 = pneg %p138
        %p448 = pneg %p135
        %p449 = pneg %p159
        %p450 = pneg %p156
        %p451 = pneg %p180
        %p452 = pneg %p177
        %p453 = pneg %p201
        %p454 = pneg %p198
        %p455 = pneg %p222
        %p456 = pneg %p219
        %p457 = pneg %p243
        %p458 = pneg %p240
        %p459 = pneg %p264
        %p460 = pneg %p261
        %p461 = pneg %p285
        %p462 = pneg %p282
        %p463 = pneg %p306
        %p464 = pneg %p303
        %p465 = pneg %p327
        %p466 = pneg %p324
        %p467 = pneg %p353
        %p468 = pneg %p350
        %s469 = sand.u32 %s340, 1
        %s470 = scalar_lea.sflag [#allocation3], %s469
        %s471 = sand.u32 %s340, 1
        %s472 = smul.addr %s471, 8
        %s473 = scalar_lea.vmem [#allocation2], %s472
        %p474 = scmp.lt.s32.totalorder %s28, 1
        %s475 = scalar_select %p474, %s28, 1
        %s476 = smul.addr %s475, 2
        %s477 = smul.addr %s476, 8
        %s478 = scalar_lea.vmem %s0, %s477
        %p479 = scmp.lt.s32.totalorder %s28, 1
        %s480 = scalar_select %p479, %s28, 1
        %s481 = smul.addr %s480, 8
        %s482 = scalar_lea.vmem %s1, %s481
        %v483 = vld [vmem:[%s478] sm:$0xff]
        %v484 = vld [vmem:[%s478 + $0x8] sm:$0xff]
        %v485 = vld [vmem:[%s482] sm:$0xff]
        %v486 = vld [vmem:[%s2] sm:$0xff]
        %v487 = vld [vmem:[%s2 + $0x8] sm:$0xff]
        %v488 = vld [vmem:[%s2 + $0x10] sm:$0xff]
        %v489 = vld [vmem:[%s2 + $0x18] sm:$0xff]
        %v490 = vld [vmem:[%s2 + $0x20] sm:$0xff]
        %v491 = vld [vmem:[%s2 + $0x28] sm:$0xff]
        %v492 = vld [vmem:[%s2 + $0x30] sm:$0xff]
        %v493 = vld [vmem:[%s2 + $0x38] sm:$0xff]
        %v494 = vld [vmem:[%s3] sm:$0xff]
        %v495 = vld [vmem:[%s3 + $0x8] sm:$0xff]
        %v496 = vld [vmem:[%s3 + $0x10] sm:$0xff]
        %v497 = vld [vmem:[%s3 + $0x18] sm:$0xff]
        %v498 = vld [vmem:[%s3 + $0x20] sm:$0xff]
        %v499 = vld [vmem:[%s3 + $0x28] sm:$0xff]
        %v500 = vld [vmem:[%s3 + $0x30] sm:$0xff]
        %v501 = vld [vmem:[%s3 + $0x38] sm:$0xff]
        %v502 = vld [vmem:[%s3 + $0x40] sm:$0xff]
        %v503 = vld [vmem:[%s3 + $0x48] sm:$0xff]
        %v504 = vld [vmem:[%s3 + $0x50] sm:$0xff]
        %v505 = vld [vmem:[%s3 + $0x58] sm:$0xff]
        %v506 = vld [vmem:[%s3 + $0x60] sm:$0xff]
        %v507 = vld [vmem:[%s3 + $0x68] sm:$0xff]
        %v508 = vld [vmem:[%s3 + $0x70] sm:$0xff]
        %v509 = vld [vmem:[%s3 + $0x78] sm:$0xff]
        %v510 = vld [vmem:[%s4] sm:$0xff]
        %v511 = vld [vmem:[%s4 + $0x8] sm:$0xff]
        %v512 = vld [vmem:[%s4 + $0x10] sm:$0xff]
        %v513 = vld [vmem:[%s4 + $0x18] sm:$0xff]
        %v514 = vld [vmem:[%s5] sm:$0xff]
        %v515 = vld [vmem:[%s5 + $0x8] sm:$0xff]
        %v516 = vld [vmem:[%s5 + $0x10] sm:$0xff]
        %v517 = vld [vmem:[%s5 + $0x18] sm:$0xff]
        %v518 = vld [vmem:[%s5 + $0x20] sm:$0xff]
        %v519 = vld [vmem:[%s5 + $0x28] sm:$0xff]
        %v520 = vld [vmem:[%s5 + $0x30] sm:$0xff]
        %v521 = vld [vmem:[%s5 + $0x38] sm:$0xff]
        %v522 = vld [vmem:[%s5 + $0x40] sm:$0xff]
        %v523 = vld [vmem:[%s5 + $0x48] sm:$0xff]
        %v524 = vld [vmem:[%s5 + $0x50] sm:$0xff]
        %v525 = vld [vmem:[%s5 + $0x58] sm:$0xff]
        %v526 = vld [vmem:[%s6] sm:$0xff]
        %v527 = vld [vmem:[%s6 + $0x8] sm:$0xff]
        %v528 = vld [vmem:[%s7] sm:$0x1]
        %v529 = vld [vmem:[%s7 + $0x1] sm:$0x1]
        %v530 = vld [vmem:[%s7 + $0x2] sm:$0x1]
        %v531 = vld [vmem:[%s7 + $0x3] sm:$0x1]
        %v532 = vld [vmem:[%s7 + $0x4] sm:$0x1]
        %v533 = vld [vmem:[%s7 + $0x5] sm:$0x1]
        %v534 = vld [vmem:[%s7 + $0x6] sm:$0x1]
        %v535 = vld [vmem:[%s7 + $0x7] sm:$0x1]
        %v536 = vld [vmem:[%s7 + $0x8] sm:$0x1]
        %v537 = vld [vmem:[%s7 + $0x9] sm:$0x1]
        %vm538 = vcmask 261120
        %v539 = vsel %vm538, %v483, 0.0
        %540 = vadd.xlane.f32.xlu0 %v539
        %v541 = vpop.xlane.xlu0 %540
        %v542 = vsel %vm538, %v484, 0.0
        %543 = vadd.xlane.f32.xlu0 %v542
        %v544 = vpop.xlane.xlu0 %543
        %v545 = vrcp.pop 32.0
        %v546 = vmul.f32 32.0, %v545
        %v547 = vsub.f32 1.0, %v546
        %v548 = vmul.f32 %v545, %v547
        %v549 = vadd.f32 %v545, %v548
        %vm550 = vweird.f32 %v545
        %v551 = vsel %vm550, %v545, %v549
        %v552 = vmul.f32 %v541, %v551
        %v553 = vmul.f32 %v544, %v551
        %v554 = vsub.f32 %v483, %v552
        %v555 = vsub.f32 %v484, %v553
        %v556 = vmul.f32 %v554, %v554
        %v557 = vmul.f32 %v555, %v555
        %v558 = vsel %vm538, %v556, 0.0
        %559 = vadd.xlane.f32.xlu0 %v558
        %v560 = vpop.xlane.xlu0 %559
        %v561 = vsel %vm538, %v557, 0.0
        %562 = vadd.xlane.f32.xlu0 %v561
        %v563 = vpop.xlane.xlu0 %562
        %v564 = vmul.f32 %v560, %v551
        %v565 = vmul.f32 %v563, %v551
        %v566 = vadd.f32 %v564, 1e-05
        %v567 = vadd.f32 %v565, 1e-05
        %v568 = vrsqrt.pop %v566
        %v569 = vmul.f32 %v568, %v566
        %v570 = vmul.f32 %v569, %v568
        %v571 = vmul.f32 0.5, %v570
        %v572 = vsub.f32 1.5, %v571
        %v573 = vmul.f32 %v568, %v572
        %vm574 = vweird.f32 %v566
        %vm575 = vweird.f32 %v568
        %vm576 = vmor %vm574, %vm575
        %v577 = vsel %vm576, %v568, %v573
        %v578 = vrsqrt.pop %v567
        %v579 = vmul.f32 %v578, %v567
        %v580 = vmul.f32 %v579, %v578
        %v581 = vmul.f32 0.5, %v580
        %v582 = vsub.f32 1.5, %v581
        %v583 = vmul.f32 %v578, %v582
        %vm584 = vweird.f32 %v567
        %vm585 = vweird.f32 %v578
        %vm586 = vmor %vm584, %vm585
        %v587 = vsel %vm586, %v578, %v583
        %v588 = vmul.f32 %v554, %v577
        %v589 = vmul.f32 %v555, %v587
        %v590 = vperm.slane %v526, 0
        %v591 = vmul.f32 %v588, %v590
        %v592 = vmul.f32 %v589, %v590
        %v593 = vperm.slane %v526, 1
        %v594 = vadd.f32 %v591, %v593
        %v595 = vadd.f32 %v592, %v593
        %v596 = vsel %vm538, %v485, 0.0
        %597 = vadd.xlane.f32.xlu0 %v596
        %v598 = vpop.xlane.xlu0 %597
        %v599 = vmul.f32 %v598, %v551
        %v600 = vsub.f32 %v485, %v599
        %v601 = vmul.f32 %v600, %v600
        %v602 = vsel %vm538, %v601, 0.0
        %603 = vadd.xlane.f32.xlu0 %v602
        %v604 = vpop.xlane.xlu0 %603
        %v605 = vmul.f32 %v604, %v551
        %v606 = vadd.f32 %v605, 1e-05
        %v607 = vrsqrt.pop %v606
        %v608 = vmul.f32 %v607, %v606
        %v609 = vmul.f32 %v608, %v607
        %v610 = vmul.f32 0.5, %v609
        %v611 = vsub.f32 1.5, %v610
        %v612 = vmul.f32 %v607, %v611
        %vm613 = vweird.f32 %v606
        %vm614 = vweird.f32 %v607
        %vm615 = vmor %vm613, %vm614
        %v616 = vsel %vm615, %v607, %v612
        %v617 = vmul.f32 %v600, %v616
        %v618 = vperm.slane %v526, 2
        %v619 = vmul.f32 %v617, %v618
        %v620 = vperm.slane %v526, 3
        %v621 = vadd.f32 %v619, %v620
        %v624 = vperm.slane %v528, 0
        %v625 = vperm.slane %v529, 0
        %v629 = vsel %vm538, %v621, 0
        %631 = vmatpush.msra.mxu0 0.0
        %632 = vmatpush.msra.mxu0 0.0
        %633 = vmatpush.msra.mxu0 0.0
        %634 = vmatpush.msra.mxu0 0.0
        %635 = vmatpush.msra.mxu0 0.0
        %636 = vmatpush.msra.mxu0 0.0
        %637 = vmatpush.msra.mxu0 0.0
        %638 = vmatpush.msra.mxu0 0.0
        %639 = vmatpush.msra.mxu0 0.0
        %640 = vmatpush.msra.mxu0 0.0
        %641 = vmatpush.msra.mxu0 0.0
        %642 = vmatpush.msra.mxu0 0.0
        %643 = vmatpush.msra.mxu0 %v489
        %644 = vmatpush.msra.mxu0 %v488
        %645 = vmatpush.msra.mxu0 %v487
        %646 = vmatpush.msra.mxu0 %v486
        %647 = vmatmul.f32.gmra.mxu0 %v629
        %v648 = vpop.f32.mrf.mxu0
        %v649 = vadd.f32 %v624, %v648
        %650 = vdwg.mxu0
        %651 = vmatpush.msra.mxu0 0.0
        %652 = vmatpush.msra.mxu0 0.0
        %653 = vmatpush.msra.mxu0 0.0
        %654 = vmatpush.msra.mxu0 0.0
        %655 = vmatpush.msra.mxu0 0.0
        %656 = vmatpush.msra.mxu0 0.0
        %657 = vmatpush.msra.mxu0 0.0
        %658 = vmatpush.msra.mxu0 0.0
        %659 = vmatpush.msra.mxu0 0.0
        %660 = vmatpush.msra.mxu0 0.0
        %661 = vmatpush.msra.mxu0 0.0
        %662 = vmatpush.msra.mxu0 0.0
        %663 = vmatpush.msra.mxu0 %v493
        %664 = vmatpush.msra.mxu0 %v492
        %665 = vmatpush.msra.mxu0 %v491
        %666 = vmatpush.msra.mxu0 %v490
        %667 = vmatmul.f32.gmra.mxu0 %v629
        %v668 = vpop.f32.mrf.mxu0
        %v669 = vadd.f32 %v625, %v668
        %670 = vdwg.mxu0
        %v671 = vmul.f32 %v649, 0.25
        %v672 = vmul.f32 %v669, 0.25
        %v674 = vsel %vm538, %v594, 0
        %v677 = vsel %vm538, %v595, 0
        %679 = vmatpush.msra.mxu0 0.0
        %680 = vmatpush.msra.mxu0 0.0
        %681 = vmatpush.msra.mxu0 0.0
        %682 = vmatpush.msra.mxu0 0.0
        %683 = vmatpush.msra.mxu0 0.0
        %684 = vmatpush.msra.mxu0 0.0
        %685 = vmatpush.msra.mxu0 0.0
        %686 = vmatpush.msra.mxu0 0.0
        %687 = vmatpush.msra.mxu0 0.0
        %688 = vmatpush.msra.mxu0 0.0
        %689 = vmatpush.msra.mxu0 0.0
        %690 = vmatpush.msra.mxu0 0.0
        %691 = vmatpush.msra.mxu0 %v497
        %692 = vmatpush.msra.mxu0 %v496
        %693 = vmatpush.msra.mxu0 %v495
        %694 = vmatpush.msra.mxu0 %v494
        %695 = vmatmul.f32.gmra.mxu0 %v674
        %v696 = vpop.f32.mrf.mxu0
        %v697 = vadd.f32 0.0, %v696
        %698 = vmatmul.f32.gmra.mxu0 %v677
        %v699 = vpop.f32.mrf.mxu0
        %v700 = vadd.f32 0.0, %v699
        %701 = vdwg.mxu0
        %702 = vmatpush.msra.mxu0 0.0
        %703 = vmatpush.msra.mxu0 0.0
        %704 = vmatpush.msra.mxu0 0.0
        %705 = vmatpush.msra.mxu0 0.0
        %706 = vmatpush.msra.mxu0 0.0
        %707 = vmatpush.msra.mxu0 0.0
        %708 = vmatpush.msra.mxu0 0.0
        %709 = vmatpush.msra.mxu0 0.0
        %710 = vmatpush.msra.mxu0 0.0
        %711 = vmatpush.msra.mxu0 0.0
        %712 = vmatpush.msra.mxu0 0.0
        %713 = vmatpush.msra.mxu0 0.0
        %714 = vmatpush.msra.mxu0 %v501
        %715 = vmatpush.msra.mxu0 %v500
        %716 = vmatpush.msra.mxu0 %v499
        %717 = vmatpush.msra.mxu0 %v498
        %718 = vmatmul.f32.gmra.mxu0 %v674
        %v719 = vpop.f32.mrf.mxu0
        %v720 = vadd.f32 0.0, %v719
        %721 = vmatmul.f32.gmra.mxu0 %v677
        %v722 = vpop.f32.mrf.mxu0
        %v723 = vadd.f32 0.0, %v722
        %724 = vdwg.mxu0
        %725 = vmatpush.msra.mxu0 0.0
        %726 = vmatpush.msra.mxu0 0.0
        %727 = vmatpush.msra.mxu0 0.0
        %728 = vmatpush.msra.mxu0 0.0
        %729 = vmatpush.msra.mxu0 0.0
        %730 = vmatpush.msra.mxu0 0.0
        %731 = vmatpush.msra.mxu0 0.0
        %732 = vmatpush.msra.mxu0 0.0
        %733 = vmatpush.msra.mxu0 0.0
        %734 = vmatpush.msra.mxu0 0.0
        %735 = vmatpush.msra.mxu0 0.0
        %736 = vmatpush.msra.mxu0 0.0
        %737 = vmatpush.msra.mxu0 %v505
        %738 = vmatpush.msra.mxu0 %v504
        %739 = vmatpush.msra.mxu0 %v503
        %740 = vmatpush.msra.mxu0 %v502
        %741 = vmatmul.f32.gmra.mxu0 %v674
        %v742 = vpop.f32.mrf.mxu0
        %v743 = vadd.f32 0.0, %v742
        %744 = vmatmul.f32.gmra.mxu0 %v677
        %v745 = vpop.f32.mrf.mxu0
        %v746 = vadd.f32 0.0, %v745
        %747 = vdwg.mxu0
        %748 = vmatpush.msra.mxu0 0.0
        %749 = vmatpush.msra.mxu0 0.0
        %750 = vmatpush.msra.mxu0 0.0
        %751 = vmatpush.msra.mxu0 0.0
        %752 = vmatpush.msra.mxu0 0.0
        %753 = vmatpush.msra.mxu0 0.0
        %754 = vmatpush.msra.mxu0 0.0
        %755 = vmatpush.msra.mxu0 0.0
        %756 = vmatpush.msra.mxu0 0.0
        %757 = vmatpush.msra.mxu0 0.0
        %758 = vmatpush.msra.mxu0 0.0
        %759 = vmatpush.msra.mxu0 0.0
        %760 = vmatpush.msra.mxu0 %v509
        %761 = vmatpush.msra.mxu0 %v508
        %762 = vmatpush.msra.mxu0 %v507
        %763 = vmatpush.msra.mxu0 %v506
        %764 = vmatmul.f32.gmra.mxu0 %v674
        %v765 = vpop.f32.mrf.mxu0
        %v766 = vadd.f32 0.0, %v765
        %767 = vmatmul.f32.gmra.mxu0 %v677
        %v768 = vpop.f32.mrf.mxu0
        %v769 = vadd.f32 0.0, %v768
        %770 = vdwg.mxu0
        %v773 = vperm.slane %v530, 0
        %v774 = vperm.slane %v531, 0
        %v777 = vadd.f32 %v697, %v773
        %v778 = vadd.f32 %v700, %v773
        %v779 = vadd.f32 %v720, %v774
        %v780 = vadd.f32 %v723, %v774
        %v783 = vperm.slane %v532, 0
        %v784 = vperm.slane %v533, 0
        %v787 = vadd.f32 %v743, %v783
        %v788 = vadd.f32 %v746, %v783
        %v789 = vadd.f32 %v766, %v784
        %v790 = vadd.f32 %v769, %v784
        %vm791 = vcmask 130048
        %v793 = vsel %vm791, %v671, 0
        %v796 = vsel %vm791, %v777, 0
        %v799 = vsel %vm791, %v778, 0
        %801 = vmatpush.xpose.msra.mxu0 0.0
        %802 = vmatpush.xpose.msra.mxu0 0.0
        %803 = vmatpush.xpose.msra.mxu0 0.0
        %804 = vmatpush.xpose.msra.mxu0 0.0
        %805 = vmatpush.xpose.msra.mxu0 0.0
        %806 = vmatpush.xpose.msra.mxu0 0.0
        %807 = vmatpush.xpose.msra.mxu0 0.0
        %808 = vmatpush.xpose.msra.mxu0 0.0
        %809 = vmatpush.xpose.msra.mxu0 0.0
        %810 = vmatpush.xpose.msra.mxu0 0.0
        %811 = vmatpush.xpose.msra.mxu0 0.0
        %812 = vmatpush.xpose.msra.mxu0 0.0
        %813 = vmatpush.xpose.msra.mxu0 0.0
        %814 = vmatpush.xpose.msra.mxu0 0.0
        %815 = vmatpush.xpose.msra.mxu0 %v799
        %816 = vmatpush.xpose.msra.mxu0 %v796
        %817 = vmatmul.f32.gmra.mxu0 %v793
        %v818 = vpop.f32.mrf.mxu0
        %v819 = vadd.f32 0.0, %v818
        %820 = vdwg.mxu0
        %v822 = vsel %vm791, %v672, 0
        %v825 = vsel %vm791, %v779, 0
        %v828 = vsel %vm791, %v780, 0
        %830 = vmatpush.xpose.msra.mxu0 0.0
        %831 = vmatpush.xpose.msra.mxu0 0.0
        %832 = vmatpush.xpose.msra.mxu0 0.0
        %833 = vmatpush.xpose.msra.mxu0 0.0
        %834 = vmatpush.xpose.msra.mxu0 0.0
        %835 = vmatpush.xpose.msra.mxu0 0.0
        %836 = vmatpush.xpose.msra.mxu0 0.0
        %837 = vmatpush.xpose.msra.mxu0 0.0
        %838 = vmatpush.xpose.msra.mxu0 0.0
        %839 = vmatpush.xpose.msra.mxu0 0.0
        %840 = vmatpush.xpose.msra.mxu0 0.0
        %841 = vmatpush.xpose.msra.mxu0 0.0
        %842 = vmatpush.xpose.msra.mxu0 0.0
        %843 = vmatpush.xpose.msra.mxu0 0.0
        %844 = vmatpush.xpose.msra.mxu0 %v828
        %845 = vmatpush.xpose.msra.mxu0 %v825
        %846 = vmatmul.f32.gmra.mxu0 %v822
        %v847 = vpop.f32.mrf.mxu0
        %v848 = vadd.f32 0.0, %v847
        %849 = vdwg.mxu0
        %v852 = vperm.slane %v534, 0
        %v853 = vperm.slane %v535, 0
        %v856 = vmul.f32 %v671, %v852
        %v857 = vmul.f32 %v672, %v853
        %v858 = vsel %vm791, %v856, 0.0
        %859 = vadd.xlane.f32.xlu0 %v858
        %v860 = vpop.xlane.xlu0 %859
        %v861 = vsel %vm791, %v857, 0.0
        %862 = vadd.xlane.f32.xlu0 %v861
        %v863 = vpop.xlane.xlu0 %862
        %v864 = vsel %vm791, %v819, -inf
        %865 = vmax.xlane.f32.xlu0 %v864
        %v866 = vpop.xlane.xlu0 %865
        %v867 = vsel %vm791, %v848, -inf
        %868 = vmax.xlane.f32.xlu0 %v867
        %v869 = vpop.xlane.xlu0 %868
        %v870 = vmax.f32 %v866, %v860
        %v871 = vmax.f32 %v869, %v863
        %v872 = vsub.f32 %v819, %v870
        %v873 = vsub.f32 %v848, %v871
        %v874 = vmul.f32 %v872, 1.442695
        %v875 = vpow.pop %v874
        %v876 = vmul.f32 %v873, 1.442695
        %v877 = vpow.pop %v876
        %v878 = vsub.f32 %v860, %v870
        %v879 = vsub.f32 %v863, %v871
        %v880 = vmul.f32 %v878, 1.442695
        %v881 = vpow.pop %v880
        %v882 = vmul.f32 %v879, 1.442695
        %v883 = vpow.pop %v882
        %v884 = vsel %vm791, %v875, 0.0
        %885 = vadd.xlane.f32.xlu0 %v884
        %v886 = vpop.xlane.xlu0 %885
        %v887 = vsel %vm791, %v877, 0.0
        %888 = vadd.xlane.f32.xlu0 %v887
        %v889 = vpop.xlane.xlu0 %888
        %v890 = vadd.f32 %v886, %v881
        %v891 = vadd.f32 %v889, %v883
        %v892 = vrcp.pop %v890
        %v893 = vrcp.pop %v891
        %v896 = vperm.slane %v536, 0
        %v897 = vperm.slane %v537, 0
        %v900 = vmul.f32 %v881, %v896
        %v901 = vmul.f32 %v883, %v897
        %v903 = vsel %vm791, %v875, 0
        %905 = vmatpush.msra.mxu0 0.0
        %906 = vmatpush.msra.mxu0 0.0
        %907 = vmatpush.msra.mxu0 0.0
        %908 = vmatpush.msra.mxu0 0.0
        %909 = vmatpush.msra.mxu0 0.0
        %910 = vmatpush.msra.mxu0 0.0
        %911 = vmatpush.msra.mxu0 0.0
        %912 = vmatpush.msra.mxu0 0.0
        %913 = vmatpush.msra.mxu0 0.0
        %914 = vmatpush.msra.mxu0 0.0
        %915 = vmatpush.msra.mxu0 0.0
        %916 = vmatpush.msra.mxu0 0.0
        %917 = vmatpush.msra.mxu0 0.0
        %918 = vmatpush.msra.mxu0 0.0
        %919 = vmatpush.msra.mxu0 %v788
        %920 = vmatpush.msra.mxu0 %v787
        %921 = vmatmul.f32.gmra.mxu0 %v903
        %v922 = vpop.f32.mrf.mxu0
        %v923 = vadd.f32 %v900, %v922
        %924 = vdwg.mxu0
        %v926 = vsel %vm791, %v877, 0
        %928 = vmatpush.msra.mxu0 0.0
        %929 = vmatpush.msra.mxu0 0.0
        %930 = vmatpush.msra.mxu0 0.0
        %931 = vmatpush.msra.mxu0 0.0
        %932 = vmatpush.msra.mxu0 0.0
        %933 = vmatpush.msra.mxu0 0.0
        %934 = vmatpush.msra.mxu0 0.0
        %935 = vmatpush.msra.mxu0 0.0
        %936 = vmatpush.msra.mxu0 0.0
        %937 = vmatpush.msra.mxu0 0.0
        %938 = vmatpush.msra.mxu0 0.0
        %939 = vmatpush.msra.mxu0 0.0
        %940 = vmatpush.msra.mxu0 0.0
        %941 = vmatpush.msra.mxu0 0.0
        %942 = vmatpush.msra.mxu0 %v790
        %943 = vmatpush.msra.mxu0 %v789
        %944 = vmatmul.f32.gmra.mxu0 %v926
        %v945 = vpop.f32.mrf.mxu0
        %v946 = vadd.f32 %v901, %v945
        %947 = vdwg.mxu0
        %v948 = vmul.f32 %v923, %v892
        %v949 = vmul.f32 %v946, %v893
        %v951 = vsel %vm791, %v948, 0
        %953 = vmatpush.msra.mxu0 0.0
        %954 = vmatpush.msra.mxu0 0.0
        %955 = vmatpush.msra.mxu0 0.0
        %956 = vmatpush.msra.mxu0 0.0
        %957 = vmatpush.msra.mxu0 0.0
        %958 = vmatpush.msra.mxu0 0.0
        %959 = vmatpush.msra.mxu0 0.0
        %960 = vmatpush.msra.mxu0 0.0
        %961 = vmatpush.msra.mxu0 0.0
        %962 = vmatpush.msra.mxu0 0.0
        %963 = vmatpush.msra.mxu0 0.0
        %964 = vmatpush.msra.mxu0 0.0
        %965 = vmatpush.msra.mxu0 0.0
        %966 = vmatpush.msra.mxu0 0.0
        %967 = vmatpush.msra.mxu0 %v511
        %968 = vmatpush.msra.mxu0 %v510
        %969 = vmatmul.f32.gmra.mxu0 %v951
        %v970 = vpop.f32.mrf.mxu0
        %v971 = vadd.f32 0.0, %v970
        %972 = vdwg.mxu0
        %v974 = vsel %vm791, %v949, 0
        %976 = vmatpush.msra.mxu0 0.0
        %977 = vmatpush.msra.mxu0 0.0
        %978 = vmatpush.msra.mxu0 0.0
        %979 = vmatpush.msra.mxu0 0.0
        %980 = vmatpush.msra.mxu0 0.0
        %981 = vmatpush.msra.mxu0 0.0
        %982 = vmatpush.msra.mxu0 0.0
        %983 = vmatpush.msra.mxu0 0.0
        %984 = vmatpush.msra.mxu0 0.0
        %985 = vmatpush.msra.mxu0 0.0
        %986 = vmatpush.msra.mxu0 0.0
        %987 = vmatpush.msra.mxu0 0.0
        %988 = vmatpush.msra.mxu0 0.0
        %989 = vmatpush.msra.mxu0 0.0
        %990 = vmatpush.msra.mxu0 %v513
        %991 = vmatpush.msra.mxu0 %v512
        %992 = vmatmul.f32.gmra.mxu0 %v974
        %v993 = vpop.f32.mrf.mxu0
        %v994 = vadd.f32 0.0, %v993
        %995 = vdwg.mxu0
        %v996 = vsel %vm538, %v971, 0.0
        %v997 = vsel %vm538, %v994, 0.0
        %v998 = vadd.f32 %v996, %v997
        %v999 = vperm.slane %v527, 0
        %v1000 = vadd.f32 %v998, %v999
        %v1001 = vadd.f32 %v1000, %v485
        %v1002 = vsel %vm538, %v1001, 0.0
        %1003 = vadd.xlane.f32.xlu0 %v1002
        %v1004 = vpop.xlane.xlu0 %1003
        %v1005 = vmul.f32 %v1004, %v551
        %v1006 = vsub.f32 %v1001, %v1005
        %v1007 = vmul.f32 %v1006, %v1006
        %v1008 = vsel %vm538, %v1007, 0.0
        %1009 = vadd.xlane.f32.xlu0 %v1008
        %v1010 = vpop.xlane.xlu0 %1009
        %v1011 = vmul.f32 %v1010, %v551
        %v1012 = vadd.f32 %v1011, 1e-05
        %v1013 = vrsqrt.pop %v1012
        %v1014 = vmul.f32 %v1013, %v1012
        %v1015 = vmul.f32 %v1014, %v1013
        %v1016 = vmul.f32 0.5, %v1015
        %v1017 = vsub.f32 1.5, %v1016
        %v1018 = vmul.f32 %v1013, %v1017
        %vm1019 = vweird.f32 %v1012
        %vm1020 = vweird.f32 %v1013
        %vm1021 = vmor %vm1019, %vm1020
        %v1022 = vsel %vm1021, %v1013, %v1018
        %v1023 = vmul.f32 %v1006, %v1022
        %v1024 = vperm.slane %v526, 4
        %v1025 = vmul.f32 %v1023, %v1024
        %v1026 = vperm.slane %v526, 5
        %v1027 = vadd.f32 %v1025, %v1026
        %v1028 = vperm.slane %v527, 1
        %v1030 = vsel %vm538, %v1027, 0
        %1032 = vmatpush.msra.mxu0 0.0
        %1033 = vmatpush.msra.mxu0 0.0
        %1034 = vmatpush.msra.mxu0 0.0
        %1035 = vmatpush.msra.mxu0 0.0
        %1036 = vmatpush.msra.mxu0 0.0
        %1037 = vmatpush.msra.mxu0 0.0
        %1038 = vmatpush.msra.mxu0 0.0
        %1039 = vmatpush.msra.mxu0 0.0
        %1040 = vmatpush.msra.mxu0 0.0
        %1041 = vmatpush.msra.mxu0 0.0
        %1042 = vmatpush.msra.mxu0 0.0
        %1043 = vmatpush.msra.mxu0 0.0
        %1044 = vmatpush.msra.mxu0 %v517
        %1045 = vmatpush.msra.mxu0 %v516
        %1046 = vmatpush.msra.mxu0 %v515
        %1047 = vmatpush.msra.mxu0 %v514
        %1048 = vmatmul.f32.gmra.mxu0 %v1030
        %v1049 = vpop.f32.mrf.mxu0
        %v1050 = vadd.f32 %v1028, %v1049
        %1051 = vdwg.mxu0
        %v1052 = vmul.f32 %v1050, 0.5
        %v1053 = vmul.f32 %v1050, 0.70710677
        %v1054 = vand.u32 2147483647, %v1053
        %v1055 = vmul.f32 %v1054, 0.3275911
        %v1056 = vadd.f32 %v1055, 1.0
        %v1057 = vrcp.pop %v1056
        %v1058 = vmul.f32 %v1056, %v1057
        %v1059 = vsub.f32 1.0, %v1058
        %v1060 = vmul.f32 %v1057, %v1059
        %v1061 = vadd.f32 %v1057, %v1060
        %vm1062 = vweird.f32 %v1056
        %vm1063 = vweird.f32 %v1057
        %vm1064 = vmor %vm1062, %vm1063
        %v1065 = vsel %vm1064, %v1057, %v1061
        %v1066 = vand.u32 2147483647, %v1056
        %vm1067 = vcmp.eq.f32.partialorder %v1066, 8.507059e+37
        %v1068 = vand.u32 %v1056, 2147483648
        %v1069 = vor.u32 1.1754944e-38, %v1068
        %v1070 = vsel %vm1067, %v1069, %v1065
        %v1071 = vmul.f32 1.0, %v1070
        %v1072 = vmul.f32 %v1071, 1.0614054
        %v1073 = vadd.f32 %v1072, -1.4531521
        %v1074 = vmul.f32 %v1073, %v1071
        %v1075 = vadd.f32 %v1074, 1.4214138
        %v1076 = vmul.f32 %v1075, %v1071
        %v1077 = vadd.f32 %v1076, -0.28449672
        %v1078 = vmul.f32 %v1077, %v1071
        %v1079 = vadd.f32 %v1078, 0.2548296
        %v1080 = vmul.f32 %v1079, %v1071
        %v1081 = vsub.f32 0.0, %v1054
        %v1082 = vmul.f32 %v1081, %v1054
        %v1083 = vmul.f32 %v1082, 1.442695
        %v1084 = vpow.pop %v1083
        %v1085 = vmul.f32 %v1080, %v1084
        %v1086 = vsub.f32 1.0, %v1085
        %vm1087 = vcmp.ge.f32.partialorder %v1053, 0.0
        %v1088 = vsub.f32 0.0, %v1086
        %v1089 = vsel %vm1087, %v1086, %v1088
        %v1090 = vadd.f32 %v1089, 1.0
        %v1091 = vmul.f32 %v1052, %v1090
        %v1092 = vsel %vm538, %v1091, 0.0
        %1093 = vadd.xlane.f32.xlu0 %v1092
        %v1094 = vpop.xlane.xlu0 %1093
        %v1095 = vmul.f32 %v1094, %v551
        %v1096 = vsub.f32 %v1091, %v1095
        %v1097 = vmul.f32 %v1096, %v1096
        %v1098 = vsel %vm538, %v1097, 0.0
        %1099 = vadd.xlane.f32.xlu0 %v1098
        %v1100 = vpop.xlane.xlu0 %1099
        %v1101 = vmul.f32 %v1100, %v551
        %v1102 = vadd.f32 %v1101, 1e-05
        %v1103 = vrsqrt.pop %v1102
        %v1104 = vmul.f32 %v1103, %v1102
        %v1105 = vmul.f32 %v1104, %v1103
        %v1106 = vmul.f32 0.5, %v1105
        %v1107 = vsub.f32 1.5, %v1106
        %v1108 = vmul.f32 %v1103, %v1107
        %vm1109 = vweird.f32 %v1102
        %vm1110 = vweird.f32 %v1103
        %vm1111 = vmor %vm1109, %vm1110
        %v1112 = vsel %vm1111, %v1103, %v1108
        %v1113 = vmul.f32 %v1096, %v1112
        %v1114 = vperm.slane %v526, 6
        %v1115 = vmul.f32 %v1113, %v1114
        %v1116 = vperm.slane %v526, 7
        %v1117 = vadd.f32 %v1115, %v1116
        %v1118 = vperm.slane %v527, 2
        %v1120 = vsel %vm538, %v1117, 0
        %1122 = vmatpush.msra.mxu0 0.0
        %1123 = vmatpush.msra.mxu0 0.0
        %1124 = vmatpush.msra.mxu0 0.0
        %1125 = vmatpush.msra.mxu0 0.0
        %1126 = vmatpush.msra.mxu0 0.0
        %1127 = vmatpush.msra.mxu0 0.0
        %1128 = vmatpush.msra.mxu0 0.0
        %1129 = vmatpush.msra.mxu0 0.0
        %1130 = vmatpush.msra.mxu0 0.0
        %1131 = vmatpush.msra.mxu0 0.0
        %1132 = vmatpush.msra.mxu0 0.0
        %1133 = vmatpush.msra.mxu0 0.0
        %1134 = vmatpush.msra.mxu0 %v521
        %1135 = vmatpush.msra.mxu0 %v520
        %1136 = vmatpush.msra.mxu0 %v519
        %1137 = vmatpush.msra.mxu0 %v518
        %1138 = vmatmul.f32.gmra.mxu0 %v1120
        %v1139 = vpop.f32.mrf.mxu0
        %v1140 = vadd.f32 %v1118, %v1139
        %1141 = vdwg.mxu0
        %v1142 = vmul.f32 %v1140, 0.5
        %v1143 = vmul.f32 %v1140, 0.70710677
        %v1144 = vand.u32 2147483647, %v1143
        %v1145 = vmul.f32 %v1144, 0.3275911
        %v1146 = vadd.f32 %v1145, 1.0
        %v1147 = vrcp.pop %v1146
        %v1148 = vmul.f32 %v1146, %v1147
        %v1149 = vsub.f32 1.0, %v1148
        %v1150 = vmul.f32 %v1147, %v1149
        %v1151 = vadd.f32 %v1147, %v1150
        %vm1152 = vweird.f32 %v1146
        %vm1153 = vweird.f32 %v1147
        %vm1154 = vmor %vm1152, %vm1153
        %v1155 = vsel %vm1154, %v1147, %v1151
        %v1156 = vand.u32 2147483647, %v1146
        %vm1157 = vcmp.eq.f32.partialorder %v1156, 8.507059e+37
        %v1158 = vand.u32 %v1146, 2147483648
        %v1159 = vor.u32 1.1754944e-38, %v1158
        %v1160 = vsel %vm1157, %v1159, %v1155
        %v1161 = vmul.f32 1.0, %v1160
        %v1162 = vmul.f32 %v1161, 1.0614054
        %v1163 = vadd.f32 %v1162, -1.4531521
        %v1164 = vmul.f32 %v1163, %v1161
        %v1165 = vadd.f32 %v1164, 1.4214138
        %v1166 = vmul.f32 %v1165, %v1161
        %v1167 = vadd.f32 %v1166, -0.28449672
        %v1168 = vmul.f32 %v1167, %v1161
        %v1169 = vadd.f32 %v1168, 0.2548296
        %v1170 = vmul.f32 %v1169, %v1161
        %v1171 = vsub.f32 0.0, %v1144
        %v1172 = vmul.f32 %v1171, %v1144
        %v1173 = vmul.f32 %v1172, 1.442695
        %v1174 = vpow.pop %v1173
        %v1175 = vmul.f32 %v1170, %v1174
        %v1176 = vsub.f32 1.0, %v1175
        %vm1177 = vcmp.ge.f32.partialorder %v1143, 0.0
        %v1178 = vsub.f32 0.0, %v1176
        %v1179 = vsel %vm1177, %v1176, %v1178
        %v1180 = vadd.f32 %v1179, 1.0
        %v1181 = vmul.f32 %v1142, %v1180
        %v1182 = vperm.slane %v527, 3
        %v1184 = vsel %vm538, %v1181, 0
        %1186 = vmatpush.msra.mxu0 0.0
        %1187 = vmatpush.msra.mxu0 0.0
        %1188 = vmatpush.msra.mxu0 0.0
        %1189 = vmatpush.msra.mxu0 0.0
        %1190 = vmatpush.msra.mxu0 0.0
        %1191 = vmatpush.msra.mxu0 0.0
        %1192 = vmatpush.msra.mxu0 0.0
        %1193 = vmatpush.msra.mxu0 0.0
        %1194 = vmatpush.msra.mxu0 0.0
        %1195 = vmatpush.msra.mxu0 0.0
        %1196 = vmatpush.msra.mxu0 0.0
        %1197 = vmatpush.msra.mxu0 0.0
        %1198 = vmatpush.msra.mxu0 %v525
        %1199 = vmatpush.msra.mxu0 %v524
        %1200 = vmatpush.msra.mxu0 %v523
        %1201 = vmatpush.msra.mxu0 %v522
        %1202 = vmatmul.f32.gmra.mxu0 %v1184
        %v1203 = vpop.f32.mrf.mxu0
        %v1204 = vadd.f32 %v1182, %v1203
        %1205 = vdwg.mxu0
        %v1206 = vadd.f32 %v1204, %v1001
        %v1207 = vld [vmem:[%s8] sm:$0xff]
        %v1208 = vld [vmem:[%s8 + $0x8] sm:$0xff]
        %v1209 = vld [vmem:[%s8 + $0x10] sm:$0xff]
        %v1210 = vld [vmem:[%s8 + $0x18] sm:$0xff]
        %v1211 = vld [vmem:[%s8 + $0x20] sm:$0xff]
        %v1212 = vld [vmem:[%s8 + $0x28] sm:$0xff]
        %v1213 = vld [vmem:[%s8 + $0x30] sm:$0xff]
        %v1214 = vld [vmem:[%s8 + $0x38] sm:$0xff]
        %v1215 = vld [vmem:[%s8 + $0x40] sm:$0xff]
        %v1216 = vld [vmem:[%s8 + $0x48] sm:$0xff]
        %v1217 = vld [vmem:[%s8 + $0x50] sm:$0xff]
        %v1218 = vld [vmem:[%s8 + $0x58] sm:$0xff]
        %v1219 = vld [vmem:[%s8 + $0x60] sm:$0xff]
        %v1220 = vld [vmem:[%s8 + $0x68] sm:$0xff]
        %v1221 = vld [vmem:[%s8 + $0x70] sm:$0xff]
        %v1222 = vld [vmem:[%s8 + $0x78] sm:$0xff]
        %v1223 = vld [vmem:[%s9] sm:$0xff]
        %v1224 = vld [vmem:[%s9 + $0x8] sm:$0xff]
        %v1225 = vld [vmem:[%s9 + $0x10] sm:$0xff]
        %v1226 = vld [vmem:[%s9 + $0x18] sm:$0xff]
        %v1227 = vld [vmem:[%s9 + $0x20] sm:$0xff]
        %v1228 = vld [vmem:[%s9 + $0x28] sm:$0xff]
        %v1229 = vld [vmem:[%s9 + $0x30] sm:$0xff]
        %v1230 = vld [vmem:[%s9 + $0x38] sm:$0xff]
        %v1231 = vld [vmem:[%s9 + $0x40] sm:$0xff]
        %v1232 = vld [vmem:[%s9 + $0x48] sm:$0xff]
        %v1233 = vld [vmem:[%s9 + $0x50] sm:$0xff]
        %v1234 = vld [vmem:[%s9 + $0x58] sm:$0xff]
        %v1235 = vld [vmem:[%s9 + $0x60] sm:$0xff]
        %v1236 = vld [vmem:[%s9 + $0x68] sm:$0xff]
        %v1237 = vld [vmem:[%s9 + $0x70] sm:$0xff]
        %v1238 = vld [vmem:[%s9 + $0x78] sm:$0xff]
        %v1239 = vld [vmem:[%s9 + $0x80] sm:$0xff]
        %v1240 = vld [vmem:[%s9 + $0x88] sm:$0xff]
        %v1241 = vld [vmem:[%s9 + $0x90] sm:$0xff]
        %v1242 = vld [vmem:[%s9 + $0x98] sm:$0xff]
        %v1243 = vld [vmem:[%s9 + $0xa0] sm:$0xff]
        %v1244 = vld [vmem:[%s9 + $0xa8] sm:$0xff]
        %v1245 = vld [vmem:[%s9 + $0xb0] sm:$0xff]
        %v1246 = vld [vmem:[%s9 + $0xb8] sm:$0xff]
        %v1247 = vld [vmem:[%s9 + $0xc0] sm:$0xff]
        %v1248 = vld [vmem:[%s9 + $0xc8] sm:$0xff]
        %v1249 = vld [vmem:[%s9 + $0xd0] sm:$0xff]
        %v1250 = vld [vmem:[%s9 + $0xd8] sm:$0xff]
        %v1251 = vld [vmem:[%s9 + $0xe0] sm:$0xff]
        %v1252 = vld [vmem:[%s9 + $0xe8] sm:$0xff]
        %v1253 = vld [vmem:[%s9 + $0xf0] sm:$0xff]
        %v1254 = vld [vmem:[%s9 + $0xf8] sm:$0xff]
        %v1255 = vld [vmem:[%s10] sm:$0xff]
        %v1256 = vld [vmem:[%s10 + $0x8] sm:$0xff]
        %v1257 = vld [vmem:[%s10 + $0x10] sm:$0xff]
        %v1258 = vld [vmem:[%s10 + $0x18] sm:$0xff]
        %v1259 = vld [vmem:[%s11] sm:$0xff]
        %v1260 = vld [vmem:[%s11 + $0x8] sm:$0xff]
        %v1261 = vld [vmem:[%s11 + $0x10] sm:$0xff]
        %v1262 = vld [vmem:[%s11 + $0x18] sm:$0xff]
        %v1263 = vld [vmem:[%s11 + $0x20] sm:$0xff]
        %v1264 = vld [vmem:[%s11 + $0x28] sm:$0xff]
        %v1265 = vld [vmem:[%s11 + $0x30] sm:$0xff]
        %v1266 = vld [vmem:[%s11 + $0x38] sm:$0xff]
        %v1267 = vld [vmem:[%s11 + $0x40] sm:$0xff]
        %v1268 = vld [vmem:[%s11 + $0x48] sm:$0xff]
        %v1269 = vld [vmem:[%s11 + $0x50] sm:$0xff]
        %v1270 = vld [vmem:[%s11 + $0x58] sm:$0xff]
        %v1271 = vld [vmem:[%s12] sm:$0xff]
        %v1272 = vld [vmem:[%s12 + $0x8] sm:$0xff]
        %v1273 = vld [vmem:[%s13] sm:$0x1]
        %v1274 = vld [vmem:[%s13 + $0x1] sm:$0x1]
        %v1275 = vld [vmem:[%s13 + $0x2] sm:$0x1]
        %v1276 = vld [vmem:[%s13 + $0x3] sm:$0x1]
        %v1277 = vld [vmem:[%s13 + $0x4] sm:$0x1]
        %v1278 = vld [vmem:[%s13 + $0x5] sm:$0x1]
        %v1279 = vld [vmem:[%s13 + $0x6] sm:$0x1]
        %v1280 = vld [vmem:[%s13 + $0x7] sm:$0x1]
        %v1281 = vld [vmem:[%s13 + $0x8] sm:$0x1]
        %v1282 = vld [vmem:[%s13 + $0x9] sm:$0x1]
        %v1283 = vld [vmem:[%s13 + $0xa] sm:$0x1]
        %v1284 = vld [vmem:[%s13 + $0xb] sm:$0x1]
        %v1285 = vld [vmem:[%s13 + $0xc] sm:$0x1]
        %v1286 = vld [vmem:[%s13 + $0xd] sm:$0x1]
        %v1287 = vld [vmem:[%s13 + $0xe] sm:$0x1]
        %v1288 = vld [vmem:[%s13 + $0xf] sm:$0x1]
        %v1289 = vld [vmem:[%s13 + $0x10] sm:$0x1]
        %v1290 = vld [vmem:[%s13 + $0x11] sm:$0x1]
        %v1291 = vld [vmem:[%s13 + $0x12] sm:$0x1]
        %v1292 = vld [vmem:[%s13 + $0x13] sm:$0x1]
        %v1293 = vsel %vm538, %v1206, 0.0
        %1294 = vadd.xlane.f32.xlu0 %v1293
        %v1295 = vpop.xlane.xlu0 %1294
        %v1296 = vmul.f32 %v1295, %v551
        %v1297 = vsub.f32 %v1206, %v1296
        %v1298 = vmul.f32 %v1297, %v1297
        %v1299 = vsel %vm538, %v1298, 0.0
        %1300 = vadd.xlane.f32.xlu0 %v1299
        %v1301 = vpop.xlane.xlu0 %1300
        %v1302 = vmul.f32 %v1301, %v551
        %v1303 = vadd.f32 %v1302, 1e-05
        %v1304 = vrsqrt.pop %v1303
        %v1305 = vmul.f32 %v1304, %v1303
        %v1306 = vmul.f32 %v1305, %v1304
        %v1307 = vmul.f32 0.5, %v1306
        %v1308 = vsub.f32 1.5, %v1307
        %v1309 = vmul.f32 %v1304, %v1308
        %vm1310 = vweird.f32 %v1303
        %vm1311 = vweird.f32 %v1304
        %vm1312 = vmor %vm1310, %vm1311
        %v1313 = vsel %vm1312, %v1304, %v1309
        %v1314 = vmul.f32 %v1297, %v1313
        %v1315 = vperm.slane %v1271, 0
        %v1316 = vmul.f32 %v1314, %v1315
        %v1317 = vperm.slane %v1271, 1
        %v1318 = vadd.f32 %v1316, %v1317
        %v1319 = vperm.slane %v1271, 2
        %v1320 = vmul.f32 %v1314, %v1319
        %v1321 = vperm.slane %v1271, 3
        %v1322 = vadd.f32 %v1320, %v1321
        %v1327 = vperm.slane %v1273, 0
        %v1328 = vperm.slane %v1274, 0
        %v1329 = vperm.slane %v1275, 0
        %v1330 = vperm.slane %v1276, 0
        %v1336 = vsel %vm538, %v1322, 0
        %1338 = vmatpush.msra.mxu0 0.0
        %1339 = vmatpush.msra.mxu0 0.0
        %1340 = vmatpush.msra.mxu0 0.0
        %1341 = vmatpush.msra.mxu0 0.0
        %1342 = vmatpush.msra.mxu0 0.0
        %1343 = vmatpush.msra.mxu0 0.0
        %1344 = vmatpush.msra.mxu0 0.0
        %1345 = vmatpush.msra.mxu0 0.0
        %1346 = vmatpush.msra.mxu0 0.0
        %1347 = vmatpush.msra.mxu0 0.0
        %1348 = vmatpush.msra.mxu0 0.0
        %1349 = vmatpush.msra.mxu0 0.0
        %1350 = vmatpush.msra.mxu0 %v1210
        %1351 = vmatpush.msra.mxu0 %v1209
        %1352 = vmatpush.msra.mxu0 %v1208
        %1353 = vmatpush.msra.mxu0 %v1207
        %1354 = vmatmul.f32.gmra.mxu0 %v1336
        %v1355 = vpop.f32.mrf.mxu0
        %v1356 = vadd.f32 %v1327, %v1355
        %1357 = vdwg.mxu0
        %1358 = vmatpush.msra.mxu0 0.0
        %1359 = vmatpush.msra.mxu0 0.0
        %1360 = vmatpush.msra.mxu0 0.0
        %1361 = vmatpush.msra.mxu0 0.0
        %1362 = vmatpush.msra.mxu0 0.0
        %1363 = vmatpush.msra.mxu0 0.0
        %1364 = vmatpush.msra.mxu0 0.0
        %1365 = vmatpush.msra.mxu0 0.0
        %1366 = vmatpush.msra.mxu0 0.0
        %1367 = vmatpush.msra.mxu0 0.0
        %1368 = vmatpush.msra.mxu0 0.0
        %1369 = vmatpush.msra.mxu0 0.0
        %1370 = vmatpush.msra.mxu0 %v1214
        %1371 = vmatpush.msra.mxu0 %v1213
        %1372 = vmatpush.msra.mxu0 %v1212
        %1373 = vmatpush.msra.mxu0 %v1211
        %1374 = vmatmul.f32.gmra.mxu0 %v1336
        %v1375 = vpop.f32.mrf.mxu0
        %v1376 = vadd.f32 %v1328, %v1375
        %1377 = vdwg.mxu0
        %1378 = vmatpush.msra.mxu0 0.0
        %1379 = vmatpush.msra.mxu0 0.0
        %1380 = vmatpush.msra.mxu0 0.0
        %1381 = vmatpush.msra.mxu0 0.0
        %1382 = vmatpush.msra.mxu0 0.0
        %1383 = vmatpush.msra.mxu0 0.0
        %1384 = vmatpush.msra.mxu0 0.0
        %1385 = vmatpush.msra.mxu0 0.0
        %1386 = vmatpush.msra.mxu0 0.0
        %1387 = vmatpush.msra.mxu0 0.0
        %1388 = vmatpush.msra.mxu0 0.0
        %1389 = vmatpush.msra.mxu0 0.0
        %1390 = vmatpush.msra.mxu0 %v1218
        %1391 = vmatpush.msra.mxu0 %v1217
        %1392 = vmatpush.msra.mxu0 %v1216
        %1393 = vmatpush.msra.mxu0 %v1215
        %1394 = vmatmul.f32.gmra.mxu0 %v1336
        %v1395 = vpop.f32.mrf.mxu0
        %v1396 = vadd.f32 %v1329, %v1395
        %1397 = vdwg.mxu0
        %1398 = vmatpush.msra.mxu0 0.0
        %1399 = vmatpush.msra.mxu0 0.0
        %1400 = vmatpush.msra.mxu0 0.0
        %1401 = vmatpush.msra.mxu0 0.0
        %1402 = vmatpush.msra.mxu0 0.0
        %1403 = vmatpush.msra.mxu0 0.0
        %1404 = vmatpush.msra.mxu0 0.0
        %1405 = vmatpush.msra.mxu0 0.0
        %1406 = vmatpush.msra.mxu0 0.0
        %1407 = vmatpush.msra.mxu0 0.0
        %1408 = vmatpush.msra.mxu0 0.0
        %1409 = vmatpush.msra.mxu0 0.0
        %1410 = vmatpush.msra.mxu0 %v1222
        %1411 = vmatpush.msra.mxu0 %v1221
        %1412 = vmatpush.msra.mxu0 %v1220
        %1413 = vmatpush.msra.mxu0 %v1219
        %1414 = vmatmul.f32.gmra.mxu0 %v1336
        %v1415 = vpop.f32.mrf.mxu0
        %v1416 = vadd.f32 %v1330, %v1415
        %1417 = vdwg.mxu0
        %v1418 = vmul.f32 %v1356, 0.35355338
        %v1419 = vmul.f32 %v1376, 0.35355338
        %v1420 = vmul.f32 %v1396, 0.35355338
        %v1421 = vmul.f32 %v1416, 0.35355338
        %v1423 = vsel %vm538, %v1318, 0
        %1425 = vmatpush.msra.mxu0 0.0
        %1426 = vmatpush.msra.mxu0 0.0
        %1427 = vmatpush.msra.mxu0 0.0
        %1428 = vmatpush.msra.mxu0 0.0
        %1429 = vmatpush.msra.mxu0 0.0
        %1430 = vmatpush.msra.mxu0 0.0
        %1431 = vmatpush.msra.mxu0 0.0
        %1432 = vmatpush.msra.mxu0 0.0
        %1433 = vmatpush.msra.mxu0 0.0
        %1434 = vmatpush.msra.mxu0 0.0
        %1435 = vmatpush.msra.mxu0 0.0
        %1436 = vmatpush.msra.mxu0 0.0
        %1437 = vmatpush.msra.mxu0 %v1226
        %1438 = vmatpush.msra.mxu0 %v1225
        %1439 = vmatpush.msra.mxu0 %v1224
        %1440 = vmatpush.msra.mxu0 %v1223
        %1441 = vmatmul.f32.gmra.mxu0 %v1423
        %v1442 = vpop.f32.mrf.mxu0
        %v1443 = vadd.f32 0.0, %v1442
        %1444 = vdwg.mxu0
        %1445 = vmatpush.msra.mxu0 0.0
        %1446 = vmatpush.msra.mxu0 0.0
        %1447 = vmatpush.msra.mxu0 0.0
        %1448 = vmatpush.msra.mxu0 0.0
        %1449 = vmatpush.msra.mxu0 0.0
        %1450 = vmatpush.msra.mxu0 0.0
        %1451 = vmatpush.msra.mxu0 0.0
        %1452 = vmatpush.msra.mxu0 0.0
        %1453 = vmatpush.msra.mxu0 0.0
        %1454 = vmatpush.msra.mxu0 0.0
        %1455 = vmatpush.msra.mxu0 0.0
        %1456 = vmatpush.msra.mxu0 0.0
        %1457 = vmatpush.msra.mxu0 %v1230
        %1458 = vmatpush.msra.mxu0 %v1229
        %1459 = vmatpush.msra.mxu0 %v1228
        %1460 = vmatpush.msra.mxu0 %v1227
        %1461 = vmatmul.f32.gmra.mxu0 %v1423
        %v1462 = vpop.f32.mrf.mxu0
        %v1463 = vadd.f32 0.0, %v1462
        %1464 = vdwg.mxu0
        %1465 = vmatpush.msra.mxu0 0.0
        %1466 = vmatpush.msra.mxu0 0.0
        %1467 = vmatpush.msra.mxu0 0.0
        %1468 = vmatpush.msra.mxu0 0.0
        %1469 = vmatpush.msra.mxu0 0.0
        %1470 = vmatpush.msra.mxu0 0.0
        %1471 = vmatpush.msra.mxu0 0.0
        %1472 = vmatpush.msra.mxu0 0.0
        %1473 = vmatpush.msra.mxu0 0.0
        %1474 = vmatpush.msra.mxu0 0.0
        %1475 = vmatpush.msra.mxu0 0.0
        %1476 = vmatpush.msra.mxu0 0.0
        %1477 = vmatpush.msra.mxu0 %v1234
        %1478 = vmatpush.msra.mxu0 %v1233
        %1479 = vmatpush.msra.mxu0 %v1232
        %1480 = vmatpush.msra.mxu0 %v1231
        %1481 = vmatmul.f32.gmra.mxu0 %v1423
        %v1482 = vpop.f32.mrf.mxu0
        %v1483 = vadd.f32 0.0, %v1482
        %1484 = vdwg.mxu0
        %1485 = vmatpush.msra.mxu0 0.0
        %1486 = vmatpush.msra.mxu0 0.0
        %1487 = vmatpush.msra.mxu0 0.0
        %1488 = vmatpush.msra.mxu0 0.0
        %1489 = vmatpush.msra.mxu0 0.0
        %1490 = vmatpush.msra.mxu0 0.0
        %1491 = vmatpush.msra.mxu0 0.0
        %1492 = vmatpush.msra.mxu0 0.0
        %1493 = vmatpush.msra.mxu0 0.0
        %1494 = vmatpush.msra.mxu0 0.0
        %1495 = vmatpush.msra.mxu0 0.0
        %1496 = vmatpush.msra.mxu0 0.0
        %1497 = vmatpush.msra.mxu0 %v1238
        %1498 = vmatpush.msra.mxu0 %v1237
        %1499 = vmatpush.msra.mxu0 %v1236
        %1500 = vmatpush.msra.mxu0 %v1235
        %1501 = vmatmul.f32.gmra.mxu0 %v1423
        %v1502 = vpop.f32.mrf.mxu0
        %v1503 = vadd.f32 0.0, %v1502
        %1504 = vdwg.mxu0
        %1505 = vmatpush.msra.mxu0 0.0
        %1506 = vmatpush.msra.mxu0 0.0
        %1507 = vmatpush.msra.mxu0 0.0
        %1508 = vmatpush.msra.mxu0 0.0
        %1509 = vmatpush.msra.mxu0 0.0
        %1510 = vmatpush.msra.mxu0 0.0
        %1511 = vmatpush.msra.mxu0 0.0
        %1512 = vmatpush.msra.mxu0 0.0
        %1513 = vmatpush.msra.mxu0 0.0
        %1514 = vmatpush.msra.mxu0 0.0
        %1515 = vmatpush.msra.mxu0 0.0
        %1516 = vmatpush.msra.mxu0 0.0
        %1517 = vmatpush.msra.mxu0 %v1242
        %1518 = vmatpush.msra.mxu0 %v1241
        %1519 = vmatpush.msra.mxu0 %v1240
        %1520 = vmatpush.msra.mxu0 %v1239
        %1521 = vmatmul.f32.gmra.mxu0 %v1423
        %v1522 = vpop.f32.mrf.mxu0
        %v1523 = vadd.f32 0.0, %v1522
        %1524 = vdwg.mxu0
        %1525 = vmatpush.msra.mxu0 0.0
        %1526 = vmatpush.msra.mxu0 0.0
        %1527 = vmatpush.msra.mxu0 0.0
        %1528 = vmatpush.msra.mxu0 0.0
        %1529 = vmatpush.msra.mxu0 0.0
        %1530 = vmatpush.msra.mxu0 0.0
        %1531 = vmatpush.msra.mxu0 0.0
        %1532 = vmatpush.msra.mxu0 0.0
        %1533 = vmatpush.msra.mxu0 0.0
        %1534 = vmatpush.msra.mxu0 0.0
        %1535 = vmatpush.msra.mxu0 0.0
        %1536 = vmatpush.msra.mxu0 0.0
        %1537 = vmatpush.msra.mxu0 %v1246
        %1538 = vmatpush.msra.mxu0 %v1245
        %1539 = vmatpush.msra.mxu0 %v1244
        %1540 = vmatpush.msra.mxu0 %v1243
        %1541 = vmatmul.f32.gmra.mxu0 %v1423
        %v1542 = vpop.f32.mrf.mxu0
        %v1543 = vadd.f32 0.0, %v1542
        %1544 = vdwg.mxu0
        %1545 = vmatpush.msra.mxu0 0.0
        %1546 = vmatpush.msra.mxu0 0.0
        %1547 = vmatpush.msra.mxu0 0.0
        %1548 = vmatpush.msra.mxu0 0.0
        %1549 = vmatpush.msra.mxu0 0.0
        %1550 = vmatpush.msra.mxu0 0.0
        %1551 = vmatpush.msra.mxu0 0.0
        %1552 = vmatpush.msra.mxu0 0.0
        %1553 = vmatpush.msra.mxu0 0.0
        %1554 = vmatpush.msra.mxu0 0.0
        %1555 = vmatpush.msra.mxu0 0.0
        %1556 = vmatpush.msra.mxu0 0.0
        %1557 = vmatpush.msra.mxu0 %v1250
        %1558 = vmatpush.msra.mxu0 %v1249
        %1559 = vmatpush.msra.mxu0 %v1248
        %1560 = vmatpush.msra.mxu0 %v1247
        %1561 = vmatmul.f32.gmra.mxu0 %v1423
        %v1562 = vpop.f32.mrf.mxu0
        %v1563 = vadd.f32 0.0, %v1562
        %1564 = vdwg.mxu0
        %1565 = vmatpush.msra.mxu0 0.0
        %1566 = vmatpush.msra.mxu0 0.0
        %1567 = vmatpush.msra.mxu0 0.0
        %1568 = vmatpush.msra.mxu0 0.0
        %1569 = vmatpush.msra.mxu0 0.0
        %1570 = vmatpush.msra.mxu0 0.0
        %1571 = vmatpush.msra.mxu0 0.0
        %1572 = vmatpush.msra.mxu0 0.0
        %1573 = vmatpush.msra.mxu0 0.0
        %1574 = vmatpush.msra.mxu0 0.0
        %1575 = vmatpush.msra.mxu0 0.0
        %1576 = vmatpush.msra.mxu0 0.0
        %1577 = vmatpush.msra.mxu0 %v1254
        %1578 = vmatpush.msra.mxu0 %v1253
        %1579 = vmatpush.msra.mxu0 %v1252
        %1580 = vmatpush.msra.mxu0 %v1251
        %1581 = vmatmul.f32.gmra.mxu0 %v1423
        %v1582 = vpop.f32.mrf.mxu0
        %v1583 = vadd.f32 0.0, %v1582
        %1584 = vdwg.mxu0
        %v1589 = vperm.slane %v1277, 0
        %v1590 = vperm.slane %v1278, 0
        %v1591 = vperm.slane %v1279, 0
        %v1592 = vperm.slane %v1280, 0
        %v1597 = vadd.f32 %v1443, %v1589
        %v1598 = vadd.f32 %v1463, %v1590
        %v1599 = vadd.f32 %v1483, %v1591
        %v1600 = vadd.f32 %v1503, %v1592
        %v1605 = vperm.slane %v1281, 0
        %v1606 = vperm.slane %v1282, 0
        %v1607 = vperm.slane %v1283, 0
        %v1608 = vperm.slane %v1284, 0
        %v1613 = vadd.f32 %v1523, %v1605
        %v1614 = vadd.f32 %v1543, %v1606
        %v1615 = vadd.f32 %v1563, %v1607
        %v1616 = vadd.f32 %v1583, %v1608
        %vm1617 = vcmask 64512
        %v1619 = vsel %vm1617, %v1418, 0
        %v1622 = vsel %vm1617, %v1597, 0
        %1624 = vmatpush.xpose.msra.mxu0 0.0
        %1625 = vmatpush.xpose.msra.mxu0 0.0
        %1626 = vmatpush.xpose.msra.mxu0 0.0
        %1627 = vmatpush.xpose.msra.mxu0 0.0
        %1628 = vmatpush.xpose.msra.mxu0 0.0
        %1629 = vmatpush.xpose.msra.mxu0 0.0
        %1630 = vmatpush.xpose.msra.mxu0 0.0
        %1631 = vmatpush.xpose.msra.mxu0 0.0
        %1632 = vmatpush.xpose.msra.mxu0 0.0
        %1633 = vmatpush.xpose.msra.mxu0 0.0
        %1634 = vmatpush.xpose.msra.mxu0 0.0
        %1635 = vmatpush.xpose.msra.mxu0 0.0
        %1636 = vmatpush.xpose.msra.mxu0 0.0
        %1637 = vmatpush.xpose.msra.mxu0 0.0
        %1638 = vmatpush.xpose.msra.mxu0 0.0
        %1639 = vmatpush.xpose.msra.mxu0 %v1622
        %1640 = vmatmul.f32.gmra.mxu0 %v1619
        %v1641 = vpop.f32.mrf.mxu0
        %v1642 = vadd.f32 0.0, %v1641
        %1643 = vdwg.mxu0
        %v1645 = vsel %vm1617, %v1419, 0
        %v1648 = vsel %vm1617, %v1598, 0
        %1650 = vmatpush.xpose.msra.mxu0 0.0
        %1651 = vmatpush.xpose.msra.mxu0 0.0
        %1652 = vmatpush.xpose.msra.mxu0 0.0
        %1653 = vmatpush.xpose.msra.mxu0 0.0
        %1654 = vmatpush.xpose.msra.mxu0 0.0
        %1655 = vmatpush.xpose.msra.mxu0 0.0
        %1656 = vmatpush.xpose.msra.mxu0 0.0
        %1657 = vmatpush.xpose.msra.mxu0 0.0
        %1658 = vmatpush.xpose.msra.mxu0 0.0
        %1659 = vmatpush.xpose.msra.mxu0 0.0
        %1660 = vmatpush.xpose.msra.mxu0 0.0
        %1661 = vmatpush.xpose.msra.mxu0 0.0
        %1662 = vmatpush.xpose.msra.mxu0 0.0
        %1663 = vmatpush.xpose.msra.mxu0 0.0
        %1664 = vmatpush.xpose.msra.mxu0 0.0
        %1665 = vmatpush.xpose.msra.mxu0 %v1648
        %1666 = vmatmul.f32.gmra.mxu0 %v1645
        %v1667 = vpop.f32.mrf.mxu0
        %v1668 = vadd.f32 0.0, %v1667
        %1669 = vdwg.mxu0
        %v1671 = vsel %vm1617, %v1420, 0
        %v1674 = vsel %vm1617, %v1599, 0
        %1676 = vmatpush.xpose.msra.mxu0 0.0
        %1677 = vmatpush.xpose.msra.mxu0 0.0
        %1678 = vmatpush.xpose.msra.mxu0 0.0
        %1679 = vmatpush.xpose.msra.mxu0 0.0
        %1680 = vmatpush.xpose.msra.mxu0 0.0
        %1681 = vmatpush.xpose.msra.mxu0 0.0
        %1682 = vmatpush.xpose.msra.mxu0 0.0
        %1683 = vmatpush.xpose.msra.mxu0 0.0
        %1684 = vmatpush.xpose.msra.mxu0 0.0
        %1685 = vmatpush.xpose.msra.mxu0 0.0
        %1686 = vmatpush.xpose.msra.mxu0 0.0
        %1687 = vmatpush.xpose.msra.mxu0 0.0
        %1688 = vmatpush.xpose.msra.mxu0 0.0
        %1689 = vmatpush.xpose.msra.mxu0 0.0
        %1690 = vmatpush.xpose.msra.mxu0 0.0
        %1691 = vmatpush.xpose.msra.mxu0 %v1674
        %1692 = vmatmul.f32.gmra.mxu0 %v1671
        %v1693 = vpop.f32.mrf.mxu0
        %v1694 = vadd.f32 0.0, %v1693
        %1695 = vdwg.mxu0
        %v1697 = vsel %vm1617, %v1421, 0
        %v1700 = vsel %vm1617, %v1600, 0
        %1702 = vmatpush.xpose.msra.mxu0 0.0
        %1703 = vmatpush.xpose.msra.mxu0 0.0
        %1704 = vmatpush.xpose.msra.mxu0 0.0
        %1705 = vmatpush.xpose.msra.mxu0 0.0
        %1706 = vmatpush.xpose.msra.mxu0 0.0
        %1707 = vmatpush.xpose.msra.mxu0 0.0
        %1708 = vmatpush.xpose.msra.mxu0 0.0
        %1709 = vmatpush.xpose.msra.mxu0 0.0
        %1710 = vmatpush.xpose.msra.mxu0 0.0
        %1711 = vmatpush.xpose.msra.mxu0 0.0
        %1712 = vmatpush.xpose.msra.mxu0 0.0
        %1713 = vmatpush.xpose.msra.mxu0 0.0
        %1714 = vmatpush.xpose.msra.mxu0 0.0
        %1715 = vmatpush.xpose.msra.mxu0 0.0
        %1716 = vmatpush.xpose.msra.mxu0 0.0
        %1717 = vmatpush.xpose.msra.mxu0 %v1700
        %1718 = vmatmul.f32.gmra.mxu0 %v1697
        %v1719 = vpop.f32.mrf.mxu0
        %v1720 = vadd.f32 0.0, %v1719
        %1721 = vdwg.mxu0
        %v1726 = vperm.slane %v1285, 0
        %v1727 = vperm.slane %v1286, 0
        %v1728 = vperm.slane %v1287, 0
        %v1729 = vperm.slane %v1288, 0
        %v1734 = vmul.f32 %v1418, %v1726
        %v1735 = vmul.f32 %v1419, %v1727
        %v1736 = vmul.f32 %v1420, %v1728
        %v1737 = vmul.f32 %v1421, %v1729
        %v1738 = vsel %vm1617, %v1734, 0.0
        %1739 = vadd.xlane.f32.xlu0 %v1738
        %v1740 = vpop.xlane.xlu0 %1739
        %v1741 = vsel %vm1617, %v1735, 0.0
        %1742 = vadd.xlane.f32.xlu0 %v1741
        %v1743 = vpop.xlane.xlu0 %1742
        %v1744 = vsel %vm1617, %v1736, 0.0
        %1745 = vadd.xlane.f32.xlu0 %v1744
        %v1746 = vpop.xlane.xlu0 %1745
        %v1747 = vsel %vm1617, %v1737, 0.0
        %1748 = vadd.xlane.f32.xlu0 %v1747
        %v1749 = vpop.xlane.xlu0 %1748
        %v1750 = vsel %vm1617, %v1642, -inf
        %1751 = vmax.xlane.f32.xlu0 %v1750
        %v1752 = vpop.xlane.xlu0 %1751
        %v1753 = vsel %vm1617, %v1668, -inf
        %1754 = vmax.xlane.f32.xlu0 %v1753
        %v1755 = vpop.xlane.xlu0 %1754
        %v1756 = vsel %vm1617, %v1694, -inf
        %1757 = vmax.xlane.f32.xlu0 %v1756
        %v1758 = vpop.xlane.xlu0 %1757
        %v1759 = vsel %vm1617, %v1720, -inf
        %1760 = vmax.xlane.f32.xlu0 %v1759
        %v1761 = vpop.xlane.xlu0 %1760
        %v1762 = vmax.f32 %v1752, %v1740
        %v1763 = vmax.f32 %v1755, %v1743
        %v1764 = vmax.f32 %v1758, %v1746
        %v1765 = vmax.f32 %v1761, %v1749
        %v1766 = vsub.f32 %v1642, %v1762
        %v1767 = vsub.f32 %v1668, %v1763
        %v1768 = vsub.f32 %v1694, %v1764
        %v1769 = vsub.f32 %v1720, %v1765
        %v1770 = vmul.f32 %v1766, 1.442695
        %v1771 = vpow.pop %v1770
        %v1772 = vmul.f32 %v1767, 1.442695
        %v1773 = vpow.pop %v1772
        %v1774 = vmul.f32 %v1768, 1.442695
        %v1775 = vpow.pop %v1774
        %v1776 = vmul.f32 %v1769, 1.442695
        %v1777 = vpow.pop %v1776
        %v1778 = vsub.f32 %v1740, %v1762
        %v1779 = vsub.f32 %v1743, %v1763
        %v1780 = vsub.f32 %v1746, %v1764
        %v1781 = vsub.f32 %v1749, %v1765
        %v1782 = vmul.f32 %v1778, 1.442695
        %v1783 = vpow.pop %v1782
        %v1784 = vmul.f32 %v1779, 1.442695
        %v1785 = vpow.pop %v1784
        %v1786 = vmul.f32 %v1780, 1.442695
        %v1787 = vpow.pop %v1786
        %v1788 = vmul.f32 %v1781, 1.442695
        %v1789 = vpow.pop %v1788
        %v1790 = vsel %vm1617, %v1771, 0.0
        %1791 = vadd.xlane.f32.xlu0 %v1790
        %v1792 = vpop.xlane.xlu0 %1791
        %v1793 = vsel %vm1617, %v1773, 0.0
        %1794 = vadd.xlane.f32.xlu0 %v1793
        %v1795 = vpop.xlane.xlu0 %1794
        %v1796 = vsel %vm1617, %v1775, 0.0
        %1797 = vadd.xlane.f32.xlu0 %v1796
        %v1798 = vpop.xlane.xlu0 %1797
        %v1799 = vsel %vm1617, %v1777, 0.0
        %1800 = vadd.xlane.f32.xlu0 %v1799
        %v1801 = vpop.xlane.xlu0 %1800
        %v1802 = vadd.f32 %v1792, %v1783
        %v1803 = vadd.f32 %v1795, %v1785
        %v1804 = vadd.f32 %v1798, %v1787
        %v1805 = vadd.f32 %v1801, %v1789
        %v1806 = vrcp.pop %v1802
        %v1807 = vrcp.pop %v1803
        %v1808 = vrcp.pop %v1804
        %v1809 = vrcp.pop %v1805
        %v1814 = vperm.slane %v1289, 0
        %v1815 = vperm.slane %v1290, 0
        %v1816 = vperm.slane %v1291, 0
        %v1817 = vperm.slane %v1292, 0
        %v1822 = vmul.f32 %v1783, %v1814
        %v1823 = vmul.f32 %v1785, %v1815
        %v1824 = vmul.f32 %v1787, %v1816
        %v1825 = vmul.f32 %v1789, %v1817
        %v1827 = vsel %vm1617, %v1771, 0
        %1829 = vmatpush.msra.mxu0 0.0
        %1830 = vmatpush.msra.mxu0 0.0
        %1831 = vmatpush.msra.mxu0 0.0
        %1832 = vmatpush.msra.mxu0 0.0
        %1833 = vmatpush.msra.mxu0 0.0
        %1834 = vmatpush.msra.mxu0 0.0
        %1835 = vmatpush.msra.mxu0 0.0
        %1836 = vmatpush.msra.mxu0 0.0
        %1837 = vmatpush.msra.mxu0 0.0
        %1838 = vmatpush.msra.mxu0 0.0
        %1839 = vmatpush.msra.mxu0 0.0
        %1840 = vmatpush.msra.mxu0 0.0
        %1841 = vmatpush.msra.mxu0 0.0
        %1842 = vmatpush.msra.mxu0 0.0
        %1843 = vmatpush.msra.mxu0 0.0
        %1844 = vmatpush.msra.mxu0 %v1613
        %1845 = vmatmul.f32.gmra.mxu0 %v1827
        %v1846 = vpop.f32.mrf.mxu0
        %v1847 = vadd.f32 %v1822, %v1846
        %1848 = vdwg.mxu0
        %v1850 = vsel %vm1617, %v1773, 0
        %1852 = vmatpush.msra.mxu0 0.0
        %1853 = vmatpush.msra.mxu0 0.0
        %1854 = vmatpush.msra.mxu0 0.0
        %1855 = vmatpush.msra.mxu0 0.0
        %1856 = vmatpush.msra.mxu0 0.0
        %1857 = vmatpush.msra.mxu0 0.0
        %1858 = vmatpush.msra.mxu0 0.0
        %1859 = vmatpush.msra.mxu0 0.0
        %1860 = vmatpush.msra.mxu0 0.0
        %1861 = vmatpush.msra.mxu0 0.0
        %1862 = vmatpush.msra.mxu0 0.0
        %1863 = vmatpush.msra.mxu0 0.0
        %1864 = vmatpush.msra.mxu0 0.0
        %1865 = vmatpush.msra.mxu0 0.0
        %1866 = vmatpush.msra.mxu0 0.0
        %1867 = vmatpush.msra.mxu0 %v1614
        %1868 = vmatmul.f32.gmra.mxu0 %v1850
        %v1869 = vpop.f32.mrf.mxu0
        %v1870 = vadd.f32 %v1823, %v1869
        %1871 = vdwg.mxu0
        %v1873 = vsel %vm1617, %v1775, 0
        %1875 = vmatpush.msra.mxu0 0.0
        %1876 = vmatpush.msra.mxu0 0.0
        %1877 = vmatpush.msra.mxu0 0.0
        %1878 = vmatpush.msra.mxu0 0.0
        %1879 = vmatpush.msra.mxu0 0.0
        %1880 = vmatpush.msra.mxu0 0.0
        %1881 = vmatpush.msra.mxu0 0.0
        %1882 = vmatpush.msra.mxu0 0.0
        %1883 = vmatpush.msra.mxu0 0.0
        %1884 = vmatpush.msra.mxu0 0.0
        %1885 = vmatpush.msra.mxu0 0.0
        %1886 = vmatpush.msra.mxu0 0.0
        %1887 = vmatpush.msra.mxu0 0.0
        %1888 = vmatpush.msra.mxu0 0.0
        %1889 = vmatpush.msra.mxu0 0.0
        %1890 = vmatpush.msra.mxu0 %v1615
        %1891 = vmatmul.f32.gmra.mxu0 %v1873
        %v1892 = vpop.f32.mrf.mxu0
        %v1893 = vadd.f32 %v1824, %v1892
        %1894 = vdwg.mxu0
        %v1896 = vsel %vm1617, %v1777, 0
        %1898 = vmatpush.msra.mxu0 0.0
        %1899 = vmatpush.msra.mxu0 0.0
        %1900 = vmatpush.msra.mxu0 0.0
        %1901 = vmatpush.msra.mxu0 0.0
        %1902 = vmatpush.msra.mxu0 0.0
        %1903 = vmatpush.msra.mxu0 0.0
        %1904 = vmatpush.msra.mxu0 0.0
        %1905 = vmatpush.msra.mxu0 0.0
        %1906 = vmatpush.msra.mxu0 0.0
        %1907 = vmatpush.msra.mxu0 0.0
        %1908 = vmatpush.msra.mxu0 0.0
        %1909 = vmatpush.msra.mxu0 0.0
        %1910 = vmatpush.msra.mxu0 0.0
        %1911 = vmatpush.msra.mxu0 0.0
        %1912 = vmatpush.msra.mxu0 0.0
        %1913 = vmatpush.msra.mxu0 %v1616
        %1914 = vmatmul.f32.gmra.mxu0 %v1896
        %v1915 = vpop.f32.mrf.mxu0
        %v1916 = vadd.f32 %v1825, %v1915
        %1917 = vdwg.mxu0
        %v1918 = vmul.f32 %v1847, %v1806
        %v1919 = vmul.f32 %v1870, %v1807
        %v1920 = vmul.f32 %v1893, %v1808
        %v1921 = vmul.f32 %v1916, %v1809
        %v1923 = vsel %vm1617, %v1918, 0
        %1925 = vmatpush.msra.mxu0 0.0
        %1926 = vmatpush.msra.mxu0 0.0
        %1927 = vmatpush.msra.mxu0 0.0
        %1928 = vmatpush.msra.mxu0 0.0
        %1929 = vmatpush.msra.mxu0 0.0
        %1930 = vmatpush.msra.mxu0 0.0
        %1931 = vmatpush.msra.mxu0 0.0
        %1932 = vmatpush.msra.mxu0 0.0
        %1933 = vmatpush.msra.mxu0 0.0
        %1934 = vmatpush.msra.mxu0 0.0
        %1935 = vmatpush.msra.mxu0 0.0
        %1936 = vmatpush.msra.mxu0 0.0
        %1937 = vmatpush.msra.mxu0 0.0
        %1938 = vmatpush.msra.mxu0 0.0
        %1939 = vmatpush.msra.mxu0 0.0
        %1940 = vmatpush.msra.mxu0 %v1255
        %1941 = vmatmul.f32.gmra.mxu0 %v1923
        %v1942 = vpop.f32.mrf.mxu0
        %v1943 = vadd.f32 0.0, %v1942
        %1944 = vdwg.mxu0
        %v1946 = vsel %vm1617, %v1919, 0
        %1948 = vmatpush.msra.mxu0 0.0
        %1949 = vmatpush.msra.mxu0 0.0
        %1950 = vmatpush.msra.mxu0 0.0
        %1951 = vmatpush.msra.mxu0 0.0
        %1952 = vmatpush.msra.mxu0 0.0
        %1953 = vmatpush.msra.mxu0 0.0
        %1954 = vmatpush.msra.mxu0 0.0
        %1955 = vmatpush.msra.mxu0 0.0
        %1956 = vmatpush.msra.mxu0 0.0
        %1957 = vmatpush.msra.mxu0 0.0
        %1958 = vmatpush.msra.mxu0 0.0
        %1959 = vmatpush.msra.mxu0 0.0
        %1960 = vmatpush.msra.mxu0 0.0
        %1961 = vmatpush.msra.mxu0 0.0
        %1962 = vmatpush.msra.mxu0 0.0
        %1963 = vmatpush.msra.mxu0 %v1256
        %1964 = vmatmul.f32.gmra.mxu0 %v1946
        %v1965 = vpop.f32.mrf.mxu0
        %v1966 = vadd.f32 0.0, %v1965
        %1967 = vdwg.mxu0
        %v1969 = vsel %vm1617, %v1920, 0
        %1971 = vmatpush.msra.mxu0 0.0
        %1972 = vmatpush.msra.mxu0 0.0
        %1973 = vmatpush.msra.mxu0 0.0
        %1974 = vmatpush.msra.mxu0 0.0
        %1975 = vmatpush.msra.mxu0 0.0
        %1976 = vmatpush.msra.mxu0 0.0
        %1977 = vmatpush.msra.mxu0 0.0
        %1978 = vmatpush.msra.mxu0 0.0
        %1979 = vmatpush.msra.mxu0 0.0
        %1980 = vmatpush.msra.mxu0 0.0
        %1981 = vmatpush.msra.mxu0 0.0
        %1982 = vmatpush.msra.mxu0 0.0
        %1983 = vmatpush.msra.mxu0 0.0
        %1984 = vmatpush.msra.mxu0 0.0
        %1985 = vmatpush.msra.mxu0 0.0
        %1986 = vmatpush.msra.mxu0 %v1257
        %1987 = vmatmul.f32.gmra.mxu0 %v1969
        %v1988 = vpop.f32.mrf.mxu0
        %v1989 = vadd.f32 0.0, %v1988
        %1990 = vdwg.mxu0
        %v1992 = vsel %vm1617, %v1921, 0
        %1994 = vmatpush.msra.mxu0 0.0
        %1995 = vmatpush.msra.mxu0 0.0
        %1996 = vmatpush.msra.mxu0 0.0
        %1997 = vmatpush.msra.mxu0 0.0
        %1998 = vmatpush.msra.mxu0 0.0
        %1999 = vmatpush.msra.mxu0 0.0
        %2000 = vmatpush.msra.mxu0 0.0
        %2001 = vmatpush.msra.mxu0 0.0
        %2002 = vmatpush.msra.mxu0 0.0
        %2003 = vmatpush.msra.mxu0 0.0
        %2004 = vmatpush.msra.mxu0 0.0
        %2005 = vmatpush.msra.mxu0 0.0
        %2006 = vmatpush.msra.mxu0 0.0
        %2007 = vmatpush.msra.mxu0 0.0
        %2008 = vmatpush.msra.mxu0 0.0
        %2009 = vmatpush.msra.mxu0 %v1258
        %2010 = vmatmul.f32.gmra.mxu0 %v1992
        %v2011 = vpop.f32.mrf.mxu0
        %v2012 = vadd.f32 0.0, %v2011
        %2013 = vdwg.mxu0
        %v2014 = vsel %vm538, %v1943, 0.0
        %v2015 = vsel %vm538, %v1966, 0.0
        %v2016 = vadd.f32 %v2014, %v2015
        %v2017 = vsel %vm538, %v1989, 0.0
        %v2018 = vadd.f32 %v2016, %v2017
        %v2019 = vsel %vm538, %v2012, 0.0
        %v2020 = vadd.f32 %v2018, %v2019
        %v2021 = vperm.slane %v1272, 0
        %v2022 = vadd.f32 %v2020, %v2021
        %v2023 = vadd.f32 %v2022, %v1206
        %v2024 = vsel %vm538, %v2023, 0.0
        %2025 = vadd.xlane.f32.xlu0 %v2024
        %v2026 = vpop.xlane.xlu0 %2025
        %v2027 = vmul.f32 %v2026, %v551
        %v2028 = vsub.f32 %v2023, %v2027
        %v2029 = vmul.f32 %v2028, %v2028
        %v2030 = vsel %vm538, %v2029, 0.0
        %2031 = vadd.xlane.f32.xlu0 %v2030
        %v2032 = vpop.xlane.xlu0 %2031
        %v2033 = vmul.f32 %v2032, %v551
        %v2034 = vadd.f32 %v2033, 1e-05
        %v2035 = vrsqrt.pop %v2034
        %v2036 = vmul.f32 %v2035, %v2034
        %v2037 = vmul.f32 %v2036, %v2035
        %v2038 = vmul.f32 0.5, %v2037
        %v2039 = vsub.f32 1.5, %v2038
        %v2040 = vmul.f32 %v2035, %v2039
        %vm2041 = vweird.f32 %v2034
        %vm2042 = vweird.f32 %v2035
        %vm2043 = vmor %vm2041, %vm2042
        %v2044 = vsel %vm2043, %v2035, %v2040
        %v2045 = vmul.f32 %v2028, %v2044
        %v2046 = vperm.slane %v1271, 4
        %v2047 = vmul.f32 %v2045, %v2046
        %v2048 = vperm.slane %v1271, 5
        %v2049 = vadd.f32 %v2047, %v2048
        %v2050 = vperm.slane %v1272, 1
        %v2052 = vsel %vm538, %v2049, 0
        %2054 = vmatpush.msra.mxu0 0.0
        %2055 = vmatpush.msra.mxu0 0.0
        %2056 = vmatpush.msra.mxu0 0.0
        %2057 = vmatpush.msra.mxu0 0.0
        %2058 = vmatpush.msra.mxu0 0.0
        %2059 = vmatpush.msra.mxu0 0.0
        %2060 = vmatpush.msra.mxu0 0.0
        %2061 = vmatpush.msra.mxu0 0.0
        %2062 = vmatpush.msra.mxu0 0.0
        %2063 = vmatpush.msra.mxu0 0.0
        %2064 = vmatpush.msra.mxu0 0.0
        %2065 = vmatpush.msra.mxu0 0.0
        %2066 = vmatpush.msra.mxu0 %v1262
        %2067 = vmatpush.msra.mxu0 %v1261
        %2068 = vmatpush.msra.mxu0 %v1260
        %2069 = vmatpush.msra.mxu0 %v1259
        %2070 = vmatmul.f32.gmra.mxu0 %v2052
        %v2071 = vpop.f32.mrf.mxu0
        %v2072 = vadd.f32 %v2050, %v2071
        %2073 = vdwg.mxu0
        %v2074 = vmul.f32 %v2072, 0.5
        %v2075 = vmul.f32 %v2072, 0.70710677
        %v2076 = vand.u32 2147483647, %v2075
        %v2077 = vmul.f32 %v2076, 0.3275911
        %v2078 = vadd.f32 %v2077, 1.0
        %v2079 = vrcp.pop %v2078
        %v2080 = vmul.f32 %v2078, %v2079
        %v2081 = vsub.f32 1.0, %v2080
        %v2082 = vmul.f32 %v2079, %v2081
        %v2083 = vadd.f32 %v2079, %v2082
        %vm2084 = vweird.f32 %v2078
        %vm2085 = vweird.f32 %v2079
        %vm2086 = vmor %vm2084, %vm2085
        %v2087 = vsel %vm2086, %v2079, %v2083
        %v2088 = vand.u32 2147483647, %v2078
        %vm2089 = vcmp.eq.f32.partialorder %v2088, 8.507059e+37
        %v2090 = vand.u32 %v2078, 2147483648
        %v2091 = vor.u32 1.1754944e-38, %v2090
        %v2092 = vsel %vm2089, %v2091, %v2087
        %v2093 = vmul.f32 1.0, %v2092
        %v2094 = vmul.f32 %v2093, 1.0614054
        %v2095 = vadd.f32 %v2094, -1.4531521
        %v2096 = vmul.f32 %v2095, %v2093
        %v2097 = vadd.f32 %v2096, 1.4214138
        %v2098 = vmul.f32 %v2097, %v2093
        %v2099 = vadd.f32 %v2098, -0.28449672
        %v2100 = vmul.f32 %v2099, %v2093
        %v2101 = vadd.f32 %v2100, 0.2548296
        %v2102 = vmul.f32 %v2101, %v2093
        %v2103 = vsub.f32 0.0, %v2076
        %v2104 = vmul.f32 %v2103, %v2076
        %v2105 = vmul.f32 %v2104, 1.442695
        %v2106 = vpow.pop %v2105
        %v2107 = vmul.f32 %v2102, %v2106
        %v2108 = vsub.f32 1.0, %v2107
        %vm2109 = vcmp.ge.f32.partialorder %v2075, 0.0
        %v2110 = vsub.f32 0.0, %v2108
        %v2111 = vsel %vm2109, %v2108, %v2110
        %v2112 = vadd.f32 %v2111, 1.0
        %v2113 = vmul.f32 %v2074, %v2112
        %v2114 = vsel %vm538, %v2113, 0.0
        %2115 = vadd.xlane.f32.xlu0 %v2114
        %v2116 = vpop.xlane.xlu0 %2115
        %v2117 = vmul.f32 %v2116, %v551
        %v2118 = vsub.f32 %v2113, %v2117
        %v2119 = vmul.f32 %v2118, %v2118
        %v2120 = vsel %vm538, %v2119, 0.0
        %2121 = vadd.xlane.f32.xlu0 %v2120
        %v2122 = vpop.xlane.xlu0 %2121
        %v2123 = vmul.f32 %v2122, %v551
        %v2124 = vadd.f32 %v2123, 1e-05
        %v2125 = vrsqrt.pop %v2124
        %v2126 = vmul.f32 %v2125, %v2124
        %v2127 = vmul.f32 %v2126, %v2125
        %v2128 = vmul.f32 0.5, %v2127
        %v2129 = vsub.f32 1.5, %v2128
        %v2130 = vmul.f32 %v2125, %v2129
        %vm2131 = vweird.f32 %v2124
        %vm2132 = vweird.f32 %v2125
        %vm2133 = vmor %vm2131, %vm2132
        %v2134 = vsel %vm2133, %v2125, %v2130
        %v2135 = vmul.f32 %v2118, %v2134
        %v2136 = vperm.slane %v1271, 6
        %v2137 = vmul.f32 %v2135, %v2136
        %v2138 = vperm.slane %v1271, 7
        %v2139 = vadd.f32 %v2137, %v2138
        %v2140 = vperm.slane %v1272, 2
        %v2142 = vsel %vm538, %v2139, 0
        %2144 = vmatpush.msra.mxu0 0.0
        %2145 = vmatpush.msra.mxu0 0.0
        %2146 = vmatpush.msra.mxu0 0.0
        %2147 = vmatpush.msra.mxu0 0.0
        %2148 = vmatpush.msra.mxu0 0.0
        %2149 = vmatpush.msra.mxu0 0.0
        %2150 = vmatpush.msra.mxu0 0.0
        %2151 = vmatpush.msra.mxu0 0.0
        %2152 = vmatpush.msra.mxu0 0.0
        %2153 = vmatpush.msra.mxu0 0.0
        %2154 = vmatpush.msra.mxu0 0.0
        %2155 = vmatpush.msra.mxu0 0.0
        %2156 = vmatpush.msra.mxu0 %v1266
        %2157 = vmatpush.msra.mxu0 %v1265
        %2158 = vmatpush.msra.mxu0 %v1264
        %2159 = vmatpush.msra.mxu0 %v1263
        %2160 = vmatmul.f32.gmra.mxu0 %v2142
        %v2161 = vpop.f32.mrf.mxu0
        %v2162 = vadd.f32 %v2140, %v2161
        %2163 = vdwg.mxu0
        %v2164 = vmul.f32 %v2162, 0.5
        %v2165 = vmul.f32 %v2162, 0.70710677
        %v2166 = vand.u32 2147483647, %v2165
        %v2167 = vmul.f32 %v2166, 0.3275911
        %v2168 = vadd.f32 %v2167, 1.0
        %v2169 = vrcp.pop %v2168
        %v2170 = vmul.f32 %v2168, %v2169
        %v2171 = vsub.f32 1.0, %v2170
        %v2172 = vmul.f32 %v2169, %v2171
        %v2173 = vadd.f32 %v2169, %v2172
        %vm2174 = vweird.f32 %v2168
        %vm2175 = vweird.f32 %v2169
        %vm2176 = vmor %vm2174, %vm2175
        %v2177 = vsel %vm2176, %v2169, %v2173
        %v2178 = vand.u32 2147483647, %v2168
        %vm2179 = vcmp.eq.f32.partialorder %v2178, 8.507059e+37
        %v2180 = vand.u32 %v2168, 2147483648
        %v2181 = vor.u32 1.1754944e-38, %v2180
        %v2182 = vsel %vm2179, %v2181, %v2177
        %v2183 = vmul.f32 1.0, %v2182
        %v2184 = vmul.f32 %v2183, 1.0614054
        %v2185 = vadd.f32 %v2184, -1.4531521
        %v2186 = vmul.f32 %v2185, %v2183
        %v2187 = vadd.f32 %v2186, 1.4214138
        %v2188 = vmul.f32 %v2187, %v2183
        %v2189 = vadd.f32 %v2188, -0.28449672
        %v2190 = vmul.f32 %v2189, %v2183
        %v2191 = vadd.f32 %v2190, 0.2548296
        %v2192 = vmul.f32 %v2191, %v2183
        %v2193 = vsub.f32 0.0, %v2166
        %v2194 = vmul.f32 %v2193, %v2166
        %v2195 = vmul.f32 %v2194, 1.442695
        %v2196 = vpow.pop %v2195
        %v2197 = vmul.f32 %v2192, %v2196
        %v2198 = vsub.f32 1.0, %v2197
        %vm2199 = vcmp.ge.f32.partialorder %v2165, 0.0
        %v2200 = vsub.f32 0.0, %v2198
        %v2201 = vsel %vm2199, %v2198, %v2200
        %v2202 = vadd.f32 %v2201, 1.0
        %v2203 = vmul.f32 %v2164, %v2202
        %v2204 = vperm.slane %v1272, 3
        %v2206 = vsel %vm538, %v2203, 0
        %2208 = vmatpush.msra.mxu0 0.0
        %2209 = vmatpush.msra.mxu0 0.0
        %2210 = vmatpush.msra.mxu0 0.0
        %2211 = vmatpush.msra.mxu0 0.0
        %2212 = vmatpush.msra.mxu0 0.0
        %2213 = vmatpush.msra.mxu0 0.0
        %2214 = vmatpush.msra.mxu0 0.0
        %2215 = vmatpush.msra.mxu0 0.0
        %2216 = vmatpush.msra.mxu0 0.0
        %2217 = vmatpush.msra.mxu0 0.0
        %2218 = vmatpush.msra.mxu0 0.0
        %2219 = vmatpush.msra.mxu0 0.0
        %2220 = vmatpush.msra.mxu0 %v1270
        %2221 = vmatpush.msra.mxu0 %v1269
        %2222 = vmatpush.msra.mxu0 %v1268
        %2223 = vmatpush.msra.mxu0 %v1267
        %2224 = vmatmul.f32.gmra.mxu0 %v2206
        %v2225 = vpop.f32.mrf.mxu0
        %v2226 = vadd.f32 %v2204, %v2225
        %2227 = vdwg.mxu0
        %v2228 = vadd.f32 %v2226, %v2023
        %s2229 = scalar_lea.vmem %s8, 128
        %v2230 = vld [vmem:[%s2229] sm:$0xff]
        %v2231 = vld [vmem:[%s2229 + $0x8] sm:$0xff]
        %v2232 = vld [vmem:[%s2229 + $0x10] sm:$0xff]
        %v2233 = vld [vmem:[%s2229 + $0x18] sm:$0xff]
        %v2234 = vld [vmem:[%s2229 + $0x20] sm:$0xff]
        %v2235 = vld [vmem:[%s2229 + $0x28] sm:$0xff]
        %v2236 = vld [vmem:[%s2229 + $0x30] sm:$0xff]
        %v2237 = vld [vmem:[%s2229 + $0x38] sm:$0xff]
        %v2238 = vld [vmem:[%s2229 + $0x40] sm:$0xff]
        %v2239 = vld [vmem:[%s2229 + $0x48] sm:$0xff]
        %v2240 = vld [vmem:[%s2229 + $0x50] sm:$0xff]
        %v2241 = vld [vmem:[%s2229 + $0x58] sm:$0xff]
        %v2242 = vld [vmem:[%s2229 + $0x60] sm:$0xff]
        %v2243 = vld [vmem:[%s2229 + $0x68] sm:$0xff]
        %v2244 = vld [vmem:[%s2229 + $0x70] sm:$0xff]
        %v2245 = vld [vmem:[%s2229 + $0x78] sm:$0xff]
        %s2246 = scalar_lea.vmem %s9, 256
        %v2247 = vld [vmem:[%s2246] sm:$0xff]
        %v2248 = vld [vmem:[%s2246 + $0x8] sm:$0xff]
        %v2249 = vld [vmem:[%s2246 + $0x10] sm:$0xff]
        %v2250 = vld [vmem:[%s2246 + $0x18] sm:$0xff]
        %v2251 = vld [vmem:[%s2246 + $0x20] sm:$0xff]
        %v2252 = vld [vmem:[%s2246 + $0x28] sm:$0xff]
        %v2253 = vld [vmem:[%s2246 + $0x30] sm:$0xff]
        %v2254 = vld [vmem:[%s2246 + $0x38] sm:$0xff]
        %v2255 = vld [vmem:[%s2246 + $0x40] sm:$0xff]
        %v2256 = vld [vmem:[%s2246 + $0x48] sm:$0xff]
        %v2257 = vld [vmem:[%s2246 + $0x50] sm:$0xff]
        %v2258 = vld [vmem:[%s2246 + $0x58] sm:$0xff]
        %v2259 = vld [vmem:[%s2246 + $0x60] sm:$0xff]
        %v2260 = vld [vmem:[%s2246 + $0x68] sm:$0xff]
        %v2261 = vld [vmem:[%s2246 + $0x70] sm:$0xff]
        %v2262 = vld [vmem:[%s2246 + $0x78] sm:$0xff]
        %v2263 = vld [vmem:[%s2246 + $0x80] sm:$0xff]
        %v2264 = vld [vmem:[%s2246 + $0x88] sm:$0xff]
        %v2265 = vld [vmem:[%s2246 + $0x90] sm:$0xff]
        %v2266 = vld [vmem:[%s2246 + $0x98] sm:$0xff]
        %v2267 = vld [vmem:[%s2246 + $0xa0] sm:$0xff]
        %v2268 = vld [vmem:[%s2246 + $0xa8] sm:$0xff]
        %v2269 = vld [vmem:[%s2246 + $0xb0] sm:$0xff]
        %v2270 = vld [vmem:[%s2246 + $0xb8] sm:$0xff]
        %v2271 = vld [vmem:[%s2246 + $0xc0] sm:$0xff]
        %v2272 = vld [vmem:[%s2246 + $0xc8] sm:$0xff]
        %v2273 = vld [vmem:[%s2246 + $0xd0] sm:$0xff]
        %v2274 = vld [vmem:[%s2246 + $0xd8] sm:$0xff]
        %v2275 = vld [vmem:[%s2246 + $0xe0] sm:$0xff]
        %v2276 = vld [vmem:[%s2246 + $0xe8] sm:$0xff]
        %v2277 = vld [vmem:[%s2246 + $0xf0] sm:$0xff]
        %v2278 = vld [vmem:[%s2246 + $0xf8] sm:$0xff]
        %s2279 = scalar_lea.vmem %s10, 32
        %v2280 = vld [vmem:[%s2279] sm:$0xff]
        %v2281 = vld [vmem:[%s2279 + $0x8] sm:$0xff]
        %v2282 = vld [vmem:[%s2279 + $0x10] sm:$0xff]
        %v2283 = vld [vmem:[%s2279 + $0x18] sm:$0xff]
        %s2284 = scalar_lea.vmem %s11, 96
        %v2285 = vld [vmem:[%s2284] sm:$0xff]
        %v2286 = vld [vmem:[%s2284 + $0x8] sm:$0xff]
        %v2287 = vld [vmem:[%s2284 + $0x10] sm:$0xff]
        %v2288 = vld [vmem:[%s2284 + $0x18] sm:$0xff]
        %v2289 = vld [vmem:[%s2284 + $0x20] sm:$0xff]
        %v2290 = vld [vmem:[%s2284 + $0x28] sm:$0xff]
        %v2291 = vld [vmem:[%s2284 + $0x30] sm:$0xff]
        %v2292 = vld [vmem:[%s2284 + $0x38] sm:$0xff]
        %v2293 = vld [vmem:[%s2284 + $0x40] sm:$0xff]
        %v2294 = vld [vmem:[%s2284 + $0x48] sm:$0xff]
        %v2295 = vld [vmem:[%s2284 + $0x50] sm:$0xff]
        %v2296 = vld [vmem:[%s2284 + $0x58] sm:$0xff]
        %s2297 = scalar_lea.vmem %s12, 16
        %v2298 = vld [vmem:[%s2297] sm:$0xff]
        %v2299 = vld [vmem:[%s2297 + $0x8] sm:$0xff]
        %s2300 = scalar_lea.vmem %s13, 20
        %v2301 = vld [vmem:[%s2300] sm:$0x1]
        %v2302 = vld [vmem:[%s2300 + $0x1] sm:$0x1]
        %v2303 = vld [vmem:[%s2300 + $0x2] sm:$0x1]
        %v2304 = vld [vmem:[%s2300 + $0x3] sm:$0x1]
        %v2305 = vld [vmem:[%s2300 + $0x4] sm:$0x1]
        %v2306 = vld [vmem:[%s2300 + $0x5] sm:$0x1]
        %v2307 = vld [vmem:[%s2300 + $0x6] sm:$0x1]
        %v2308 = vld [vmem:[%s2300 + $0x7] sm:$0x1]
        %v2309 = vld [vmem:[%s2300 + $0x8] sm:$0x1]
        %v2310 = vld [vmem:[%s2300 + $0x9] sm:$0x1]
        %v2311 = vld [vmem:[%s2300 + $0xa] sm:$0x1]
        %v2312 = vld [vmem:[%s2300 + $0xb] sm:$0x1]
        %v2313 = vld [vmem:[%s2300 + $0xc] sm:$0x1]
        %v2314 = vld [vmem:[%s2300 + $0xd] sm:$0x1]
        %v2315 = vld [vmem:[%s2300 + $0xe] sm:$0x1]
        %v2316 = vld [vmem:[%s2300 + $0xf] sm:$0x1]
        %v2317 = vld [vmem:[%s2300 + $0x10] sm:$0x1]
        %v2318 = vld [vmem:[%s2300 + $0x11] sm:$0x1]
        %v2319 = vld [vmem:[%s2300 + $0x12] sm:$0x1]
        %v2320 = vld [vmem:[%s2300 + $0x13] sm:$0x1]
        %v2321 = vsel %vm538, %v2228, 0.0
        %2322 = vadd.xlane.f32.xlu0 %v2321
        %v2323 = vpop.xlane.xlu0 %2322
        %v2324 = vmul.f32 %v2323, %v551
        %v2325 = vsub.f32 %v2228, %v2324
        %v2326 = vmul.f32 %v2325, %v2325
        %v2327 = vsel %vm538, %v2326, 0.0
        %2328 = vadd.xlane.f32.xlu0 %v2327
        %v2329 = vpop.xlane.xlu0 %2328
        %v2330 = vmul.f32 %v2329, %v551
        %v2331 = vadd.f32 %v2330, 1e-05
        %v2332 = vrsqrt.pop %v2331
        %v2333 = vmul.f32 %v2332, %v2331
        %v2334 = vmul.f32 %v2333, %v2332
        %v2335 = vmul.f32 0.5, %v2334
        %v2336 = vsub.f32 1.5, %v2335
        %v2337 = vmul.f32 %v2332, %v2336
        %vm2338 = vweird.f32 %v2331
        %vm2339 = vweird.f32 %v2332
        %vm2340 = vmor %vm2338, %vm2339
        %v2341 = vsel %vm2340, %v2332, %v2337
        %v2342 = vmul.f32 %v2325, %v2341
        %v2343 = vperm.slane %v2298, 0
        %v2344 = vmul.f32 %v2342, %v2343
        %v2345 = vperm.slane %v2298, 1
        %v2346 = vadd.f32 %v2344, %v2345
        %v2347 = vperm.slane %v2298, 2
        %v2348 = vmul.f32 %v2342, %v2347
        %v2349 = vperm.slane %v2298, 3
        %v2350 = vadd.f32 %v2348, %v2349
        %v2355 = vperm.slane %v2301, 0
        %v2356 = vperm.slane %v2302, 0
        %v2357 = vperm.slane %v2303, 0
        %v2358 = vperm.slane %v2304, 0
        %v2364 = vsel %vm538, %v2350, 0
        %2366 = vmatpush.msra.mxu0 0.0
        %2367 = vmatpush.msra.mxu0 0.0
        %2368 = vmatpush.msra.mxu0 0.0
        %2369 = vmatpush.msra.mxu0 0.0
        %2370 = vmatpush.msra.mxu0 0.0
        %2371 = vmatpush.msra.mxu0 0.0
        %2372 = vmatpush.msra.mxu0 0.0
        %2373 = vmatpush.msra.mxu0 0.0
        %2374 = vmatpush.msra.mxu0 0.0
        %2375 = vmatpush.msra.mxu0 0.0
        %2376 = vmatpush.msra.mxu0 0.0
        %2377 = vmatpush.msra.mxu0 0.0
        %2378 = vmatpush.msra.mxu0 %v2233
        %2379 = vmatpush.msra.mxu0 %v2232
        %2380 = vmatpush.msra.mxu0 %v2231
        %2381 = vmatpush.msra.mxu0 %v2230
        %2382 = vmatmul.f32.gmra.mxu0 %v2364
        %v2383 = vpop.f32.mrf.mxu0
        %v2384 = vadd.f32 %v2355, %v2383
        %2385 = vdwg.mxu0
        %2386 = vmatpush.msra.mxu0 0.0
        %2387 = vmatpush.msra.mxu0 0.0
        %2388 = vmatpush.msra.mxu0 0.0
        %2389 = vmatpush.msra.mxu0 0.0
        %2390 = vmatpush.msra.mxu0 0.0
        %2391 = vmatpush.msra.mxu0 0.0
        %2392 = vmatpush.msra.mxu0 0.0
        %2393 = vmatpush.msra.mxu0 0.0
        %2394 = vmatpush.msra.mxu0 0.0
        %2395 = vmatpush.msra.mxu0 0.0
        %2396 = vmatpush.msra.mxu0 0.0
        %2397 = vmatpush.msra.mxu0 0.0
        %2398 = vmatpush.msra.mxu0 %v2237
        %2399 = vmatpush.msra.mxu0 %v2236
        %2400 = vmatpush.msra.mxu0 %v2235
        %2401 = vmatpush.msra.mxu0 %v2234
        %2402 = vmatmul.f32.gmra.mxu0 %v2364
        %v2403 = vpop.f32.mrf.mxu0
        %v2404 = vadd.f32 %v2356, %v2403
        %2405 = vdwg.mxu0
        %2406 = vmatpush.msra.mxu0 0.0
        %2407 = vmatpush.msra.mxu0 0.0
        %2408 = vmatpush.msra.mxu0 0.0
        %2409 = vmatpush.msra.mxu0 0.0
        %2410 = vmatpush.msra.mxu0 0.0
        %2411 = vmatpush.msra.mxu0 0.0
        %2412 = vmatpush.msra.mxu0 0.0
        %2413 = vmatpush.msra.mxu0 0.0
        %2414 = vmatpush.msra.mxu0 0.0
        %2415 = vmatpush.msra.mxu0 0.0
        %2416 = vmatpush.msra.mxu0 0.0
        %2417 = vmatpush.msra.mxu0 0.0
        %2418 = vmatpush.msra.mxu0 %v2241
        %2419 = vmatpush.msra.mxu0 %v2240
        %2420 = vmatpush.msra.mxu0 %v2239
        %2421 = vmatpush.msra.mxu0 %v2238
        %2422 = vmatmul.f32.gmra.mxu0 %v2364
        %v2423 = vpop.f32.mrf.mxu0
        %v2424 = vadd.f32 %v2357, %v2423
        %2425 = vdwg.mxu0
        %2426 = vmatpush.msra.mxu0 0.0
        %2427 = vmatpush.msra.mxu0 0.0
        %2428 = vmatpush.msra.mxu0 0.0
        %2429 = vmatpush.msra.mxu0 0.0
        %2430 = vmatpush.msra.mxu0 0.0
        %2431 = vmatpush.msra.mxu0 0.0
        %2432 = vmatpush.msra.mxu0 0.0
        %2433 = vmatpush.msra.mxu0 0.0
        %2434 = vmatpush.msra.mxu0 0.0
        %2435 = vmatpush.msra.mxu0 0.0
        %2436 = vmatpush.msra.mxu0 0.0
        %2437 = vmatpush.msra.mxu0 0.0
        %2438 = vmatpush.msra.mxu0 %v2245
        %2439 = vmatpush.msra.mxu0 %v2244
        %2440 = vmatpush.msra.mxu0 %v2243
        %2441 = vmatpush.msra.mxu0 %v2242
        %2442 = vmatmul.f32.gmra.mxu0 %v2364
        %v2443 = vpop.f32.mrf.mxu0
        %v2444 = vadd.f32 %v2358, %v2443
        %2445 = vdwg.mxu0
        %v2446 = vmul.f32 %v2384, 0.35355338
        %v2447 = vmul.f32 %v2404, 0.35355338
        %v2448 = vmul.f32 %v2424, 0.35355338
        %v2449 = vmul.f32 %v2444, 0.35355338
        %v2451 = vsel %vm538, %v2346, 0
        %2453 = vmatpush.msra.mxu0 0.0
        %2454 = vmatpush.msra.mxu0 0.0
        %2455 = vmatpush.msra.mxu0 0.0
        %2456 = vmatpush.msra.mxu0 0.0
        %2457 = vmatpush.msra.mxu0 0.0
        %2458 = vmatpush.msra.mxu0 0.0
        %2459 = vmatpush.msra.mxu0 0.0
        %2460 = vmatpush.msra.mxu0 0.0
        %2461 = vmatpush.msra.mxu0 0.0
        %2462 = vmatpush.msra.mxu0 0.0
        %2463 = vmatpush.msra.mxu0 0.0
        %2464 = vmatpush.msra.mxu0 0.0
        %2465 = vmatpush.msra.mxu0 %v2250
        %2466 = vmatpush.msra.mxu0 %v2249
        %2467 = vmatpush.msra.mxu0 %v2248
        %2468 = vmatpush.msra.mxu0 %v2247
        %2469 = vmatmul.f32.gmra.mxu0 %v2451
        %v2470 = vpop.f32.mrf.mxu0
        %v2471 = vadd.f32 0.0, %v2470
        %2472 = vdwg.mxu0
        %2473 = vmatpush.msra.mxu0 0.0
        %2474 = vmatpush.msra.mxu0 0.0
        %2475 = vmatpush.msra.mxu0 0.0
        %2476 = vmatpush.msra.mxu0 0.0
        %2477 = vmatpush.msra.mxu0 0.0
        %2478 = vmatpush.msra.mxu0 0.0
        %2479 = vmatpush.msra.mxu0 0.0
        %2480 = vmatpush.msra.mxu0 0.0
        %2481 = vmatpush.msra.mxu0 0.0
        %2482 = vmatpush.msra.mxu0 0.0
        %2483 = vmatpush.msra.mxu0 0.0
        %2484 = vmatpush.msra.mxu0 0.0
        %2485 = vmatpush.msra.mxu0 %v2254
        %2486 = vmatpush.msra.mxu0 %v2253
        %2487 = vmatpush.msra.mxu0 %v2252
        %2488 = vmatpush.msra.mxu0 %v2251
        %2489 = vmatmul.f32.gmra.mxu0 %v2451
        %v2490 = vpop.f32.mrf.mxu0
        %v2491 = vadd.f32 0.0, %v2490
        %2492 = vdwg.mxu0
        %2493 = vmatpush.msra.mxu0 0.0
        %2494 = vmatpush.msra.mxu0 0.0
        %2495 = vmatpush.msra.mxu0 0.0
        %2496 = vmatpush.msra.mxu0 0.0
        %2497 = vmatpush.msra.mxu0 0.0
        %2498 = vmatpush.msra.mxu0 0.0
        %2499 = vmatpush.msra.mxu0 0.0
        %2500 = vmatpush.msra.mxu0 0.0
        %2501 = vmatpush.msra.mxu0 0.0
        %2502 = vmatpush.msra.mxu0 0.0
        %2503 = vmatpush.msra.mxu0 0.0
        %2504 = vmatpush.msra.mxu0 0.0
        %2505 = vmatpush.msra.mxu0 %v2258
        %2506 = vmatpush.msra.mxu0 %v2257
        %2507 = vmatpush.msra.mxu0 %v2256
        %2508 = vmatpush.msra.mxu0 %v2255
        %2509 = vmatmul.f32.gmra.mxu0 %v2451
        %v2510 = vpop.f32.mrf.mxu0
        %v2511 = vadd.f32 0.0, %v2510
        %2512 = vdwg.mxu0
        %2513 = vmatpush.msra.mxu0 0.0
        %2514 = vmatpush.msra.mxu0 0.0
        %2515 = vmatpush.msra.mxu0 0.0
        %2516 = vmatpush.msra.mxu0 0.0
        %2517 = vmatpush.msra.mxu0 0.0
        %2518 = vmatpush.msra.mxu0 0.0
        %2519 = vmatpush.msra.mxu0 0.0
        %2520 = vmatpush.msra.mxu0 0.0
        %2521 = vmatpush.msra.mxu0 0.0
        %2522 = vmatpush.msra.mxu0 0.0
        %2523 = vmatpush.msra.mxu0 0.0
        %2524 = vmatpush.msra.mxu0 0.0
        %2525 = vmatpush.msra.mxu0 %v2262
        %2526 = vmatpush.msra.mxu0 %v2261
        %2527 = vmatpush.msra.mxu0 %v2260
        %2528 = vmatpush.msra.mxu0 %v2259
        %2529 = vmatmul.f32.gmra.mxu0 %v2451
        %v2530 = vpop.f32.mrf.mxu0
        %v2531 = vadd.f32 0.0, %v2530
        %2532 = vdwg.mxu0
        %2533 = vmatpush.msra.mxu0 0.0
        %2534 = vmatpush.msra.mxu0 0.0
        %2535 = vmatpush.msra.mxu0 0.0
        %2536 = vmatpush.msra.mxu0 0.0
        %2537 = vmatpush.msra.mxu0 0.0
        %2538 = vmatpush.msra.mxu0 0.0
        %2539 = vmatpush.msra.mxu0 0.0
        %2540 = vmatpush.msra.mxu0 0.0
        %2541 = vmatpush.msra.mxu0 0.0
        %2542 = vmatpush.msra.mxu0 0.0
        %2543 = vmatpush.msra.mxu0 0.0
        %2544 = vmatpush.msra.mxu0 0.0
        %2545 = vmatpush.msra.mxu0 %v2266
        %2546 = vmatpush.msra.mxu0 %v2265
        %2547 = vmatpush.msra.mxu0 %v2264
        %2548 = vmatpush.msra.mxu0 %v2263
        %2549 = vmatmul.f32.gmra.mxu0 %v2451
        %v2550 = vpop.f32.mrf.mxu0
        %v2551 = vadd.f32 0.0, %v2550
        %2552 = vdwg.mxu0
        %2553 = vmatpush.msra.mxu0 0.0
        %2554 = vmatpush.msra.mxu0 0.0
        %2555 = vmatpush.msra.mxu0 0.0
        %2556 = vmatpush.msra.mxu0 0.0
        %2557 = vmatpush.msra.mxu0 0.0
        %2558 = vmatpush.msra.mxu0 0.0
        %2559 = vmatpush.msra.mxu0 0.0
        %2560 = vmatpush.msra.mxu0 0.0
        %2561 = vmatpush.msra.mxu0 0.0
        %2562 = vmatpush.msra.mxu0 0.0
        %2563 = vmatpush.msra.mxu0 0.0
        %2564 = vmatpush.msra.mxu0 0.0
        %2565 = vmatpush.msra.mxu0 %v2270
        %2566 = vmatpush.msra.mxu0 %v2269
        %2567 = vmatpush.msra.mxu0 %v2268
        %2568 = vmatpush.msra.mxu0 %v2267
        %2569 = vmatmul.f32.gmra.mxu0 %v2451
        %v2570 = vpop.f32.mrf.mxu0
        %v2571 = vadd.f32 0.0, %v2570
        %2572 = vdwg.mxu0
        %2573 = vmatpush.msra.mxu0 0.0
        %2574 = vmatpush.msra.mxu0 0.0
        %2575 = vmatpush.msra.mxu0 0.0
        %2576 = vmatpush.msra.mxu0 0.0
        %2577 = vmatpush.msra.mxu0 0.0
        %2578 = vmatpush.msra.mxu0 0.0
        %2579 = vmatpush.msra.mxu0 0.0
        %2580 = vmatpush.msra.mxu0 0.0
        %2581 = vmatpush.msra.mxu0 0.0
        %2582 = vmatpush.msra.mxu0 0.0
        %2583 = vmatpush.msra.mxu0 0.0
        %2584 = vmatpush.msra.mxu0 0.0
        %2585 = vmatpush.msra.mxu0 %v2274
        %2586 = vmatpush.msra.mxu0 %v2273
        %2587 = vmatpush.msra.mxu0 %v2272
        %2588 = vmatpush.msra.mxu0 %v2271
        %2589 = vmatmul.f32.gmra.mxu0 %v2451
        %v2590 = vpop.f32.mrf.mxu0
        %v2591 = vadd.f32 0.0, %v2590
        %2592 = vdwg.mxu0
        %2593 = vmatpush.msra.mxu0 0.0
        %2594 = vmatpush.msra.mxu0 0.0
        %2595 = vmatpush.msra.mxu0 0.0
        %2596 = vmatpush.msra.mxu0 0.0
        %2597 = vmatpush.msra.mxu0 0.0
        %2598 = vmatpush.msra.mxu0 0.0
        %2599 = vmatpush.msra.mxu0 0.0
        %2600 = vmatpush.msra.mxu0 0.0
        %2601 = vmatpush.msra.mxu0 0.0
        %2602 = vmatpush.msra.mxu0 0.0
        %2603 = vmatpush.msra.mxu0 0.0
        %2604 = vmatpush.msra.mxu0 0.0
        %2605 = vmatpush.msra.mxu0 %v2278
        %2606 = vmatpush.msra.mxu0 %v2277
        %2607 = vmatpush.msra.mxu0 %v2276
        %2608 = vmatpush.msra.mxu0 %v2275
        %2609 = vmatmul.f32.gmra.mxu0 %v2451
        %v2610 = vpop.f32.mrf.mxu0
        %v2611 = vadd.f32 0.0, %v2610
        %2612 = vdwg.mxu0
        %v2617 = vperm.slane %v2305, 0
        %v2618 = vperm.slane %v2306, 0
        %v2619 = vperm.slane %v2307, 0
        %v2620 = vperm.slane %v2308, 0
        %v2625 = vadd.f32 %v2471, %v2617
        %v2626 = vadd.f32 %v2491, %v2618
        %v2627 = vadd.f32 %v2511, %v2619
        %v2628 = vadd.f32 %v2531, %v2620
        %v2633 = vperm.slane %v2309, 0
        %v2634 = vperm.slane %v2310, 0
        %v2635 = vperm.slane %v2311, 0
        %v2636 = vperm.slane %v2312, 0
        %v2641 = vadd.f32 %v2551, %v2633
        %v2642 = vadd.f32 %v2571, %v2634
        %v2643 = vadd.f32 %v2591, %v2635
        %v2644 = vadd.f32 %v2611, %v2636
        %v2646 = vsel %vm1617, %v2446, 0
        %v2649 = vsel %vm1617, %v2625, 0
        %2651 = vmatpush.xpose.msra.mxu0 0.0
        %2652 = vmatpush.xpose.msra.mxu0 0.0
        %2653 = vmatpush.xpose.msra.mxu0 0.0
        %2654 = vmatpush.xpose.msra.mxu0 0.0
        %2655 = vmatpush.xpose.msra.mxu0 0.0
        %2656 = vmatpush.xpose.msra.mxu0 0.0
        %2657 = vmatpush.xpose.msra.mxu0 0.0
        %2658 = vmatpush.xpose.msra.mxu0 0.0
        %2659 = vmatpush.xpose.msra.mxu0 0.0
        %2660 = vmatpush.xpose.msra.mxu0 0.0
        %2661 = vmatpush.xpose.msra.mxu0 0.0
        %2662 = vmatpush.xpose.msra.mxu0 0.0
        %2663 = vmatpush.xpose.msra.mxu0 0.0
        %2664 = vmatpush.xpose.msra.mxu0 0.0
        %2665 = vmatpush.xpose.msra.mxu0 0.0
        %2666 = vmatpush.xpose.msra.mxu0 %v2649
        %2667 = vmatmul.f32.gmra.mxu0 %v2646
        %v2668 = vpop.f32.mrf.mxu0
        %v2669 = vadd.f32 0.0, %v2668
        %2670 = vdwg.mxu0
        %v2672 = vsel %vm1617, %v2447, 0
        %v2675 = vsel %vm1617, %v2626, 0
        %2677 = vmatpush.xpose.msra.mxu0 0.0
        %2678 = vmatpush.xpose.msra.mxu0 0.0
        %2679 = vmatpush.xpose.msra.mxu0 0.0
        %2680 = vmatpush.xpose.msra.mxu0 0.0
        %2681 = vmatpush.xpose.msra.mxu0 0.0
        %2682 = vmatpush.xpose.msra.mxu0 0.0
        %2683 = vmatpush.xpose.msra.mxu0 0.0
        %2684 = vmatpush.xpose.msra.mxu0 0.0
        %2685 = vmatpush.xpose.msra.mxu0 0.0
        %2686 = vmatpush.xpose.msra.mxu0 0.0
        %2687 = vmatpush.xpose.msra.mxu0 0.0
        %2688 = vmatpush.xpose.msra.mxu0 0.0
        %2689 = vmatpush.xpose.msra.mxu0 0.0
        %2690 = vmatpush.xpose.msra.mxu0 0.0
        %2691 = vmatpush.xpose.msra.mxu0 0.0
        %2692 = vmatpush.xpose.msra.mxu0 %v2675
        %2693 = vmatmul.f32.gmra.mxu0 %v2672
        %v2694 = vpop.f32.mrf.mxu0
        %v2695 = vadd.f32 0.0, %v2694
        %2696 = vdwg.mxu0
        %v2698 = vsel %vm1617, %v2448, 0
        %v2701 = vsel %vm1617, %v2627, 0
        %2703 = vmatpush.xpose.msra.mxu0 0.0
        %2704 = vmatpush.xpose.msra.mxu0 0.0
        %2705 = vmatpush.xpose.msra.mxu0 0.0
        %2706 = vmatpush.xpose.msra.mxu0 0.0
        %2707 = vmatpush.xpose.msra.mxu0 0.0
        %2708 = vmatpush.xpose.msra.mxu0 0.0
        %2709 = vmatpush.xpose.msra.mxu0 0.0
        %2710 = vmatpush.xpose.msra.mxu0 0.0
        %2711 = vmatpush.xpose.msra.mxu0 0.0
        %2712 = vmatpush.xpose.msra.mxu0 0.0
        %2713 = vmatpush.xpose.msra.mxu0 0.0
        %2714 = vmatpush.xpose.msra.mxu0 0.0
        %2715 = vmatpush.xpose.msra.mxu0 0.0
        %2716 = vmatpush.xpose.msra.mxu0 0.0
        %2717 = vmatpush.xpose.msra.mxu0 0.0
        %2718 = vmatpush.xpose.msra.mxu0 %v2701
        %2719 = vmatmul.f32.gmra.mxu0 %v2698
        %v2720 = vpop.f32.mrf.mxu0
        %v2721 = vadd.f32 0.0, %v2720
        %2722 = vdwg.mxu0
        %v2724 = vsel %vm1617, %v2449, 0
        %v2727 = vsel %vm1617, %v2628, 0
        %2729 = vmatpush.xpose.msra.mxu0 0.0
        %2730 = vmatpush.xpose.msra.mxu0 0.0
        %2731 = vmatpush.xpose.msra.mxu0 0.0
        %2732 = vmatpush.xpose.msra.mxu0 0.0
        %2733 = vmatpush.xpose.msra.mxu0 0.0
        %2734 = vmatpush.xpose.msra.mxu0 0.0
        %2735 = vmatpush.xpose.msra.mxu0 0.0
        %2736 = vmatpush.xpose.msra.mxu0 0.0
        %2737 = vmatpush.xpose.msra.mxu0 0.0
        %2738 = vmatpush.xpose.msra.mxu0 0.0
        %2739 = vmatpush.xpose.msra.mxu0 0.0
        %2740 = vmatpush.xpose.msra.mxu0 0.0
        %2741 = vmatpush.xpose.msra.mxu0 0.0
        %2742 = vmatpush.xpose.msra.mxu0 0.0
        %2743 = vmatpush.xpose.msra.mxu0 0.0
        %2744 = vmatpush.xpose.msra.mxu0 %v2727
        %2745 = vmatmul.f32.gmra.mxu0 %v2724
        %v2746 = vpop.f32.mrf.mxu0
        %v2747 = vadd.f32 0.0, %v2746
        %2748 = vdwg.mxu0
        %v2753 = vperm.slane %v2313, 0
        %v2754 = vperm.slane %v2314, 0
        %v2755 = vperm.slane %v2315, 0
        %v2756 = vperm.slane %v2316, 0
        %v2761 = vmul.f32 %v2446, %v2753
        %v2762 = vmul.f32 %v2447, %v2754
        %v2763 = vmul.f32 %v2448, %v2755
        %v2764 = vmul.f32 %v2449, %v2756
        %v2765 = vsel %vm1617, %v2761, 0.0
        %2766 = vadd.xlane.f32.xlu0 %v2765
        %v2767 = vpop.xlane.xlu0 %2766
        %v2768 = vsel %vm1617, %v2762, 0.0
        %2769 = vadd.xlane.f32.xlu0 %v2768
        %v2770 = vpop.xlane.xlu0 %2769
        %v2771 = vsel %vm1617, %v2763, 0.0
        %2772 = vadd.xlane.f32.xlu0 %v2771
        %v2773 = vpop.xlane.xlu0 %2772
        %v2774 = vsel %vm1617, %v2764, 0.0
        %2775 = vadd.xlane.f32.xlu0 %v2774
        %v2776 = vpop.xlane.xlu0 %2775
        %v2777 = vsel %vm1617, %v2669, -inf
        %2778 = vmax.xlane.f32.xlu0 %v2777
        %v2779 = vpop.xlane.xlu0 %2778
        %v2780 = vsel %vm1617, %v2695, -inf
        %2781 = vmax.xlane.f32.xlu0 %v2780
        %v2782 = vpop.xlane.xlu0 %2781
        %v2783 = vsel %vm1617, %v2721, -inf
        %2784 = vmax.xlane.f32.xlu0 %v2783
        %v2785 = vpop.xlane.xlu0 %2784
        %v2786 = vsel %vm1617, %v2747, -inf
        %2787 = vmax.xlane.f32.xlu0 %v2786
        %v2788 = vpop.xlane.xlu0 %2787
        %v2789 = vmax.f32 %v2779, %v2767
        %v2790 = vmax.f32 %v2782, %v2770
        %v2791 = vmax.f32 %v2785, %v2773
        %v2792 = vmax.f32 %v2788, %v2776
        %v2793 = vsub.f32 %v2669, %v2789
        %v2794 = vsub.f32 %v2695, %v2790
        %v2795 = vsub.f32 %v2721, %v2791
        %v2796 = vsub.f32 %v2747, %v2792
        %v2797 = vmul.f32 %v2793, 1.442695
        %v2798 = vpow.pop %v2797
        %v2799 = vmul.f32 %v2794, 1.442695
        %v2800 = vpow.pop %v2799
        %v2801 = vmul.f32 %v2795, 1.442695
        %v2802 = vpow.pop %v2801
        %v2803 = vmul.f32 %v2796, 1.442695
        %v2804 = vpow.pop %v2803
        %v2805 = vsub.f32 %v2767, %v2789
        %v2806 = vsub.f32 %v2770, %v2790
        %v2807 = vsub.f32 %v2773, %v2791
        %v2808 = vsub.f32 %v2776, %v2792
        %v2809 = vmul.f32 %v2805, 1.442695
        %v2810 = vpow.pop %v2809
        %v2811 = vmul.f32 %v2806, 1.442695
        %v2812 = vpow.pop %v2811
        %v2813 = vmul.f32 %v2807, 1.442695
        %v2814 = vpow.pop %v2813
        %v2815 = vmul.f32 %v2808, 1.442695
        %v2816 = vpow.pop %v2815
        %v2817 = vsel %vm1617, %v2798, 0.0
        %2818 = vadd.xlane.f32.xlu0 %v2817
        %v2819 = vpop.xlane.xlu0 %2818
        %v2820 = vsel %vm1617, %v2800, 0.0
        %2821 = vadd.xlane.f32.xlu0 %v2820
        %v2822 = vpop.xlane.xlu0 %2821
        %v2823 = vsel %vm1617, %v2802, 0.0
        %2824 = vadd.xlane.f32.xlu0 %v2823
        %v2825 = vpop.xlane.xlu0 %2824
        %v2826 = vsel %vm1617, %v2804, 0.0
        %2827 = vadd.xlane.f32.xlu0 %v2826
        %v2828 = vpop.xlane.xlu0 %2827
        %v2829 = vadd.f32 %v2819, %v2810
        %v2830 = vadd.f32 %v2822, %v2812
        %v2831 = vadd.f32 %v2825, %v2814
        %v2832 = vadd.f32 %v2828, %v2816
        %v2833 = vrcp.pop %v2829
        %v2834 = vrcp.pop %v2830
        %v2835 = vrcp.pop %v2831
        %v2836 = vrcp.pop %v2832
        %v2841 = vperm.slane %v2317, 0
        %v2842 = vperm.slane %v2318, 0
        %v2843 = vperm.slane %v2319, 0
        %v2844 = vperm.slane %v2320, 0
        %v2849 = vmul.f32 %v2810, %v2841
        %v2850 = vmul.f32 %v2812, %v2842
        %v2851 = vmul.f32 %v2814, %v2843
        %v2852 = vmul.f32 %v2816, %v2844
        %v2854 = vsel %vm1617, %v2798, 0
        %2856 = vmatpush.msra.mxu0 0.0
        %2857 = vmatpush.msra.mxu0 0.0
        %2858 = vmatpush.msra.mxu0 0.0
        %2859 = vmatpush.msra.mxu0 0.0
        %2860 = vmatpush.msra.mxu0 0.0
        %2861 = vmatpush.msra.mxu0 0.0
        %2862 = vmatpush.msra.mxu0 0.0
        %2863 = vmatpush.msra.mxu0 0.0
        %2864 = vmatpush.msra.mxu0 0.0
        %2865 = vmatpush.msra.mxu0 0.0
        %2866 = vmatpush.msra.mxu0 0.0
        %2867 = vmatpush.msra.mxu0 0.0
        %2868 = vmatpush.msra.mxu0 0.0
        %2869 = vmatpush.msra.mxu0 0.0
        %2870 = vmatpush.msra.mxu0 0.0
        %2871 = vmatpush.msra.mxu0 %v2641
        %2872 = vmatmul.f32.gmra.mxu0 %v2854
        %v2873 = vpop.f32.mrf.mxu0
        %v2874 = vadd.f32 %v2849, %v2873
        %2875 = vdwg.mxu0
        %v2877 = vsel %vm1617, %v2800, 0
        %2879 = vmatpush.msra.mxu0 0.0
        %2880 = vmatpush.msra.mxu0 0.0
        %2881 = vmatpush.msra.mxu0 0.0
        %2882 = vmatpush.msra.mxu0 0.0
        %2883 = vmatpush.msra.mxu0 0.0
        %2884 = vmatpush.msra.mxu0 0.0
        %2885 = vmatpush.msra.mxu0 0.0
        %2886 = vmatpush.msra.mxu0 0.0
        %2887 = vmatpush.msra.mxu0 0.0
        %2888 = vmatpush.msra.mxu0 0.0
        %2889 = vmatpush.msra.mxu0 0.0
        %2890 = vmatpush.msra.mxu0 0.0
        %2891 = vmatpush.msra.mxu0 0.0
        %2892 = vmatpush.msra.mxu0 0.0
        %2893 = vmatpush.msra.mxu0 0.0
        %2894 = vmatpush.msra.mxu0 %v2642
        %2895 = vmatmul.f32.gmra.mxu0 %v2877
        %v2896 = vpop.f32.mrf.mxu0
        %v2897 = vadd.f32 %v2850, %v2896
        %2898 = vdwg.mxu0
        %v2900 = vsel %vm1617, %v2802, 0
        %2902 = vmatpush.msra.mxu0 0.0
        %2903 = vmatpush.msra.mxu0 0.0
        %2904 = vmatpush.msra.mxu0 0.0
        %2905 = vmatpush.msra.mxu0 0.0
        %2906 = vmatpush.msra.mxu0 0.0
        %2907 = vmatpush.msra.mxu0 0.0
        %2908 = vmatpush.msra.mxu0 0.0
        %2909 = vmatpush.msra.mxu0 0.0
        %2910 = vmatpush.msra.mxu0 0.0
        %2911 = vmatpush.msra.mxu0 0.0
        %2912 = vmatpush.msra.mxu0 0.0
        %2913 = vmatpush.msra.mxu0 0.0
        %2914 = vmatpush.msra.mxu0 0.0
        %2915 = vmatpush.msra.mxu0 0.0
        %2916 = vmatpush.msra.mxu0 0.0
        %2917 = vmatpush.msra.mxu0 %v2643
        %2918 = vmatmul.f32.gmra.mxu0 %v2900
        %v2919 = vpop.f32.mrf.mxu0
        %v2920 = vadd.f32 %v2851, %v2919
        %2921 = vdwg.mxu0
        %v2923 = vsel %vm1617, %v2804, 0
        %2925 = vmatpush.msra.mxu0 0.0
        %2926 = vmatpush.msra.mxu0 0.0
        %2927 = vmatpush.msra.mxu0 0.0
        %2928 = vmatpush.msra.mxu0 0.0
        %2929 = vmatpush.msra.mxu0 0.0
        %2930 = vmatpush.msra.mxu0 0.0
        %2931 = vmatpush.msra.mxu0 0.0
        %2932 = vmatpush.msra.mxu0 0.0
        %2933 = vmatpush.msra.mxu0 0.0
        %2934 = vmatpush.msra.mxu0 0.0
        %2935 = vmatpush.msra.mxu0 0.0
        %2936 = vmatpush.msra.mxu0 0.0
        %2937 = vmatpush.msra.mxu0 0.0
        %2938 = vmatpush.msra.mxu0 0.0
        %2939 = vmatpush.msra.mxu0 0.0
        %2940 = vmatpush.msra.mxu0 %v2644
        %2941 = vmatmul.f32.gmra.mxu0 %v2923
        %v2942 = vpop.f32.mrf.mxu0
        %v2943 = vadd.f32 %v2852, %v2942
        %2944 = vdwg.mxu0
        %v2945 = vmul.f32 %v2874, %v2833
        %v2946 = vmul.f32 %v2897, %v2834
        %v2947 = vmul.f32 %v2920, %v2835
        %v2948 = vmul.f32 %v2943, %v2836
        %v2950 = vsel %vm1617, %v2945, 0
        %2952 = vmatpush.msra.mxu0 0.0
        %2953 = vmatpush.msra.mxu0 0.0
        %2954 = vmatpush.msra.mxu0 0.0
        %2955 = vmatpush.msra.mxu0 0.0
        %2956 = vmatpush.msra.mxu0 0.0
        %2957 = vmatpush.msra.mxu0 0.0
        %2958 = vmatpush.msra.mxu0 0.0
        %2959 = vmatpush.msra.mxu0 0.0
        %2960 = vmatpush.msra.mxu0 0.0
        %2961 = vmatpush.msra.mxu0 0.0
        %2962 = vmatpush.msra.mxu0 0.0
        %2963 = vmatpush.msra.mxu0 0.0
        %2964 = vmatpush.msra.mxu0 0.0
        %2965 = vmatpush.msra.mxu0 0.0
        %2966 = vmatpush.msra.mxu0 0.0
        %2967 = vmatpush.msra.mxu0 %v2280
        %2968 = vmatmul.f32.gmra.mxu0 %v2950
        %v2969 = vpop.f32.mrf.mxu0
        %v2970 = vadd.f32 0.0, %v2969
        %2971 = vdwg.mxu0
        %v2973 = vsel %vm1617, %v2946, 0
        %2975 = vmatpush.msra.mxu0 0.0
        %2976 = vmatpush.msra.mxu0 0.0
        %2977 = vmatpush.msra.mxu0 0.0
        %2978 = vmatpush.msra.mxu0 0.0
        %2979 = vmatpush.msra.mxu0 0.0
        %2980 = vmatpush.msra.mxu0 0.0
        %2981 = vmatpush.msra.mxu0 0.0
        %2982 = vmatpush.msra.mxu0 0.0
        %2983 = vmatpush.msra.mxu0 0.0
        %2984 = vmatpush.msra.mxu0 0.0
        %2985 = vmatpush.msra.mxu0 0.0
        %2986 = vmatpush.msra.mxu0 0.0
        %2987 = vmatpush.msra.mxu0 0.0
        %2988 = vmatpush.msra.mxu0 0.0
        %2989 = vmatpush.msra.mxu0 0.0
        %2990 = vmatpush.msra.mxu0 %v2281
        %2991 = vmatmul.f32.gmra.mxu0 %v2973
        %v2992 = vpop.f32.mrf.mxu0
        %v2993 = vadd.f32 0.0, %v2992
        %2994 = vdwg.mxu0
        %v2996 = vsel %vm1617, %v2947, 0
        %2998 = vmatpush.msra.mxu0 0.0
        %2999 = vmatpush.msra.mxu0 0.0
        %3000 = vmatpush.msra.mxu0 0.0
        %3001 = vmatpush.msra.mxu0 0.0
        %3002 = vmatpush.msra.mxu0 0.0
        %3003 = vmatpush.msra.mxu0 0.0
        %3004 = vmatpush.msra.mxu0 0.0
        %3005 = vmatpush.msra.mxu0 0.0
        %3006 = vmatpush.msra.mxu0 0.0
        %3007 = vmatpush.msra.mxu0 0.0
        %3008 = vmatpush.msra.mxu0 0.0
        %3009 = vmatpush.msra.mxu0 0.0
        %3010 = vmatpush.msra.mxu0 0.0
        %3011 = vmatpush.msra.mxu0 0.0
        %3012 = vmatpush.msra.mxu0 0.0
        %3013 = vmatpush.msra.mxu0 %v2282
        %3014 = vmatmul.f32.gmra.mxu0 %v2996
        %v3015 = vpop.f32.mrf.mxu0
        %v3016 = vadd.f32 0.0, %v3015
        %3017 = vdwg.mxu0
        %v3019 = vsel %vm1617, %v2948, 0
        %3021 = vmatpush.msra.mxu0 0.0
        %3022 = vmatpush.msra.mxu0 0.0
        %3023 = vmatpush.msra.mxu0 0.0
        %3024 = vmatpush.msra.mxu0 0.0
        %3025 = vmatpush.msra.mxu0 0.0
        %3026 = vmatpush.msra.mxu0 0.0
        %3027 = vmatpush.msra.mxu0 0.0
        %3028 = vmatpush.msra.mxu0 0.0
        %3029 = vmatpush.msra.mxu0 0.0
        %3030 = vmatpush.msra.mxu0 0.0
        %3031 = vmatpush.msra.mxu0 0.0
        %3032 = vmatpush.msra.mxu0 0.0
        %3033 = vmatpush.msra.mxu0 0.0
        %3034 = vmatpush.msra.mxu0 0.0
        %3035 = vmatpush.msra.mxu0 0.0
        %3036 = vmatpush.msra.mxu0 %v2283
        %3037 = vmatmul.f32.gmra.mxu0 %v3019
        %v3038 = vpop.f32.mrf.mxu0
        %v3039 = vadd.f32 0.0, %v3038
        %3040 = vdwg.mxu0
        %v3041 = vsel %vm538, %v2970, 0.0
        %v3042 = vsel %vm538, %v2993, 0.0
        %v3043 = vadd.f32 %v3041, %v3042
        %v3044 = vsel %vm538, %v3016, 0.0
        %v3045 = vadd.f32 %v3043, %v3044
        %v3046 = vsel %vm538, %v3039, 0.0
        %v3047 = vadd.f32 %v3045, %v3046
        %v3048 = vperm.slane %v2299, 0
        %v3049 = vadd.f32 %v3047, %v3048
        %v3050 = vadd.f32 %v3049, %v2228
        %v3051 = vsel %vm538, %v3050, 0.0
        %3052 = vadd.xlane.f32.xlu0 %v3051
        %v3053 = vpop.xlane.xlu0 %3052
        %v3054 = vmul.f32 %v3053, %v551
        %v3055 = vsub.f32 %v3050, %v3054
        %v3056 = vmul.f32 %v3055, %v3055
        %v3057 = vsel %vm538, %v3056, 0.0
        %3058 = vadd.xlane.f32.xlu0 %v3057
        %v3059 = vpop.xlane.xlu0 %3058
        %v3060 = vmul.f32 %v3059, %v551
        %v3061 = vadd.f32 %v3060, 1e-05
        %v3062 = vrsqrt.pop %v3061
        %v3063 = vmul.f32 %v3062, %v3061
        %v3064 = vmul.f32 %v3063, %v3062
        %v3065 = vmul.f32 0.5, %v3064
        %v3066 = vsub.f32 1.5, %v3065
        %v3067 = vmul.f32 %v3062, %v3066
        %vm3068 = vweird.f32 %v3061
        %vm3069 = vweird.f32 %v3062
        %vm3070 = vmor %vm3068, %vm3069
        %v3071 = vsel %vm3070, %v3062, %v3067
        %v3072 = vmul.f32 %v3055, %v3071
        %v3073 = vperm.slane %v2298, 4
        %v3074 = vmul.f32 %v3072, %v3073
        %v3075 = vperm.slane %v2298, 5
        %v3076 = vadd.f32 %v3074, %v3075
        %v3077 = vperm.slane %v2299, 1
        %v3079 = vsel %vm538, %v3076, 0
        %3081 = vmatpush.msra.mxu0 0.0
        %3082 = vmatpush.msra.mxu0 0.0
        %3083 = vmatpush.msra.mxu0 0.0
        %3084 = vmatpush.msra.mxu0 0.0
        %3085 = vmatpush.msra.mxu0 0.0
        %3086 = vmatpush.msra.mxu0 0.0
        %3087 = vmatpush.msra.mxu0 0.0
        %3088 = vmatpush.msra.mxu0 0.0
        %3089 = vmatpush.msra.mxu0 0.0
        %3090 = vmatpush.msra.mxu0 0.0
        %3091 = vmatpush.msra.mxu0 0.0
        %3092 = vmatpush.msra.mxu0 0.0
        %3093 = vmatpush.msra.mxu0 %v2288
        %3094 = vmatpush.msra.mxu0 %v2287
        %3095 = vmatpush.msra.mxu0 %v2286
        %3096 = vmatpush.msra.mxu0 %v2285
        %3097 = vmatmul.f32.gmra.mxu0 %v3079
        %v3098 = vpop.f32.mrf.mxu0
        %v3099 = vadd.f32 %v3077, %v3098
        %3100 = vdwg.mxu0
        %v3101 = vmul.f32 %v3099, 0.5
        %v3102 = vmul.f32 %v3099, 0.70710677
        %v3103 = vand.u32 2147483647, %v3102
        %v3104 = vmul.f32 %v3103, 0.3275911
        %v3105 = vadd.f32 %v3104, 1.0
        %v3106 = vrcp.pop %v3105
        %v3107 = vmul.f32 %v3105, %v3106
        %v3108 = vsub.f32 1.0, %v3107
        %v3109 = vmul.f32 %v3106, %v3108
        %v3110 = vadd.f32 %v3106, %v3109
        %vm3111 = vweird.f32 %v3105
        %vm3112 = vweird.f32 %v3106
        %vm3113 = vmor %vm3111, %vm3112
        %v3114 = vsel %vm3113, %v3106, %v3110
        %v3115 = vand.u32 2147483647, %v3105
        %vm3116 = vcmp.eq.f32.partialorder %v3115, 8.507059e+37
        %v3117 = vand.u32 %v3105, 2147483648
        %v3118 = vor.u32 1.1754944e-38, %v3117
        %v3119 = vsel %vm3116, %v3118, %v3114
        %v3120 = vmul.f32 1.0, %v3119
        %v3121 = vmul.f32 %v3120, 1.0614054
        %v3122 = vadd.f32 %v3121, -1.4531521
        %v3123 = vmul.f32 %v3122, %v3120
        %v3124 = vadd.f32 %v3123, 1.4214138
        %v3125 = vmul.f32 %v3124, %v3120
        %v3126 = vadd.f32 %v3125, -0.28449672
        %v3127 = vmul.f32 %v3126, %v3120
        %v3128 = vadd.f32 %v3127, 0.2548296
        %v3129 = vmul.f32 %v3128, %v3120
        %v3130 = vsub.f32 0.0, %v3103
        %v3131 = vmul.f32 %v3130, %v3103
        %v3132 = vmul.f32 %v3131, 1.442695
        %v3133 = vpow.pop %v3132
        %v3134 = vmul.f32 %v3129, %v3133
        %v3135 = vsub.f32 1.0, %v3134
        %vm3136 = vcmp.ge.f32.partialorder %v3102, 0.0
        %v3137 = vsub.f32 0.0, %v3135
        %v3138 = vsel %vm3136, %v3135, %v3137
        %v3139 = vadd.f32 %v3138, 1.0
        %v3140 = vmul.f32 %v3101, %v3139
        %v3141 = vsel %vm538, %v3140, 0.0
        %3142 = vadd.xlane.f32.xlu0 %v3141
        %v3143 = vpop.xlane.xlu0 %3142
        %v3144 = vmul.f32 %v3143, %v551
        %v3145 = vsub.f32 %v3140, %v3144
        %v3146 = vmul.f32 %v3145, %v3145
        %v3147 = vsel %vm538, %v3146, 0.0
        %3148 = vadd.xlane.f32.xlu0 %v3147
        %v3149 = vpop.xlane.xlu0 %3148
        %v3150 = vmul.f32 %v3149, %v551
        %v3151 = vadd.f32 %v3150, 1e-05
        %v3152 = vrsqrt.pop %v3151
        %v3153 = vmul.f32 %v3152, %v3151
        %v3154 = vmul.f32 %v3153, %v3152
        %v3155 = vmul.f32 0.5, %v3154
        %v3156 = vsub.f32 1.5, %v3155
        %v3157 = vmul.f32 %v3152, %v3156
        %vm3158 = vweird.f32 %v3151
        %vm3159 = vweird.f32 %v3152
        %vm3160 = vmor %vm3158, %vm3159
        %v3161 = vsel %vm3160, %v3152, %v3157
        %v3162 = vmul.f32 %v3145, %v3161
        %v3163 = vperm.slane %v2298, 6
        %v3164 = vmul.f32 %v3162, %v3163
        %v3165 = vperm.slane %v2298, 7
        %v3166 = vadd.f32 %v3164, %v3165
        %v3167 = vperm.slane %v2299, 2
        %v3169 = vsel %vm538, %v3166, 0
        %3171 = vmatpush.msra.mxu0 0.0
        %3172 = vmatpush.msra.mxu0 0.0
        %3173 = vmatpush.msra.mxu0 0.0
        %3174 = vmatpush.msra.mxu0 0.0
        %3175 = vmatpush.msra.mxu0 0.0
        %3176 = vmatpush.msra.mxu0 0.0
        %3177 = vmatpush.msra.mxu0 0.0
        %3178 = vmatpush.msra.mxu0 0.0
        %3179 = vmatpush.msra.mxu0 0.0
        %3180 = vmatpush.msra.mxu0 0.0
        %3181 = vmatpush.msra.mxu0 0.0
        %3182 = vmatpush.msra.mxu0 0.0
        %3183 = vmatpush.msra.mxu0 %v2292
        %3184 = vmatpush.msra.mxu0 %v2291
        %3185 = vmatpush.msra.mxu0 %v2290
        %3186 = vmatpush.msra.mxu0 %v2289
        %3187 = vmatmul.f32.gmra.mxu0 %v3169
        %v3188 = vpop.f32.mrf.mxu0
        %v3189 = vadd.f32 %v3167, %v3188
        %3190 = vdwg.mxu0
        %v3191 = vmul.f32 %v3189, 0.5
        %v3192 = vmul.f32 %v3189, 0.70710677
        %v3193 = vand.u32 2147483647, %v3192
        %v3194 = vmul.f32 %v3193, 0.3275911
        %v3195 = vadd.f32 %v3194, 1.0
        %v3196 = vrcp.pop %v3195
        %v3197 = vmul.f32 %v3195, %v3196
        %v3198 = vsub.f32 1.0, %v3197
        %v3199 = vmul.f32 %v3196, %v3198
        %v3200 = vadd.f32 %v3196, %v3199
        %vm3201 = vweird.f32 %v3195
        %vm3202 = vweird.f32 %v3196
        %vm3203 = vmor %vm3201, %vm3202
        %v3204 = vsel %vm3203, %v3196, %v3200
        %v3205 = vand.u32 2147483647, %v3195
        %vm3206 = vcmp.eq.f32.partialorder %v3205, 8.507059e+37
        %v3207 = vand.u32 %v3195, 2147483648
        %v3208 = vor.u32 1.1754944e-38, %v3207
        %v3209 = vsel %vm3206, %v3208, %v3204
        %v3210 = vmul.f32 1.0, %v3209
        %v3211 = vmul.f32 %v3210, 1.0614054
        %v3212 = vadd.f32 %v3211, -1.4531521
        %v3213 = vmul.f32 %v3212, %v3210
        %v3214 = vadd.f32 %v3213, 1.4214138
        %v3215 = vmul.f32 %v3214, %v3210
        %v3216 = vadd.f32 %v3215, -0.28449672
        %v3217 = vmul.f32 %v3216, %v3210
        %v3218 = vadd.f32 %v3217, 0.2548296
        %v3219 = vmul.f32 %v3218, %v3210
        %v3220 = vsub.f32 0.0, %v3193
        %v3221 = vmul.f32 %v3220, %v3193
        %v3222 = vmul.f32 %v3221, 1.442695
        %v3223 = vpow.pop %v3222
        %v3224 = vmul.f32 %v3219, %v3223
        %v3225 = vsub.f32 1.0, %v3224
        %vm3226 = vcmp.ge.f32.partialorder %v3192, 0.0
        %v3227 = vsub.f32 0.0, %v3225
        %v3228 = vsel %vm3226, %v3225, %v3227
        %v3229 = vadd.f32 %v3228, 1.0
        %v3230 = vmul.f32 %v3191, %v3229
        %v3231 = vperm.slane %v2299, 3
        %v3233 = vsel %vm538, %v3230, 0
        %3235 = vmatpush.msra.mxu0 0.0
        %3236 = vmatpush.msra.mxu0 0.0
        %3237 = vmatpush.msra.mxu0 0.0
        %3238 = vmatpush.msra.mxu0 0.0
        %3239 = vmatpush.msra.mxu0 0.0
        %3240 = vmatpush.msra.mxu0 0.0
        %3241 = vmatpush.msra.mxu0 0.0
        %3242 = vmatpush.msra.mxu0 0.0
        %3243 = vmatpush.msra.mxu0 0.0
        %3244 = vmatpush.msra.mxu0 0.0
        %3245 = vmatpush.msra.mxu0 0.0
        %3246 = vmatpush.msra.mxu0 0.0
        %3247 = vmatpush.msra.mxu0 %v2296
        %3248 = vmatpush.msra.mxu0 %v2295
        %3249 = vmatpush.msra.mxu0 %v2294
        %3250 = vmatpush.msra.mxu0 %v2293
        %3251 = vmatmul.f32.gmra.mxu0 %v3233
        %v3252 = vpop.f32.mrf.mxu0
        %v3253 = vadd.f32 %v3231, %v3252
        %3254 = vdwg.mxu0
        %v3255 = vadd.f32 %v3253, %v3050
        %3256 = vst.msk [vmem:[%s473] sm:$0xff] %vm538, %v3255
        %s3257 = sand.u32 %s340, 1
        %s3258 = scalar_lea.sflag [#allocation3], %s3257
        %s3259 = sand.u32 %s340, 1
        %s3260 = smul.addr %s3259, 8
        %s3261 = scalar_lea.vmem [#allocation2], %s3260
        // Predicated region
        $region77: #{tpu_custom_call.1} parent=75 // pred_check
          %p3262 = pneg %p350
        $region78: #{tpu_custom_call.1} parent=75 // pred_check_branch
          %3264 = sbr.rel (%p3262) target = $region80
        $region79: #{tpu_custom_call.1} parent=75 // pred_region
          %3266 = vsyncadd %s3258, 0
          %s3267 = smul.addr %s28, 8
          %s3268 = scalar_lea.hbm %s14, %s3267
          %s3270 = sshll.u32 %s3261, 4
          %s3271 = int_to_ptr.vmem [resolvable:$true] %s3270
          %s3272 = sshll.u32 %s3268, 4
          %s3273 = int_to_ptr.hbm [resolvable:$true] %s3272
          %3275 = dma.vmem_to_hbm [thread:$0]  %s3271, 128, %s3273, %s3258
        $region80: #{tpu_custom_call.1} parent=75 // pred_fallthru
          _
      $region76: #{tpu_custom_call.1} parent=5 // pred_fallthru
        _
      %p3276 = scmp.le.s32.totalorder 2, %s23
      // Predicated region
      $region81: #{tpu_custom_call.1} parent=5 // pred_check
        %p3277 = pneg %p3276
      $region82: #{tpu_custom_call.1} parent=5 // pred_check_branch
        %3279 = sbr.rel (%p3277) target = $region84
      $region83: #{tpu_custom_call.1} parent=5 // pred_region
        %s3280 = ssub.s32 %s23, 2
        // Predicated region
        $region85: #{tpu_custom_call.1} parent=83 // pred_check
          %p3281 = pneg %p356
        $region86: #{tpu_custom_call.1} parent=83 // pred_check_branch
          %3283 = sbr.rel (%p3281) target = $region88
        $region87: #{tpu_custom_call.1} parent=83 // pred_region
          %s3284 = sand.u32 %s341, 1
          %s3285 = scalar_lea.sflag [#allocation3], %s3284
          %s3286 = sand.u32 %s341, 1
          %s3287 = smul.addr %s3286, 8
          %s3288 = scalar_lea.vmem [#allocation2], %s3287
          %3290 = dma.done %s3285, 128
        $region88: #{tpu_custom_call.1} parent=83 // pred_fallthru
          _
      $region84: #{tpu_custom_call.1} parent=5 // pred_fallthru
        _
    $region6: #{tpu_custom_call.1} parent=1 // loop_footer
      %s27 = sadd.s32 1, %s23
    $region7: #{tpu_custom_call.1} parent=1 // loop_footer_branch
      %22 = sbr.rel target = $region3
    $region8: #{tpu_custom_call.1} parent=1 // loop_exit
      _
    %3291 = vsyncpa [#allocation3], 1
    %s3292 = scalar_lea.sflag [#allocation3], 1
    %3293 = vsyncpa %s3292, 1

</llo_original>
